<compile_context>
chip_gen: v6e
topology: v6e:2x2x1
jax: 0.10.0
libtpu: 0.0.40
codegen_flags: <defaults>
</compile_context>

<pallas_src>
import functools

import jax
import jax.numpy as jnp
from jax.experimental import pallas as pl
from jax.experimental.pallas import tpu as pltpu

D_IN = 1760          # native feature dim (no padding)
D_H = 256
D_Z = 32
D_ML = 128           # fused [mu | logvar | zero-pad] projection width (lane-dense)


def _round_up(n, m):
    return (n + m - 1) // m * m


def _choose_tiling(batch, max_tile):
    """Return (TB, n_tiles, B_pad) with minimal batch padding."""
    if batch <= max_tile:
        return batch, 1, batch                     # block == full dim, no padding
    n = pl.cdiv(batch, max_tile)
    tb = _round_up(pl.cdiv(batch, n), 8)           # <= max_tile (max_tile % 8 == 0)
    return tb, n, n * tb


def vae_dual_kernel(
    x_ref,              # (TB, 1760) bf16
    w1_ref, b1_ref,     # (1760, 256) bf16, (1, 256) f32
    w2_ref, b2_ref,     # (256, 128)  f32,  (1, 128) f32   fused fc21|fc22, lane-padded
    w3_ref, b3_ref,     # (32, 256)   f32,  (1, 256) f32
    w4_ref, b4_ref,     # (256, 1760) bf16, (1, 1760) f32
    drop_ref,           # (TB, 256) int8 keep-mask (0/1)
    eps_ref,            # (TB, 32)  f32 N(0,1) noise
    recon_ref,          # out (TB, 1760) bf16
    ml_ref,             # out (TB, 128)  f32  -> [mu | logvar | 0]
    *, inv_keep,        # static 1/keep_prob
):
    # encode: h1 = dropout(relu(fc1(x)))   (bf16 MXU operands, f32 accumulate)
    h1 = jnp.dot(x_ref[...], w1_ref[...],
                 preferred_element_type=jnp.float32) + b1_ref[...]
    h1 = jnp.maximum(h1, 0.0) * (drop_ref[...].astype(jnp.float32) * inv_keep)

    # fused mu|logvar projection (tiny -> keep it in f32 for accuracy)
    ml = jnp.dot(h1, w2_ref[...], preferred_element_type=jnp.float32) + b2_ref[...]
    mu = ml[:, :D_Z]
    logvar = ml[:, D_Z:2 * D_Z]

    # reparameterize: z = mu + eps * exp(0.5 * logvar)   (f32, exp on EUP)
    z = mu + eps_ref[...] * jnp.exp(0.5 * logvar)

    # decode: sigmoid(fc4(relu(fc3(z))))
    h3 = jnp.maximum(
        jnp.dot(z, w3_ref[...], preferred_element_type=jnp.float32) + b3_ref[...],
        0.0)
    logits = jnp.dot(h3.astype(jnp.bfloat16), w4_ref[...],
                     preferred_element_type=jnp.float32) + b4_ref[...]

    # sigmoid in f32 (v5e has no bf16 EUP), cast on the store only.
    recon_ref[...] = jax.nn.sigmoid(logits).astype(recon_ref.dtype)
    ml_ref[...] = ml


def vae_dual_forward(x, params, drop_keep_mask, eps, *,
                     keep_prob=0.7, max_batch_tile=512,
                     recon_dtype=jnp.bfloat16):
    """x: (..., 1760). Returns (recon (B,1760) recon_dtype, mu (B,32) f32,
    logvar (B,32) f32)."""
    x = x.reshape(-1, D_IN)
    B = x.shape[0]

    # Stream activations in bf16 (the cast fuses with the producer of x).
    x_in = x if x.dtype == jnp.bfloat16 else x.astype(jnp.bfloat16)
    mask = drop_keep_mask.reshape(B, D_H).astype(jnp.int8)
    eps = eps.reshape(B, D_Z).astype(jnp.float32)

    TB, n_tiles, B_pad = _choose_tiling(B, max_batch_tile)
    pad = B_pad - B
    if pad:
        x_in = jnp.pad(x_in, ((0, pad), (0, 0)))
        mask = jnp.pad(mask, ((0, pad), (0, 0)))
        eps = jnp.pad(eps, ((0, pad), (0, 0)))

    def resident(a):                      # weights/biases: same block every step
        return pl.BlockSpec(a.shape, lambda i: (0, 0))

    in_specs = [
        pl.BlockSpec((TB, D_IN), lambda i: (i, 0)),      # x (bf16)
        resident(params["w1"]), resident(params["b1"]),
        resident(params["w2"]), resident(params["b2"]),
        resident(params["w3"]), resident(params["b3"]),
        resident(params["w4"]), resident(params["b4"]),
        pl.BlockSpec((TB, D_H), lambda i: (i, 0)),       # dropout keep-mask (int8)
        pl.BlockSpec((TB, D_Z), lambda i: (i, 0)),       # eps (f32)
    ]
    out_shapes = (
        jax.ShapeDtypeStruct((B_pad, D_IN), recon_dtype),
        jax.ShapeDtypeStruct((B_pad, D_ML), jnp.float32),
    )
    out_specs = (
        pl.BlockSpec((TB, D_IN), lambda i: (i, 0)),
        pl.BlockSpec((TB, D_ML), lambda i: (i, 0)),
    )

    weight_bytes = sum(int(p.size) * p.dtype.itemsize for p in params.values())
    flops = 2 * B_pad * (D_IN * D_H + D_H * D_ML + D_Z * D_H + D_H * D_IN)
    transcendentals = B_pad * (D_Z + D_IN)
    bytes_accessed = (weight_bytes
                      + B_pad * (D_IN * 2 + D_H * 1 + D_Z * 4)          # in streams
                      + B_pad * (D_IN * jnp.dtype(recon_dtype).itemsize
                                 + D_ML * 4))                            # out streams
    cost = pl.CostEstimate(flops=flops, transcendentals=transcendentals,
                           bytes_accessed=bytes_accessed)

    kernel = functools.partial(vae_dual_kernel, inv_keep=float(1.0 / keep_prob))

    recon_p, ml_p = pl.pallas_call(
        kernel,
        out_shape=out_shapes,
        grid=(n_tiles,),
        in_specs=in_specs,
        out_specs=out_specs,
        compiler_params=pltpu.CompilerParams(
            dimension_semantics=("parallel",),
            vmem_limit_bytes=48 << 20),
        cost_estimate=cost,
    )(x_in, params["w1"], params["b1"], params["w2"], params["b2"],
      params["w3"], params["b3"], params["w4"], params["b4"], mask, eps)

    recon = recon_p[:B] if pad else recon_p
    ml = ml_p[:B] if pad else ml_p
    mu = ml[:, :D_Z]
    logvar = ml[:, D_Z:2 * D_Z]
    return recon, mu, logvar


def init_params(key):
    """nn.Linear-style init (uniform +/- 1/sqrt(fan_in)); weights stored
    (in_features, out_features). fc21/fc22 are fused into a 128-lane-padded
    projection; fc1/fc4 weights stored bf16, small weights and biases f32."""
    def linear(k, fan_in, fan_out):
        kw, kb = jax.random.split(k)
        bound = 1.0 / (fan_in ** 0.5)
        w = jax.random.uniform(kw, (fan_in, fan_out), jnp.float32, -bound, bound)
        b = jax.random.uniform(kb, (1, fan_out), jnp.float32, -bound, bound)
        return w, b

    k1, k21, k22, k3, k4 = jax.random.split(key, 5)
    w1, b1 = linear(k1, D_IN, D_H)
    w21, b21 = linear(k21, D_H, D_Z)
    w22, b22 = linear(k22, D_H, D_Z)
    w3, b3 = linear(k3, D_Z, D_H)
    w4, b4 = linear(k4, D_H, D_IN)

    w2 = (jnp.zeros((D_H, D_ML), jnp.float32)
          .at[:, :D_Z].set(w21).at[:, D_Z:2 * D_Z].set(w22))
    b2 = (jnp.zeros((1, D_ML), jnp.float32)
          .at[:, :D_Z].set(b21).at[:, D_Z:2 * D_Z].set(b22))

    params = {
        "w1": w1.astype(jnp.bfloat16), "b1": b1,
        "w2": w2, "b2": b2,            # f32: tiny matmul, tighter mu/logvar
        "w3": w3, "b3": b3,            # f32
        "w4": w4.astype(jnp.bfloat16), "b4": b4,
    }
    ref = dict(w1=w1, b1=b1, w21=w21, b21=b21, w22=w22, b22=b22,
               w3=w3, b3=b3, w4=w4, b4=b4)
    return params, ref


def reference_forward(x, ref, drop_mask, eps):
    """Pure-JAX f32 reference mirroring the PyTorch module (given mask/eps)."""
    h1 = jnp.maximum(x @ ref["w1"] + ref["b1"], 0.0) * drop_mask
    mu = h1 @ ref["w21"] + ref["b21"]
    logvar = h1 @ ref["w22"] + ref["b22"]
    z = mu + eps * jnp.exp(0.5 * logvar)
    h3 = jnp.maximum(z @ ref["w3"] + ref["b3"], 0.0)
    recon = jax.nn.sigmoid(h3 @ ref["w4"] + ref["b4"])
    return recon, mu, logvar


if __name__ == "__main__":
    key = jax.random.PRNGKey(0)
    k_param, k_x, k_drop, k_eps = jax.random.split(key, 4)

    B = 4
    keep_prob = 0.7
    params, ref_params = init_params(k_param)
    x = jax.random.normal(k_x, (B, D_IN), jnp.float32)

    # nn.Dropout(0.3) in training mode: keep with prob 0.7 (scaling by 1/0.7
    # happens inside the kernel).  torch.randn_like equivalent noise below.
    keep_mask = jax.random.bernoulli(k_drop, keep_prob, (B, D_H))      # bool
    eps = jax.random.normal(k_eps, (B, D_Z), jnp.float32)

    fwd = jax.jit(lambda xx, mm, ee: vae_dual_forward(
        xx, params, mm, ee, keep_prob=keep_prob))
    recon, mu, logvar = fwd(x, keep_mask, eps)
    jax.block_until_ready((recon, mu, logvar))

    assert recon.shape == (B, D_IN) and mu.shape == (B, D_Z) and logvar.shape == (B, D_Z)
    recon_f32 = recon.astype(jnp.float32)
    assert bool(jnp.all(jnp.isfinite(recon_f32)))
    assert bool(jnp.all((recon_f32 >= 0.0) & (recon_f32 <= 1.0)))

    # check vs. f32 reference (fc1/fc4 run in bf16 on the MXU, recon is bf16)
    drop_mask_f32 = keep_mask.astype(jnp.float32) / keep_prob
    r_ref, mu_ref, lv_ref = reference_forward(x, ref_params, drop_mask_f32, eps)
    assert float(jnp.max(jnp.abs(recon_f32 - r_ref))) < 0.1
    assert float(jnp.max(jnp.abs(mu - mu_ref))) < 0.1
    assert float(jnp.max(jnp.abs(logvar - lv_ref))) < 0.1

    print("KERNEL_OK")
</pallas_src>

<mosaic_0001>
module attributes {stable_mosaic.version = 11 : i64} {
  func.func @vae_dual_kernel(%arg0: i32, %arg1: memref<4x1760xbf16, #tpu.memory_space<vmem>>, %arg2: memref<1760x256xbf16, #tpu.memory_space<vmem>>, %arg3: memref<1x256xf32, #tpu.memory_space<vmem>>, %arg4: memref<256x128xf32, #tpu.memory_space<vmem>>, %arg5: memref<1x128xf32, #tpu.memory_space<vmem>>, %arg6: memref<32x256xf32, #tpu.memory_space<vmem>>, %arg7: memref<1x256xf32, #tpu.memory_space<vmem>>, %arg8: memref<256x1760xbf16, #tpu.memory_space<vmem>>, %arg9: memref<1x1760xf32, #tpu.memory_space<vmem>>, %arg10: memref<4x256xi8, #tpu.memory_space<vmem>>, %arg11: memref<4x32xf32, #tpu.memory_space<vmem>>, %arg12: memref<4x1760xbf16, #tpu.memory_space<vmem>>, %arg13: memref<4x128xf32, #tpu.memory_space<vmem>>) attributes {dimension_semantics = [#tpu.dimension_semantics<parallel>], iteration_bounds = array<i64: 1>, scalar_prefetch = 0 : i64, scratch_operands = 0 : i64, tpu.core_type = #tpu.core_type<tc>, window_params = [{transform_indices = @transform_0, window_bounds = array<i64: 4, 1760>}, {pipeline_mode = #tpu.pipeline_mode<synchronous>, transform_indices = @transform_1, window_bounds = array<i64: 1760, 256>}, {pipeline_mode = #tpu.pipeline_mode<synchronous>, transform_indices = @transform_2, window_bounds = array<i64: 1, 256>}, {pipeline_mode = #tpu.pipeline_mode<synchronous>, transform_indices = @transform_3, window_bounds = array<i64: 256, 128>}, {pipeline_mode = #tpu.pipeline_mode<synchronous>, transform_indices = @transform_4, window_bounds = array<i64: 1, 128>}, {pipeline_mode = #tpu.pipeline_mode<synchronous>, transform_indices = @transform_5, window_bounds = array<i64: 32, 256>}, {pipeline_mode = #tpu.pipeline_mode<synchronous>, transform_indices = @transform_6, window_bounds = array<i64: 1, 256>}, {pipeline_mode = #tpu.pipeline_mode<synchronous>, transform_indices = @transform_7, window_bounds = array<i64: 256, 1760>}, {pipeline_mode = #tpu.pipeline_mode<synchronous>, transform_indices = @transform_8, window_bounds = array<i64: 1, 1760>}, {transform_indices = @transform_9, window_bounds = array<i64: 4, 256>}, {transform_indices = @transform_10, window_bounds = array<i64: 4, 32>}, {transform_indices = @transform_11, window_bounds = array<i64: 4, 1760>}, {transform_indices = @transform_12, window_bounds = array<i64: 4, 128>}]} {
    %c0 = arith.constant 0 : index
    %c0_0 = arith.constant 0 : index
    %0 = vector.load %arg1[%c0, %c0_0] : memref<4x1760xbf16, #tpu.memory_space<vmem>>, vector<4x1760xbf16>
    %c0_1 = arith.constant 0 : index
    %c0_2 = arith.constant 0 : index
    %1 = vector.load %arg2[%c0_1, %c0_2] : memref<1760x256xbf16, #tpu.memory_space<vmem>>, vector<1760x256xbf16>
    %cst = arith.constant dense<0.000000e+00> : vector<4x256xf32>
    %2 = tpu.matmul %0, %1, %cst {dimension_numbers = #tpu.dot_dimension_numbers<[1], [0], [0], [1], [0, 0, 1, 1], [], []>} : vector<4x1760xbf16>, vector<1760x256xbf16>, vector<4x256xf32> -> vector<4x256xf32>
    %c0_3 = arith.constant 0 : index
    %c0_4 = arith.constant 0 : index
    %3 = vector.load %arg3[%c0_3, %c0_4] : memref<1x256xf32, #tpu.memory_space<vmem>>, vector<1x256xf32>
    %4 = vector.broadcast %3 : vector<1x256xf32> to vector<4x256xf32>
    %5 = arith.addf %2, %4 : vector<4x256xf32>
    %cst_5 = arith.constant 0.000000e+00 : f32
    %6 = vector.broadcast %cst_5 : f32 to vector<4x256xf32>
    %7 = arith.maximumf %5, %6 : vector<4x256xf32>
    %c0_6 = arith.constant 0 : index
    %c0_7 = arith.constant 0 : index
    %8 = vector.load %arg10[%c0_6, %c0_7] : memref<4x256xi8, #tpu.memory_space<vmem>>, vector<4x256xi8>
    %9 = arith.sitofp %8 : vector<4x256xi8> to vector<4x256xf32>
    %cst_8 = arith.constant 1.42857146 : f32
    %10 = vector.broadcast %cst_8 : f32 to vector<4x256xf32>
    %11 = arith.mulf %9, %10 : vector<4x256xf32>
    %12 = arith.mulf %7, %11 : vector<4x256xf32>
    %c0_9 = arith.constant 0 : index
    %c0_10 = arith.constant 0 : index
    %13 = vector.load %arg4[%c0_9, %c0_10] : memref<256x128xf32, #tpu.memory_space<vmem>>, vector<256x128xf32>
    %cst_11 = arith.constant dense<0.000000e+00> : vector<4x128xf32>
    %14 = tpu.matmul %12, %13, %cst_11 {dimension_numbers = #tpu.dot_dimension_numbers<[1], [0], [0], [1], [0, 0, 1, 1], [], []>} : vector<4x256xf32>, vector<256x128xf32>, vector<4x128xf32> -> vector<4x128xf32>
    %c0_12 = arith.constant 0 : index
    %c0_13 = arith.constant 0 : index
    %15 = vector.load %arg5[%c0_12, %c0_13] : memref<1x128xf32, #tpu.memory_space<vmem>>, vector<1x128xf32>
    %16 = vector.broadcast %15 : vector<1x128xf32> to vector<4x128xf32>
    %17 = arith.addf %14, %16 : vector<4x128xf32>
    %18 = vector.extract_strided_slice %17 {offsets = [0, 0], sizes = [4, 32], strides = [1, 1]} : vector<4x128xf32> to vector<4x32xf32>
    %19 = vector.extract_strided_slice %17 {offsets = [0, 32], sizes = [4, 32], strides = [1, 1]} : vector<4x128xf32> to vector<4x32xf32>
    %c0_14 = arith.constant 0 : index
    %c0_15 = arith.constant 0 : index
    %20 = vector.load %arg11[%c0_14, %c0_15] : memref<4x32xf32, #tpu.memory_space<vmem>>, vector<4x32xf32>
    %cst_16 = arith.constant 5.000000e-01 : f32
    %21 = vector.broadcast %cst_16 : f32 to vector<4x32xf32>
    %22 = arith.mulf %21, %19 : vector<4x32xf32>
    %23 = math.exp %22 : vector<4x32xf32>
    %24 = arith.mulf %20, %23 : vector<4x32xf32>
    %25 = arith.addf %18, %24 : vector<4x32xf32>
    %c0_17 = arith.constant 0 : index
    %c0_18 = arith.constant 0 : index
    %26 = vector.load %arg6[%c0_17, %c0_18] : memref<32x256xf32, #tpu.memory_space<vmem>>, vector<32x256xf32>
    %cst_19 = arith.constant dense<0.000000e+00> : vector<4x256xf32>
    %27 = tpu.matmul %25, %26, %cst_19 {dimension_numbers = #tpu.dot_dimension_numbers<[1], [0], [0], [1], [0, 0, 1, 1], [], []>} : vector<4x32xf32>, vector<32x256xf32>, vector<4x256xf32> -> vector<4x256xf32>
    %c0_20 = arith.constant 0 : index
    %c0_21 = arith.constant 0 : index
    %28 = vector.load %arg7[%c0_20, %c0_21] : memref<1x256xf32, #tpu.memory_space<vmem>>, vector<1x256xf32>
    %29 = vector.broadcast %28 : vector<1x256xf32> to vector<4x256xf32>
    %30 = arith.addf %27, %29 : vector<4x256xf32>
    %cst_22 = arith.constant 0.000000e+00 : f32
    %31 = vector.broadcast %cst_22 : f32 to vector<4x256xf32>
    %32 = arith.maximumf %30, %31 : vector<4x256xf32>
    %33 = arith.truncf %32 : vector<4x256xf32> to vector<4x256xbf16>
    %c0_23 = arith.constant 0 : index
    %c0_24 = arith.constant 0 : index
    %34 = vector.load %arg8[%c0_23, %c0_24] : memref<256x1760xbf16, #tpu.memory_space<vmem>>, vector<256x1760xbf16>
    %cst_25 = arith.constant dense<0.000000e+00> : vector<4x1760xf32>
    %35 = tpu.matmul %33, %34, %cst_25 {dimension_numbers = #tpu.dot_dimension_numbers<[1], [0], [0], [1], [0, 0, 1, 1], [], []>} : vector<4x256xbf16>, vector<256x1760xbf16>, vector<4x1760xf32> -> vector<4x1760xf32>
    %c0_26 = arith.constant 0 : index
    %c0_27 = arith.constant 0 : index
    %36 = vector.load %arg9[%c0_26, %c0_27] : memref<1x1760xf32, #tpu.memory_space<vmem>>, vector<1x1760xf32>
    %37 = vector.broadcast %36 : vector<1x1760xf32> to vector<4x1760xf32>
    %38 = arith.addf %35, %37 : vector<4x1760xf32>
    %39 = arith.negf %38 : vector<4x1760xf32>
    %40 = math.exp %39 : vector<4x1760xf32>
    %cst_28 = arith.constant 1.000000e+00 : f32
    %41 = vector.broadcast %cst_28 : f32 to vector<4x1760xf32>
    %42 = arith.addf %41, %40 : vector<4x1760xf32>
    %43 = arith.divf %41, %42 : vector<4x1760xf32>
    %44 = arith.truncf %43 : vector<4x1760xf32> to vector<4x1760xbf16>
    %c0_29 = arith.constant 0 : index
    %c0_30 = arith.constant 0 : index
    %45 = vector.load %arg12[%c0_29, %c0_30] : memref<4x1760xbf16, #tpu.memory_space<vmem>>, vector<4x1760xbf16>
    tpu.vector_store %arg12[%c0_29, %c0_30], %44 {strides = array<i32>} : memref<4x1760xbf16, #tpu.memory_space<vmem>>, vector<4x1760xbf16>,
    %c0_31 = arith.constant 0 : index
    %c0_32 = arith.constant 0 : index
    %46 = vector.load %arg13[%c0_31, %c0_32] : memref<4x128xf32, #tpu.memory_space<vmem>>, vector<4x128xf32>
    tpu.vector_store %arg13[%c0_31, %c0_32], %17 {strides = array<i32>} : memref<4x128xf32, #tpu.memory_space<vmem>>, vector<4x128xf32>,
    return
  }
  func.func @transform_0(%arg0: i32) -> (i32, i32) {
    %c0_i32 = arith.constant 0 : i32
    %c0_i32_0 = arith.constant 0 : i32
    return %arg0, %c0_i32 : i32, i32
  }
  func.func @transform_1(%arg0: i32) -> (i32, i32) {
    %c0_i32 = arith.constant 0 : i32
    %c0_i32_0 = arith.constant 0 : i32
    %c0_i32_1 = arith.constant 0 : i32
    return %c0_i32, %c0_i32_0 : i32, i32
  }
  func.func @transform_2(%arg0: i32) -> (i32, i32) {
    %c0_i32 = arith.constant 0 : i32
    %c0_i32_0 = arith.constant 0 : i32
    %c0_i32_1 = arith.constant 0 : i32
    return %c0_i32, %c0_i32_0 : i32, i32
  }
  func.func @transform_3(%arg0: i32) -> (i32, i32) {
    %c0_i32 = arith.constant 0 : i32
    %c0_i32_0 = arith.constant 0 : i32
    %c0_i32_1 = arith.constant 0 : i32
    return %c0_i32, %c0_i32_0 : i32, i32
  }
  func.func @transform_4(%arg0: i32) -> (i32, i32) {
    %c0_i32 = arith.constant 0 : i32
    %c0_i32_0 = arith.constant 0 : i32
    %c0_i32_1 = arith.constant 0 : i32
    return %c0_i32, %c0_i32_0 : i32, i32
  }
  func.func @transform_5(%arg0: i32) -> (i32, i32) {
    %c0_i32 = arith.constant 0 : i32
    %c0_i32_0 = arith.constant 0 : i32
    %c0_i32_1 = arith.constant 0 : i32
    return %c0_i32, %c0_i32_0 : i32, i32
  }
  func.func @transform_6(%arg0: i32) -> (i32, i32) {
    %c0_i32 = arith.constant 0 : i32
    %c0_i32_0 = arith.constant 0 : i32
    %c0_i32_1 = arith.constant 0 : i32
    return %c0_i32, %c0_i32_0 : i32, i32
  }
  func.func @transform_7(%arg0: i32) -> (i32, i32) {
    %c0_i32 = arith.constant 0 : i32
    %c0_i32_0 = arith.constant 0 : i32
    %c0_i32_1 = arith.constant 0 : i32
    return %c0_i32, %c0_i32_0 : i32, i32
  }
  func.func @transform_8(%arg0: i32) -> (i32, i32) {
    %c0_i32 = arith.constant 0 : i32
    %c0_i32_0 = arith.constant 0 : i32
    %c0_i32_1 = arith.constant 0 : i32
    return %c0_i32, %c0_i32_0 : i32, i32
  }
  func.func @transform_9(%arg0: i32) -> (i32, i32) {
    %c0_i32 = arith.constant 0 : i32
    %c0_i32_0 = arith.constant 0 : i32
    return %arg0, %c0_i32 : i32, i32
  }
  func.func @transform_10(%arg0: i32) -> (i32, i32) {
    %c0_i32 = arith.constant 0 : i32
    %c0_i32_0 = arith.constant 0 : i32
    return %arg0, %c0_i32 : i32, i32
  }
  func.func @transform_11(%arg0: i32) -> (i32, i32) {
    %c0_i32 = arith.constant 0 : i32
    %c0_i32_0 = arith.constant 0 : i32
    return %arg0, %c0_i32 : i32, i32
  }
  func.func @transform_12(%arg0: i32) -> (i32, i32) {
    %c0_i32 = arith.constant 0 : i32
    %c0_i32_0 = arith.constant 0 : i32
    return %arg0, %c0_i32 : i32, i32
  }
}

</mosaic_0001>

<llo_original>
// kernel: _lambda_.1
$region0: #{_lambda_.1}
  #allocation0 [shape = 'u32[]', space=smem, size = 0x4, offset = 0x4, fixed_abs, tag = 'smem constant byte address 0x4 - core index']
  #allocation1 [shape = 'u32[144,128]{1,0:T(1,128)}', space=vmem, size = 0x12000, scoped, tag = 'internal scratch']
  %s0 = inlined_call_operand.vmem [shape: bf16[4,1760], index: 0, kind: input, shape index: {}]
  %s1 = inlined_call_operand.hbm [shape: bf16[1760,256], index: 1, kind: input, shape index: {}]
  %s2 = inlined_call_operand.vmem [shape: f32[1,256], index: 2, kind: input, shape index: {}]
  %s3 = inlined_call_operand.hbm [shape: f32[256,128], index: 3, kind: input, shape index: {}]
  %s4 = inlined_call_operand.vmem [shape: f32[1,128], index: 4, kind: input, shape index: {}]
  %s5 = inlined_call_operand.vmem [shape: f32[32,256], index: 5, kind: input, shape index: {}]
  %s6 = inlined_call_operand.vmem [shape: f32[1,256], index: 6, kind: input, shape index: {}]
  %s7 = inlined_call_operand.hbm [shape: bf16[256,1760], index: 7, kind: input, shape index: {}]
  %s8 = inlined_call_operand.vmem [shape: f32[1,1760], index: 8, kind: input, shape index: {}]
  %s9 = inlined_call_operand.vmem [shape: s8[4,256], index: 9, kind: input, shape index: {}]
  %s10 = inlined_call_operand.vmem [shape: f32[4,32], index: 10, kind: input, shape index: {}]
  %s11 = inlined_call_operand.hbm [shape: bf16[4,1760], index: 11, kind: output, shape index: {0}]
  %s12 = inlined_call_operand.vmem [shape: f32[4,128], index: 12, kind: output, shape index: {1}]
  %13 = xla_tuple %s11, %s12
  %s14 = sld [smem:[#allocation0]]
  $region74: #{_lambda_.1} parent=0
    _
  %s16 = ssub.s32 1, %s14
  %s17 = scalar_select 0, %s16, %s14
  $region1: #{_lambda_.1} parent=0
    #allocation2 [shape = 'u8[901120]{0}', space=vmem, size = 0xdc000, scoped, tag = 'input window, operand 1, single buffered']
    #allocation3 [shape = 's32[1]{0}', space=sflag, size = 0x4, scoped, tag = 'scoped memory for _lambda_.1']
    #allocation4 [shape = 's32[1]{0}', space=sflag, size = 0x4, scoped, tag = 'scoped memory for _lambda_.1']
    #allocation5 [shape = 'u8[131072]{0}', space=vmem, size = 0x20000, scoped, tag = 'input window, operand 3, single buffered']
    #allocation6 [shape = 's32[1]{0}', space=sflag, size = 0x4, scoped, tag = 'scoped memory for _lambda_.1']
    #allocation7 [shape = 'u8[917504]{0}', space=vmem, size = 0xe0000, scoped, tag = 'input window, operand 7, single buffered']
    #allocation8 [shape = 'u8[14336]{0}', space=vmem, size = 0x3800, scoped, tag = 'output window, operand 0, single buffered']
    %18 = vsyncpa [#allocation3], 0
    %19 = vsyncpa [#allocation6], 0
    %20 = vsyncpa [#allocation4], 0
    // Predicated region
    $region2: #{_lambda_.1} parent=1 // pred_check
      _
    $region3: #{_lambda_.1} parent=1 // pred_check_branch
      %22 = sbr.rel (0) target = $region5
    $region4: #{_lambda_.1} parent=1 // pred_region
      _
    $region5: #{_lambda_.1} parent=1 // pred_fallthru
      _
    // Predicated region
    $region6: #{_lambda_.1} parent=1 // pred_check
      _
    $region7: #{_lambda_.1} parent=1 // pred_check_branch
      %24 = sbr.rel (0) target = $region9
    $region8: #{_lambda_.1} parent=1 // pred_region
      %s26 = ssub.s32 28160, 28160
      %27 = vsyncadd [#allocation3], %s26
      %s28 = sshll.u32 [#allocation2], 4
      %s29 = int_to_ptr.vmem [resolvable:$true] %s28
      %34 = dma.hbm_to_vmem [thread:$0]  %s1, 28160, %s29, [#allocation3], 128, 128, 8
    $region9: #{_lambda_.1} parent=1 // pred_fallthru
      _
    // Predicated region
    $region10: #{_lambda_.1} parent=1 // pred_check
      _
    $region11: #{_lambda_.1} parent=1 // pred_check_branch
      %36 = sbr.rel (0) target = $region13
    $region12: #{_lambda_.1} parent=1 // pred_region
      _
    $region13: #{_lambda_.1} parent=1 // pred_fallthru
      _
    // Predicated region
    $region14: #{_lambda_.1} parent=1 // pred_check
      _
    $region15: #{_lambda_.1} parent=1 // pred_check_branch
      %38 = sbr.rel (0) target = $region17
    $region16: #{_lambda_.1} parent=1 // pred_region
      %s40 = ssub.s32 4096, 4096
      %41 = vsyncadd [#allocation6], %s40
      %s42 = sshll.u32 [#allocation5], 4
      %s43 = int_to_ptr.vmem [resolvable:$true] %s42
      %48 = dma.hbm_to_vmem [thread:$0]  %s3, 4096, %s43, [#allocation6], 128, 128, 8
    $region17: #{_lambda_.1} parent=1 // pred_fallthru
      _
    // Predicated region
    $region18: #{_lambda_.1} parent=1 // pred_check
      _
    $region19: #{_lambda_.1} parent=1 // pred_check_branch
      %50 = sbr.rel (0) target = $region21
    $region20: #{_lambda_.1} parent=1 // pred_region
      _
    $region21: #{_lambda_.1} parent=1 // pred_fallthru
      _
    // Predicated region
    $region22: #{_lambda_.1} parent=1 // pred_check
      _
    $region23: #{_lambda_.1} parent=1 // pred_check_branch
      %52 = sbr.rel (0) target = $region25
    $region24: #{_lambda_.1} parent=1 // pred_region
      _
    $region25: #{_lambda_.1} parent=1 // pred_fallthru
      _
    // Predicated region
    $region26: #{_lambda_.1} parent=1 // pred_check
      _
    $region27: #{_lambda_.1} parent=1 // pred_check_branch
      %54 = sbr.rel (0) target = $region29
    $region28: #{_lambda_.1} parent=1 // pred_region
      _
    $region29: #{_lambda_.1} parent=1 // pred_fallthru
      _
    // Predicated region
    $region30: #{_lambda_.1} parent=1 // pred_check
      _
    $region31: #{_lambda_.1} parent=1 // pred_check_branch
      %56 = sbr.rel (0) target = $region33
    $region32: #{_lambda_.1} parent=1 // pred_region
      %s58 = ssub.s32 28672, 28672
      %59 = vsyncadd [#allocation6], %s58
      %s60 = sshll.u32 [#allocation7], 4
      %s61 = int_to_ptr.vmem [resolvable:$true] %s60
      %66 = dma.hbm_to_vmem [thread:$0]  %s7, 28672, %s61, [#allocation6], 896, 896, 56
    $region33: #{_lambda_.1} parent=1 // pred_fallthru
      _
    // Predicated region
    $region34: #{_lambda_.1} parent=1 // pred_check
      _
    $region35: #{_lambda_.1} parent=1 // pred_check_branch
      %68 = sbr.rel (0) target = $region37
    $region36: #{_lambda_.1} parent=1 // pred_region
      _
    $region37: #{_lambda_.1} parent=1 // pred_fallthru
      _
    // Predicated region
    $region38: #{_lambda_.1} parent=1 // pred_check
      _
    $region39: #{_lambda_.1} parent=1 // pred_check_branch
      %70 = sbr.rel (0) target = $region41
    $region40: #{_lambda_.1} parent=1 // pred_region
      _
    $region41: #{_lambda_.1} parent=1 // pred_fallthru
      _
    // Predicated region
    $region42: #{_lambda_.1} parent=1 // pred_check
      _
    $region43: #{_lambda_.1} parent=1 // pred_check_branch
      %72 = sbr.rel (0) target = $region45
    $region44: #{_lambda_.1} parent=1 // pred_region
      _
    $region45: #{_lambda_.1} parent=1 // pred_fallthru
      _
    // Predicated region
    $region46: #{_lambda_.1} parent=1 // pred_check
      _
    $region47: #{_lambda_.1} parent=1 // pred_check_branch
      %74 = sbr.rel (0) target = $region49
    $region48: #{_lambda_.1} parent=1 // pred_region
      %75 = dma.done [#allocation3], 28160
    $region49: #{_lambda_.1} parent=1 // pred_fallthru
      _
    // Predicated region
    $region50: #{_lambda_.1} parent=1 // pred_check
      _
    $region51: #{_lambda_.1} parent=1 // pred_check_branch
      %77 = sbr.rel (0) target = $region53
    $region52: #{_lambda_.1} parent=1 // pred_region
      %78 = dma.done [#allocation6], 4096
    $region53: #{_lambda_.1} parent=1 // pred_fallthru
      _
    // Predicated region
    $region54: #{_lambda_.1} parent=1 // pred_check
      _
    $region55: #{_lambda_.1} parent=1 // pred_check_branch
      %80 = sbr.rel (0) target = $region57
    $region56: #{_lambda_.1} parent=1 // pred_region
      %81 = dma.done [#allocation6], 28672
    $region57: #{_lambda_.1} parent=1 // pred_fallthru
      _
    %v83 = vld [vmem:[%s0] sm:$0xff]
    %v84 = vld [vmem:[%s0 + $0x8] sm:$0xff]
    %v85 = vld [vmem:[%s0 + $0x10] sm:$0xff]
    %v86 = vld [vmem:[%s0 + $0x18] sm:$0xf]
    %v87 = vld [vmem:[#allocation2] sm:$0xff]
    %v88 = vld [vmem:[#allocation2 + $0x8] sm:$0xff]
    %v89 = vld [vmem:[#allocation2 + $0x10] sm:$0xff]
    %v90 = vld [vmem:[#allocation2 + $0x18] sm:$0xff]
    %v91 = vld [vmem:[#allocation2 + $0x20] sm:$0xff]
    %v92 = vld [vmem:[#allocation2 + $0x28] sm:$0xff]
    %v93 = vld [vmem:[#allocation2 + $0x30] sm:$0xff]
    %v94 = vld [vmem:[#allocation2 + $0x38] sm:$0xff]
    %v95 = vld [vmem:[#allocation2 + $0x40] sm:$0xff]
    %v96 = vld [vmem:[#allocation2 + $0x48] sm:$0xff]
    %v97 = vld [vmem:[#allocation2 + $0x50] sm:$0xff]
    %v98 = vld [vmem:[#allocation2 + $0x58] sm:$0xff]
    %v99 = vld [vmem:[#allocation2 + $0x60] sm:$0xff]
    %v100 = vld [vmem:[#allocation2 + $0x68] sm:$0xff]
    %v101 = vld [vmem:[#allocation2 + $0x70] sm:$0xff]
    %v102 = vld [vmem:[#allocation2 + $0x78] sm:$0xff]
    %v103 = vld [vmem:[#allocation2 + $0x80] sm:$0xff]
    %v104 = vld [vmem:[#allocation2 + $0x88] sm:$0xff]
    %v105 = vld [vmem:[#allocation2 + $0x90] sm:$0xff]
    %v106 = vld [vmem:[#allocation2 + $0x98] sm:$0xff]
    %v107 = vld [vmem:[#allocation2 + $0xa0] sm:$0xff]
    %v108 = vld [vmem:[#allocation2 + $0xa8] sm:$0xff]
    %v109 = vld [vmem:[#allocation2 + $0xb0] sm:$0xff]
    %v110 = vld [vmem:[#allocation2 + $0xb8] sm:$0xff]
    %v111 = vld [vmem:[#allocation2 + $0xc0] sm:$0xff]
    %v112 = vld [vmem:[#allocation2 + $0xc8] sm:$0xff]
    %v113 = vld [vmem:[#allocation2 + $0xd0] sm:$0xff]
    %v114 = vld [vmem:[#allocation2 + $0xd8] sm:$0xff]
    %v115 = vld [vmem:[#allocation2 + $0xe0] sm:$0xff]
    %v116 = vld [vmem:[#allocation2 + $0xe8] sm:$0xff]
    %v117 = vld [vmem:[#allocation2 + $0xf0] sm:$0xff]
    %v118 = vld [vmem:[#allocation2 + $0xf8] sm:$0xff]
    %v119 = vld [vmem:[#allocation2 + $0x100] sm:$0xff]
    %v120 = vld [vmem:[#allocation2 + $0x108] sm:$0xff]
    %v121 = vld [vmem:[#allocation2 + $0x110] sm:$0xff]
    %v122 = vld [vmem:[#allocation2 + $0x118] sm:$0xff]
    %v123 = vld [vmem:[#allocation2 + $0x120] sm:$0xff]
    %v124 = vld [vmem:[#allocation2 + $0x128] sm:$0xff]
    %v125 = vld [vmem:[#allocation2 + $0x130] sm:$0xff]
    %v126 = vld [vmem:[#allocation2 + $0x138] sm:$0xff]
    %v127 = vld [vmem:[#allocation2 + $0x140] sm:$0xff]
    %v128 = vld [vmem:[#allocation2 + $0x148] sm:$0xff]
    %v129 = vld [vmem:[#allocation2 + $0x150] sm:$0xff]
    %v130 = vld [vmem:[#allocation2 + $0x158] sm:$0xff]
    %v131 = vld [vmem:[#allocation2 + $0x160] sm:$0xff]
    %v132 = vld [vmem:[#allocation2 + $0x168] sm:$0xff]
    %v133 = vld [vmem:[#allocation2 + $0x170] sm:$0xff]
    %v134 = vld [vmem:[#allocation2 + $0x178] sm:$0xff]
    %v135 = vld [vmem:[#allocation2 + $0x180] sm:$0xff]
    %v136 = vld [vmem:[#allocation2 + $0x188] sm:$0xff]
    %v137 = vld [vmem:[#allocation2 + $0x190] sm:$0xff]
    %v138 = vld [vmem:[#allocation2 + $0x198] sm:$0xff]
    %v139 = vld [vmem:[#allocation2 + $0x1a0] sm:$0xff]
    %v140 = vld [vmem:[#allocation2 + $0x1a8] sm:$0xff]
    %v141 = vld [vmem:[#allocation2 + $0x1b0] sm:$0xff]
    %v142 = vld [vmem:[#allocation2 + $0x1b8] sm:$0xff]
    %v143 = vld [vmem:[#allocation2 + $0x1c0] sm:$0xff]
    %v144 = vld [vmem:[#allocation2 + $0x1c8] sm:$0xff]
    %v145 = vld [vmem:[#allocation2 + $0x1d0] sm:$0xff]
    %v146 = vld [vmem:[#allocation2 + $0x1d8] sm:$0xff]
    %v147 = vld [vmem:[#allocation2 + $0x1e0] sm:$0xff]
    %v148 = vld [vmem:[#allocation2 + $0x1e8] sm:$0xff]
    %v149 = vld [vmem:[#allocation2 + $0x1f0] sm:$0xff]
    %v150 = vld [vmem:[#allocation2 + $0x1f8] sm:$0xff]
    %v151 = vld [vmem:[#allocation2 + $0x200] sm:$0xff]
    %v152 = vld [vmem:[#allocation2 + $0x208] sm:$0xff]
    %v153 = vld [vmem:[#allocation2 + $0x210] sm:$0xff]
    %v154 = vld [vmem:[#allocation2 + $0x218] sm:$0xff]
    %v155 = vld [vmem:[#allocation2 + $0x220] sm:$0xff]
    %v156 = vld [vmem:[#allocation2 + $0x228] sm:$0xff]
    %v157 = vld [vmem:[#allocation2 + $0x230] sm:$0xff]
    %v158 = vld [vmem:[#allocation2 + $0x238] sm:$0xff]
    %v159 = vld [vmem:[#allocation2 + $0x240] sm:$0xff]
    %v160 = vld [vmem:[#allocation2 + $0x248] sm:$0xff]
    %v161 = vld [vmem:[#allocation2 + $0x250] sm:$0xff]
    %v162 = vld [vmem:[#allocation2 + $0x258] sm:$0xff]
    %v163 = vld [vmem:[#allocation2 + $0x260] sm:$0xff]
    %v164 = vld [vmem:[#allocation2 + $0x268] sm:$0xff]
    %v165 = vld [vmem:[#allocation2 + $0x270] sm:$0xff]
    %v166 = vld [vmem:[#allocation2 + $0x278] sm:$0xff]
    %v167 = vld [vmem:[#allocation2 + $0x280] sm:$0xff]
    %v168 = vld [vmem:[#allocation2 + $0x288] sm:$0xff]
    %v169 = vld [vmem:[#allocation2 + $0x290] sm:$0xff]
    %v170 = vld [vmem:[#allocation2 + $0x298] sm:$0xff]
    %v171 = vld [vmem:[#allocation2 + $0x2a0] sm:$0xff]
    %v172 = vld [vmem:[#allocation2 + $0x2a8] sm:$0xff]
    %v173 = vld [vmem:[#allocation2 + $0x2b0] sm:$0xff]
    %v174 = vld [vmem:[#allocation2 + $0x2b8] sm:$0xff]
    %v175 = vld [vmem:[#allocation2 + $0x2c0] sm:$0xff]
    %v176 = vld [vmem:[#allocation2 + $0x2c8] sm:$0xff]
    %v177 = vld [vmem:[#allocation2 + $0x2d0] sm:$0xff]
    %v178 = vld [vmem:[#allocation2 + $0x2d8] sm:$0xff]
    %v179 = vld [vmem:[#allocation2 + $0x2e0] sm:$0xff]
    %v180 = vld [vmem:[#allocation2 + $0x2e8] sm:$0xff]
    %v181 = vld [vmem:[#allocation2 + $0x2f0] sm:$0xff]
    %v182 = vld [vmem:[#allocation2 + $0x2f8] sm:$0xff]
    %v183 = vld [vmem:[#allocation2 + $0x300] sm:$0xff]
    %v184 = vld [vmem:[#allocation2 + $0x308] sm:$0xff]
    %v185 = vld [vmem:[#allocation2 + $0x310] sm:$0xff]
    %v186 = vld [vmem:[#allocation2 + $0x318] sm:$0xff]
    %v187 = vld [vmem:[#allocation2 + $0x320] sm:$0xff]
    %v188 = vld [vmem:[#allocation2 + $0x328] sm:$0xff]
    %v189 = vld [vmem:[#allocation2 + $0x330] sm:$0xff]
    %v190 = vld [vmem:[#allocation2 + $0x338] sm:$0xff]
    %v191 = vld [vmem:[#allocation2 + $0x340] sm:$0xff]
    %v192 = vld [vmem:[#allocation2 + $0x348] sm:$0xff]
    %v193 = vld [vmem:[#allocation2 + $0x350] sm:$0xff]
    %v194 = vld [vmem:[#allocation2 + $0x358] sm:$0xff]
    %v195 = vld [vmem:[#allocation2 + $0x360] sm:$0xff]
    %v196 = vld [vmem:[#allocation2 + $0x368] sm:$0xff]
    %v197 = vld [vmem:[#allocation2 + $0x370] sm:$0xff]
    %v198 = vld [vmem:[#allocation2 + $0x378] sm:$0xff]
    %v199 = vld [vmem:[#allocation2 + $0x380] sm:$0xff]
    %v200 = vld [vmem:[#allocation2 + $0x388] sm:$0xff]
    %v201 = vld [vmem:[#allocation2 + $0x390] sm:$0xff]
    %v202 = vld [vmem:[#allocation2 + $0x398] sm:$0xff]
    %v203 = vld [vmem:[#allocation2 + $0x3a0] sm:$0xff]
    %v204 = vld [vmem:[#allocation2 + $0x3a8] sm:$0xff]
    %v205 = vld [vmem:[#allocation2 + $0x3b0] sm:$0xff]
    %v206 = vld [vmem:[#allocation2 + $0x3b8] sm:$0xff]
    %v207 = vld [vmem:[#allocation2 + $0x3c0] sm:$0xff]
    %v208 = vld [vmem:[#allocation2 + $0x3c8] sm:$0xff]
    %v209 = vld [vmem:[#allocation2 + $0x3d0] sm:$0xff]
    %v210 = vld [vmem:[#allocation2 + $0x3d8] sm:$0xff]
    %v211 = vld [vmem:[#allocation2 + $0x3e0] sm:$0xff]
    %v212 = vld [vmem:[#allocation2 + $0x3e8] sm:$0xff]
    %v213 = vld [vmem:[#allocation2 + $0x3f0] sm:$0xff]
    %v214 = vld [vmem:[#allocation2 + $0x3f8] sm:$0xff]
    %v215 = vld [vmem:[#allocation2 + $0x400] sm:$0xff]
    %v216 = vld [vmem:[#allocation2 + $0x408] sm:$0xff]
    %v217 = vld [vmem:[#allocation2 + $0x410] sm:$0xff]
    %v218 = vld [vmem:[#allocation2 + $0x418] sm:$0xff]
    %v219 = vld [vmem:[#allocation2 + $0x420] sm:$0xff]
    %v220 = vld [vmem:[#allocation2 + $0x428] sm:$0xff]
    %v221 = vld [vmem:[#allocation2 + $0x430] sm:$0xff]
    %v222 = vld [vmem:[#allocation2 + $0x438] sm:$0xff]
    %v223 = vld [vmem:[#allocation2 + $0x440] sm:$0xff]
    %v224 = vld [vmem:[#allocation2 + $0x448] sm:$0xff]
    %v225 = vld [vmem:[#allocation2 + $0x450] sm:$0xff]
    %v226 = vld [vmem:[#allocation2 + $0x458] sm:$0xff]
    %v227 = vld [vmem:[#allocation2 + $0x460] sm:$0xff]
    %v228 = vld [vmem:[#allocation2 + $0x468] sm:$0xff]
    %v229 = vld [vmem:[#allocation2 + $0x470] sm:$0xff]
    %v230 = vld [vmem:[#allocation2 + $0x478] sm:$0xff]
    %v231 = vld [vmem:[#allocation2 + $0x480] sm:$0xff]
    %v232 = vld [vmem:[#allocation2 + $0x488] sm:$0xff]
    %v233 = vld [vmem:[#allocation2 + $0x490] sm:$0xff]
    %v234 = vld [vmem:[#allocation2 + $0x498] sm:$0xff]
    %v235 = vld [vmem:[#allocation2 + $0x4a0] sm:$0xff]
    %v236 = vld [vmem:[#allocation2 + $0x4a8] sm:$0xff]
    %v237 = vld [vmem:[#allocation2 + $0x4b0] sm:$0xff]
    %v238 = vld [vmem:[#allocation2 + $0x4b8] sm:$0xff]
    %v239 = vld [vmem:[#allocation2 + $0x4c0] sm:$0xff]
    %v240 = vld [vmem:[#allocation2 + $0x4c8] sm:$0xff]
    %v241 = vld [vmem:[#allocation2 + $0x4d0] sm:$0xff]
    %v242 = vld [vmem:[#allocation2 + $0x4d8] sm:$0xff]
    %v243 = vld [vmem:[#allocation2 + $0x4e0] sm:$0xff]
    %v244 = vld [vmem:[#allocation2 + $0x4e8] sm:$0xff]
    %v245 = vld [vmem:[#allocation2 + $0x4f0] sm:$0xff]
    %v246 = vld [vmem:[#allocation2 + $0x4f8] sm:$0xff]
    %v247 = vld [vmem:[#allocation2 + $0x500] sm:$0xff]
    %v248 = vld [vmem:[#allocation2 + $0x508] sm:$0xff]
    %v249 = vld [vmem:[#allocation2 + $0x510] sm:$0xff]
    %v250 = vld [vmem:[#allocation2 + $0x518] sm:$0xff]
    %v251 = vld [vmem:[#allocation2 + $0x520] sm:$0xff]
    %v252 = vld [vmem:[#allocation2 + $0x528] sm:$0xff]
    %v253 = vld [vmem:[#allocation2 + $0x530] sm:$0xff]
    %v254 = vld [vmem:[#allocation2 + $0x538] sm:$0xff]
    %v255 = vld [vmem:[#allocation2 + $0x540] sm:$0xff]
    %v256 = vld [vmem:[#allocation2 + $0x548] sm:$0xff]
    %v257 = vld [vmem:[#allocation2 + $0x550] sm:$0xff]
    %v258 = vld [vmem:[#allocation2 + $0x558] sm:$0xff]
    %v259 = vld [vmem:[#allocation2 + $0x560] sm:$0xff]
    %v260 = vld [vmem:[#allocation2 + $0x568] sm:$0xff]
    %v261 = vld [vmem:[#allocation2 + $0x570] sm:$0xff]
    %v262 = vld [vmem:[#allocation2 + $0x578] sm:$0xff]
    %v263 = vld [vmem:[#allocation2 + $0x580] sm:$0xff]
    %v264 = vld [vmem:[#allocation2 + $0x588] sm:$0xff]
    %v265 = vld [vmem:[#allocation2 + $0x590] sm:$0xff]
    %v266 = vld [vmem:[#allocation2 + $0x598] sm:$0xff]
    %v267 = vld [vmem:[#allocation2 + $0x5a0] sm:$0xff]
    %v268 = vld [vmem:[#allocation2 + $0x5a8] sm:$0xff]
    %v269 = vld [vmem:[#allocation2 + $0x5b0] sm:$0xff]
    %v270 = vld [vmem:[#allocation2 + $0x5b8] sm:$0xff]
    %v271 = vld [vmem:[#allocation2 + $0x5c0] sm:$0xff]
    %v272 = vld [vmem:[#allocation2 + $0x5c8] sm:$0xff]
    %v273 = vld [vmem:[#allocation2 + $0x5d0] sm:$0xff]
    %v274 = vld [vmem:[#allocation2 + $0x5d8] sm:$0xff]
    %v275 = vld [vmem:[#allocation2 + $0x5e0] sm:$0xff]
    %v276 = vld [vmem:[#allocation2 + $0x5e8] sm:$0xff]
    %v277 = vld [vmem:[#allocation2 + $0x5f0] sm:$0xff]
    %v278 = vld [vmem:[#allocation2 + $0x5f8] sm:$0xff]
    %v279 = vld [vmem:[#allocation2 + $0x600] sm:$0xff]
    %v280 = vld [vmem:[#allocation2 + $0x608] sm:$0xff]
    %v281 = vld [vmem:[#allocation2 + $0x610] sm:$0xff]
    %v282 = vld [vmem:[#allocation2 + $0x618] sm:$0xff]
    %v283 = vld [vmem:[#allocation2 + $0x620] sm:$0xff]
    %v284 = vld [vmem:[#allocation2 + $0x628] sm:$0xff]
    %v285 = vld [vmem:[#allocation2 + $0x630] sm:$0xff]
    %v286 = vld [vmem:[#allocation2 + $0x638] sm:$0xff]
    %v287 = vld [vmem:[#allocation2 + $0x640] sm:$0xff]
    %v288 = vld [vmem:[#allocation2 + $0x648] sm:$0xff]
    %v289 = vld [vmem:[#allocation2 + $0x650] sm:$0xff]
    %v290 = vld [vmem:[#allocation2 + $0x658] sm:$0xff]
    %v291 = vld [vmem:[#allocation2 + $0x660] sm:$0xff]
    %v292 = vld [vmem:[#allocation2 + $0x668] sm:$0xff]
    %v293 = vld [vmem:[#allocation2 + $0x670] sm:$0xff]
    %v294 = vld [vmem:[#allocation2 + $0x678] sm:$0xff]
    %v295 = vld [vmem:[#allocation2 + $0x680] sm:$0xff]
    %v296 = vld [vmem:[#allocation2 + $0x688] sm:$0xff]
    %v297 = vld [vmem:[#allocation2 + $0x690] sm:$0xff]
    %v298 = vld [vmem:[#allocation2 + $0x698] sm:$0xff]
    %v299 = vld [vmem:[#allocation2 + $0x6a0] sm:$0xff]
    %v300 = vld [vmem:[#allocation2 + $0x6a8] sm:$0xff]
    %v301 = vld [vmem:[#allocation2 + $0x6b0] sm:$0xff]
    %v302 = vld [vmem:[#allocation2 + $0x6b8] sm:$0xff]
    %v303 = vld [vmem:[#allocation2 + $0x6c0] sm:$0xff]
    %v304 = vld [vmem:[#allocation2 + $0x6c8] sm:$0xff]
    %v305 = vld [vmem:[#allocation2 + $0x6d0] sm:$0xff]
    %v306 = vld [vmem:[#allocation2 + $0x6d8] sm:$0xff]
    %v307 = vld [vmem:[%s2] sm:$0x3]
    %v309 = vlaneseq
    %v310 = vshrl.u32 %v309, 7
    %v311 = vsub.s32 0, %v310
    %v312 = vrot.slane %v307, %v311
    %v313 = vlaneseq
    %v314 = vshrl.u32 %v313, 7
    %v315 = vsub.s32 1, %v314
    %v316 = vrot.slane %v307, %v315
    %v323 = vcombine.high %v83, %v83
    %v325 = vunpack.c.l.s4 1983009808
    %v326 = vunpack.c.0.s8 %v325
    %v327 = vlaneseq
    %v328 = vshrl.u32 %v327, 7
    %v329 = vsub.s32 %v326, %v328
    %v330 = vrot.slane %v83, %v329
    %v332 = vunpack.c.l.s4 1983009808
    %v333 = vunpack.c.0.s8 %v332
    %v334 = vlaneseq
    %v335 = vshrl.u32 %v334, 7
    %v336 = vsub.s32 %v333, %v335
    %v337 = vrot.slane %v323, %v336
    %v338 = vcombine.high %v330, %v330
    %v339 = vcombine.high %v337, %v337
    %v340 = vcombine.high %v84, %v84
    %v342 = vunpack.c.l.s4 1983009808
    %v343 = vunpack.c.0.s8 %v342
    %v344 = vlaneseq
    %v345 = vshrl.u32 %v344, 7
    %v346 = vsub.s32 %v343, %v345
    %v347 = vrot.slane %v84, %v346
    %v349 = vunpack.c.l.s4 1983009808
    %v350 = vunpack.c.0.s8 %v349
    %v351 = vlaneseq
    %v352 = vshrl.u32 %v351, 7
    %v353 = vsub.s32 %v350, %v352
    %v354 = vrot.slane %v340, %v353
    %v355 = vcombine.high %v347, %v347
    %v356 = vcombine.high %v354, %v354
    %v357 = vcombine.high %v85, %v85
    %v359 = vunpack.c.l.s4 1983009808
    %v360 = vunpack.c.0.s8 %v359
    %v361 = vlaneseq
    %v362 = vshrl.u32 %v361, 7
    %v363 = vsub.s32 %v360, %v362
    %v364 = vrot.slane %v85, %v363
    %v366 = vunpack.c.l.s4 1983009808
    %v367 = vunpack.c.0.s8 %v366
    %v368 = vlaneseq
    %v369 = vshrl.u32 %v368, 7
    %v370 = vsub.s32 %v367, %v369
    %v371 = vrot.slane %v357, %v370
    %v372 = vcombine.high %v364, %v364
    %v373 = vcombine.high %v371, %v371
    %v375 = vunpack.c.l.s4 1983009808
    %v376 = vunpack.c.0.s8 %v375
    %v377 = vlaneseq
    %v378 = vshrl.u32 %v377, 7
    %v379 = vsub.s32 %v376, %v378
    %v380 = vrot.slane %v86, %v379
    %v381 = vcombine.high %v380, %v380
    %v615 = vunpack.c.l.b16 %v87
    %v616 = vunpack.c.h.b16 %v87
    %v617 = vunpack.c.l.b16 %v88
    %v618 = vunpack.c.h.b16 %v88
    %v619 = vunpack.c.l.b16 %v89
    %v620 = vunpack.c.h.b16 %v89
    %v621 = vunpack.c.l.b16 %v90
    %v622 = vunpack.c.h.b16 %v90
    %v623 = vunpack.c.l.b16 %v91
    %v624 = vunpack.c.h.b16 %v91
    %v625 = vunpack.c.l.b16 %v92
    %v626 = vunpack.c.h.b16 %v92
    %v627 = vunpack.c.l.b16 %v93
    %v628 = vunpack.c.h.b16 %v93
    %v629 = vunpack.c.l.b16 %v94
    %v630 = vunpack.c.h.b16 %v94
    %v631 = vunpack.c.l.b16 %v95
    %v632 = vunpack.c.h.b16 %v95
    %v633 = vunpack.c.l.b16 %v96
    %v634 = vunpack.c.h.b16 %v96
    %v635 = vunpack.c.l.b16 %v97
    %v636 = vunpack.c.h.b16 %v97
    %v637 = vunpack.c.l.b16 %v98
    %v638 = vunpack.c.h.b16 %v98
    %v639 = vunpack.c.l.b16 %v99
    %v640 = vunpack.c.h.b16 %v99
    %v641 = vunpack.c.l.b16 %v100
    %v642 = vunpack.c.h.b16 %v100
    %v643 = vunpack.c.l.b16 %v101
    %v644 = vunpack.c.h.b16 %v101
    %v645 = vunpack.c.l.b16 %v102
    %v646 = vunpack.c.h.b16 %v102
    %v647 = vunpack.c.l.b16 %v103
    %v648 = vunpack.c.h.b16 %v103
    %v649 = vunpack.c.l.b16 %v104
    %v650 = vunpack.c.h.b16 %v104
    %v651 = vunpack.c.l.b16 %v105
    %v652 = vunpack.c.h.b16 %v105
    %v653 = vunpack.c.l.b16 %v106
    %v654 = vunpack.c.h.b16 %v106
    %v655 = vunpack.c.l.b16 %v107
    %v656 = vunpack.c.h.b16 %v107
    %v657 = vunpack.c.l.b16 %v108
    %v658 = vunpack.c.h.b16 %v108
    %v659 = vunpack.c.l.b16 %v109
    %v660 = vunpack.c.h.b16 %v109
    %v661 = vunpack.c.l.b16 %v110
    %v662 = vunpack.c.h.b16 %v110
    %v663 = vunpack.c.l.b16 %v111
    %v664 = vunpack.c.h.b16 %v111
    %v665 = vunpack.c.l.b16 %v112
    %v666 = vunpack.c.h.b16 %v112
    %v667 = vunpack.c.l.b16 %v113
    %v668 = vunpack.c.h.b16 %v113
    %v669 = vunpack.c.l.b16 %v114
    %v670 = vunpack.c.h.b16 %v114
    %v671 = vunpack.c.l.b16 %v115
    %v672 = vunpack.c.h.b16 %v115
    %v673 = vunpack.c.l.b16 %v116
    %v674 = vunpack.c.h.b16 %v116
    %v675 = vunpack.c.l.b16 %v117
    %v676 = vunpack.c.h.b16 %v117
    %v677 = vunpack.c.l.b16 %v118
    %v678 = vunpack.c.h.b16 %v118
    %v679 = vunpack.c.l.b16 %v119
    %v680 = vunpack.c.h.b16 %v119
    %v681 = vunpack.c.l.b16 %v120
    %v682 = vunpack.c.h.b16 %v120
    %v683 = vunpack.c.l.b16 %v121
    %v684 = vunpack.c.h.b16 %v121
    %v685 = vunpack.c.l.b16 %v122
    %v686 = vunpack.c.h.b16 %v122
    %v687 = vunpack.c.l.b16 %v123
    %v688 = vunpack.c.h.b16 %v123
    %v689 = vunpack.c.l.b16 %v124
    %v690 = vunpack.c.h.b16 %v124
    %v691 = vunpack.c.l.b16 %v125
    %v692 = vunpack.c.h.b16 %v125
    %v693 = vunpack.c.l.b16 %v126
    %v694 = vunpack.c.h.b16 %v126
    %v695 = vunpack.c.l.b16 %v127
    %v696 = vunpack.c.h.b16 %v127
    %v697 = vunpack.c.l.b16 %v128
    %v698 = vunpack.c.h.b16 %v128
    %v699 = vunpack.c.l.b16 %v129
    %v700 = vunpack.c.h.b16 %v129
    %v701 = vunpack.c.l.b16 %v130
    %v702 = vunpack.c.h.b16 %v130
    %v703 = vunpack.c.l.b16 %v131
    %v704 = vunpack.c.h.b16 %v131
    %v705 = vunpack.c.l.b16 %v132
    %v706 = vunpack.c.h.b16 %v132
    %v707 = vunpack.c.l.b16 %v133
    %v708 = vunpack.c.h.b16 %v133
    %v709 = vunpack.c.l.b16 %v134
    %v710 = vunpack.c.h.b16 %v134
    %v711 = vunpack.c.l.b16 %v135
    %v712 = vunpack.c.h.b16 %v135
    %v713 = vunpack.c.l.b16 %v136
    %v714 = vunpack.c.h.b16 %v136
    %v715 = vunpack.c.l.b16 %v137
    %v716 = vunpack.c.h.b16 %v137
    %v717 = vunpack.c.l.b16 %v138
    %v718 = vunpack.c.h.b16 %v138
    %v719 = vunpack.c.l.b16 %v139
    %v720 = vunpack.c.h.b16 %v139
    %v721 = vunpack.c.l.b16 %v140
    %v722 = vunpack.c.h.b16 %v140
    %v723 = vunpack.c.l.b16 %v141
    %v724 = vunpack.c.h.b16 %v141
    %v725 = vunpack.c.l.b16 %v142
    %v726 = vunpack.c.h.b16 %v142
    %v727 = vunpack.c.l.b16 %v143
    %v728 = vunpack.c.h.b16 %v143
    %v729 = vunpack.c.l.b16 %v144
    %v730 = vunpack.c.h.b16 %v144
    %v731 = vunpack.c.l.b16 %v145
    %v732 = vunpack.c.h.b16 %v145
    %v733 = vunpack.c.l.b16 %v146
    %v734 = vunpack.c.h.b16 %v146
    %v735 = vunpack.c.l.b16 %v147
    %v736 = vunpack.c.h.b16 %v147
    %v737 = vunpack.c.l.b16 %v148
    %v738 = vunpack.c.h.b16 %v148
    %v739 = vunpack.c.l.b16 %v149
    %v740 = vunpack.c.h.b16 %v149
    %v741 = vunpack.c.l.b16 %v150
    %v742 = vunpack.c.h.b16 %v150
    %v743 = vunpack.c.l.b16 %v151
    %v744 = vunpack.c.h.b16 %v151
    %v745 = vunpack.c.l.b16 %v152
    %v746 = vunpack.c.h.b16 %v152
    %v747 = vunpack.c.l.b16 %v153
    %v748 = vunpack.c.h.b16 %v153
    %v749 = vunpack.c.l.b16 %v154
    %v750 = vunpack.c.h.b16 %v154
    %v751 = vunpack.c.l.b16 %v155
    %v752 = vunpack.c.h.b16 %v155
    %v753 = vunpack.c.l.b16 %v156
    %v754 = vunpack.c.h.b16 %v156
    %v755 = vunpack.c.l.b16 %v157
    %v756 = vunpack.c.h.b16 %v157
    %v757 = vunpack.c.l.b16 %v158
    %v758 = vunpack.c.h.b16 %v158
    %v759 = vunpack.c.l.b16 %v159
    %v760 = vunpack.c.h.b16 %v159
    %v761 = vunpack.c.l.b16 %v160
    %v762 = vunpack.c.h.b16 %v160
    %v763 = vunpack.c.l.b16 %v161
    %v764 = vunpack.c.h.b16 %v161
    %v765 = vunpack.c.l.b16 %v162
    %v766 = vunpack.c.h.b16 %v162
    %v767 = vunpack.c.l.b16 %v163
    %v768 = vunpack.c.h.b16 %v163
    %v769 = vunpack.c.l.b16 %v164
    %v770 = vunpack.c.h.b16 %v164
    %v771 = vunpack.c.l.b16 %v165
    %v772 = vunpack.c.h.b16 %v165
    %v773 = vunpack.c.l.b16 %v166
    %v774 = vunpack.c.h.b16 %v166
    %v775 = vunpack.c.l.b16 %v167
    %v776 = vunpack.c.h.b16 %v167
    %v777 = vunpack.c.l.b16 %v168
    %v778 = vunpack.c.h.b16 %v168
    %v779 = vunpack.c.l.b16 %v169
    %v780 = vunpack.c.h.b16 %v169
    %v781 = vunpack.c.l.b16 %v170
    %v782 = vunpack.c.h.b16 %v170
    %v783 = vunpack.c.l.b16 %v171
    %v784 = vunpack.c.h.b16 %v171
    %v785 = vunpack.c.l.b16 %v172
    %v786 = vunpack.c.h.b16 %v172
    %v787 = vunpack.c.l.b16 %v173
    %v788 = vunpack.c.h.b16 %v173
    %v789 = vunpack.c.l.b16 %v174
    %v790 = vunpack.c.h.b16 %v174
    %v791 = vunpack.c.l.b16 %v175
    %v792 = vunpack.c.h.b16 %v175
    %v793 = vunpack.c.l.b16 %v176
    %v794 = vunpack.c.h.b16 %v176
    %v795 = vunpack.c.l.b16 %v177
    %v796 = vunpack.c.h.b16 %v177
    %v797 = vunpack.c.l.b16 %v178
    %v798 = vunpack.c.h.b16 %v178
    %v799 = vunpack.c.l.b16 %v179
    %v800 = vunpack.c.h.b16 %v179
    %v801 = vunpack.c.l.b16 %v180
    %v802 = vunpack.c.h.b16 %v180
    %v803 = vunpack.c.l.b16 %v181
    %v804 = vunpack.c.h.b16 %v181
    %v805 = vunpack.c.l.b16 %v182
    %v806 = vunpack.c.h.b16 %v182
    %v807 = vunpack.c.l.b16 %v183
    %v808 = vunpack.c.h.b16 %v183
    %v809 = vunpack.c.l.b16 %v184
    %v810 = vunpack.c.h.b16 %v184
    %v811 = vunpack.c.l.b16 %v185
    %v812 = vunpack.c.h.b16 %v185
    %v813 = vunpack.c.l.b16 %v186
    %v814 = vunpack.c.h.b16 %v186
    %v815 = vunpack.c.l.b16 %v187
    %v816 = vunpack.c.h.b16 %v187
    %v817 = vunpack.c.l.b16 %v188
    %v818 = vunpack.c.h.b16 %v188
    %v819 = vunpack.c.l.b16 %v189
    %v820 = vunpack.c.h.b16 %v189
    %v821 = vunpack.c.l.b16 %v190
    %v822 = vunpack.c.h.b16 %v190
    %v823 = vunpack.c.l.b16 %v191
    %v824 = vunpack.c.h.b16 %v191
    %v825 = vunpack.c.l.b16 %v192
    %v826 = vunpack.c.h.b16 %v192
    %v827 = vunpack.c.l.b16 %v193
    %v828 = vunpack.c.h.b16 %v193
    %v829 = vunpack.c.l.b16 %v194
    %v830 = vunpack.c.h.b16 %v194
    %v831 = vunpack.c.l.b16 %v195
    %v832 = vunpack.c.h.b16 %v195
    %v833 = vunpack.c.l.b16 %v196
    %v834 = vunpack.c.h.b16 %v196
    %v835 = vunpack.c.l.b16 %v197
    %v836 = vunpack.c.h.b16 %v197
    %v837 = vunpack.c.l.b16 %v198
    %v838 = vunpack.c.h.b16 %v198
    %v839 = vunpack.c.l.b16 %v199
    %v840 = vunpack.c.h.b16 %v199
    %v841 = vunpack.c.l.b16 %v200
    %v842 = vunpack.c.h.b16 %v200
    %v843 = vunpack.c.l.b16 %v201
    %v844 = vunpack.c.h.b16 %v201
    %v845 = vunpack.c.l.b16 %v202
    %v846 = vunpack.c.h.b16 %v202
    %v847 = vunpack.c.l.b16 %v203
    %v848 = vunpack.c.h.b16 %v203
    %v849 = vunpack.c.l.b16 %v204
    %v850 = vunpack.c.h.b16 %v204
    %v851 = vunpack.c.l.b16 %v205
    %v852 = vunpack.c.h.b16 %v205
    %v853 = vunpack.c.l.b16 %v206
    %v854 = vunpack.c.h.b16 %v206
    %v855 = vunpack.c.l.b16 %v207
    %v856 = vunpack.c.h.b16 %v207
    %v857 = vunpack.c.l.b16 %v208
    %v858 = vunpack.c.h.b16 %v208
    %v859 = vunpack.c.l.b16 %v209
    %v860 = vunpack.c.h.b16 %v209
    %v861 = vunpack.c.l.b16 %v210
    %v862 = vunpack.c.h.b16 %v210
    %v863 = vunpack.c.l.b16 %v211
    %v864 = vunpack.c.h.b16 %v211
    %v865 = vunpack.c.l.b16 %v212
    %v866 = vunpack.c.h.b16 %v212
    %v867 = vunpack.c.l.b16 %v213
    %v868 = vunpack.c.h.b16 %v213
    %v869 = vunpack.c.l.b16 %v214
    %v870 = vunpack.c.h.b16 %v214
    %v871 = vunpack.c.l.b16 %v215
    %v872 = vunpack.c.h.b16 %v215
    %v873 = vunpack.c.l.b16 %v216
    %v874 = vunpack.c.h.b16 %v216
    %v875 = vunpack.c.l.b16 %v217
    %v876 = vunpack.c.h.b16 %v217
    %v877 = vunpack.c.l.b16 %v218
    %v878 = vunpack.c.h.b16 %v218
    %v879 = vunpack.c.l.b16 %v219
    %v880 = vunpack.c.h.b16 %v219
    %v881 = vunpack.c.l.b16 %v220
    %v882 = vunpack.c.h.b16 %v220
    %v883 = vunpack.c.l.b16 %v221
    %v884 = vunpack.c.h.b16 %v221
    %v885 = vunpack.c.l.b16 %v222
    %v886 = vunpack.c.h.b16 %v222
    %v887 = vunpack.c.l.b16 %v223
    %v888 = vunpack.c.h.b16 %v223
    %v889 = vunpack.c.l.b16 %v224
    %v890 = vunpack.c.h.b16 %v224
    %v891 = vunpack.c.l.b16 %v225
    %v892 = vunpack.c.h.b16 %v225
    %v893 = vunpack.c.l.b16 %v226
    %v894 = vunpack.c.h.b16 %v226
    %v895 = vunpack.c.l.b16 %v227
    %v896 = vunpack.c.h.b16 %v227
    %v897 = vunpack.c.l.b16 %v228
    %v898 = vunpack.c.h.b16 %v228
    %v899 = vunpack.c.l.b16 %v229
    %v900 = vunpack.c.h.b16 %v229
    %v901 = vunpack.c.l.b16 %v230
    %v902 = vunpack.c.h.b16 %v230
    %v903 = vunpack.c.l.b16 %v231
    %v904 = vunpack.c.h.b16 %v231
    %v905 = vunpack.c.l.b16 %v232
    %v906 = vunpack.c.h.b16 %v232
    %v907 = vunpack.c.l.b16 %v233
    %v908 = vunpack.c.h.b16 %v233
    %v909 = vunpack.c.l.b16 %v234
    %v910 = vunpack.c.h.b16 %v234
    %v911 = vunpack.c.l.b16 %v235
    %v912 = vunpack.c.h.b16 %v235
    %v913 = vunpack.c.l.b16 %v236
    %v914 = vunpack.c.h.b16 %v236
    %v915 = vunpack.c.l.b16 %v237
    %v916 = vunpack.c.h.b16 %v237
    %v917 = vunpack.c.l.b16 %v238
    %v918 = vunpack.c.h.b16 %v238
    %v919 = vunpack.c.l.b16 %v239
    %v920 = vunpack.c.h.b16 %v239
    %v921 = vunpack.c.l.b16 %v240
    %v922 = vunpack.c.h.b16 %v240
    %v923 = vunpack.c.l.b16 %v241
    %v924 = vunpack.c.h.b16 %v241
    %v925 = vunpack.c.l.b16 %v242
    %v926 = vunpack.c.h.b16 %v242
    %v927 = vunpack.c.l.b16 %v243
    %v928 = vunpack.c.h.b16 %v243
    %v929 = vunpack.c.l.b16 %v244
    %v930 = vunpack.c.h.b16 %v244
    %v931 = vunpack.c.l.b16 %v245
    %v932 = vunpack.c.h.b16 %v245
    %v933 = vunpack.c.l.b16 %v246
    %v934 = vunpack.c.h.b16 %v246
    %v935 = vunpack.c.l.b16 %v247
    %v936 = vunpack.c.h.b16 %v247
    %v937 = vunpack.c.l.b16 %v248
    %v938 = vunpack.c.h.b16 %v248
    %v939 = vunpack.c.l.b16 %v249
    %v940 = vunpack.c.h.b16 %v249
    %v941 = vunpack.c.l.b16 %v250
    %v942 = vunpack.c.h.b16 %v250
    %v943 = vunpack.c.l.b16 %v251
    %v944 = vunpack.c.h.b16 %v251
    %v945 = vunpack.c.l.b16 %v252
    %v946 = vunpack.c.h.b16 %v252
    %v947 = vunpack.c.l.b16 %v253
    %v948 = vunpack.c.h.b16 %v253
    %v949 = vunpack.c.l.b16 %v254
    %v950 = vunpack.c.h.b16 %v254
    %v951 = vunpack.c.l.b16 %v255
    %v952 = vunpack.c.h.b16 %v255
    %v953 = vunpack.c.l.b16 %v256
    %v954 = vunpack.c.h.b16 %v256
    %v955 = vunpack.c.l.b16 %v257
    %v956 = vunpack.c.h.b16 %v257
    %v957 = vunpack.c.l.b16 %v258
    %v958 = vunpack.c.h.b16 %v258
    %v959 = vunpack.c.l.b16 %v259
    %v960 = vunpack.c.h.b16 %v259
    %v961 = vunpack.c.l.b16 %v260
    %v962 = vunpack.c.h.b16 %v260
    %v963 = vunpack.c.l.b16 %v261
    %v964 = vunpack.c.h.b16 %v261
    %v965 = vunpack.c.l.b16 %v262
    %v966 = vunpack.c.h.b16 %v262
    %v967 = vunpack.c.l.b16 %v263
    %v968 = vunpack.c.h.b16 %v263
    %v969 = vunpack.c.l.b16 %v264
    %v970 = vunpack.c.h.b16 %v264
    %v971 = vunpack.c.l.b16 %v265
    %v972 = vunpack.c.h.b16 %v265
    %v973 = vunpack.c.l.b16 %v266
    %v974 = vunpack.c.h.b16 %v266
    %v975 = vunpack.c.l.b16 %v267
    %v976 = vunpack.c.h.b16 %v267
    %v977 = vunpack.c.l.b16 %v268
    %v978 = vunpack.c.h.b16 %v268
    %v979 = vunpack.c.l.b16 %v269
    %v980 = vunpack.c.h.b16 %v269
    %v981 = vunpack.c.l.b16 %v270
    %v982 = vunpack.c.h.b16 %v270
    %v983 = vunpack.c.l.b16 %v271
    %v984 = vunpack.c.h.b16 %v271
    %v985 = vunpack.c.l.b16 %v272
    %v986 = vunpack.c.h.b16 %v272
    %v987 = vunpack.c.l.b16 %v273
    %v988 = vunpack.c.h.b16 %v273
    %v989 = vunpack.c.l.b16 %v274
    %v990 = vunpack.c.h.b16 %v274
    %v991 = vunpack.c.l.b16 %v275
    %v992 = vunpack.c.h.b16 %v275
    %v993 = vunpack.c.l.b16 %v276
    %v994 = vunpack.c.h.b16 %v276
    %v995 = vunpack.c.l.b16 %v277
    %v996 = vunpack.c.h.b16 %v277
    %v997 = vunpack.c.l.b16 %v278
    %v998 = vunpack.c.h.b16 %v278
    %v999 = vunpack.c.l.b16 %v279
    %v1000 = vunpack.c.h.b16 %v279
    %v1001 = vunpack.c.l.b16 %v280
    %v1002 = vunpack.c.h.b16 %v280
    %v1003 = vunpack.c.l.b16 %v281
    %v1004 = vunpack.c.h.b16 %v281
    %v1005 = vunpack.c.l.b16 %v282
    %v1006 = vunpack.c.h.b16 %v282
    %v1007 = vunpack.c.l.b16 %v283
    %v1008 = vunpack.c.h.b16 %v283
    %v1009 = vunpack.c.l.b16 %v284
    %v1010 = vunpack.c.h.b16 %v284
    %v1011 = vunpack.c.l.b16 %v285
    %v1012 = vunpack.c.h.b16 %v285
    %v1013 = vunpack.c.l.b16 %v286
    %v1014 = vunpack.c.h.b16 %v286
    %v1015 = vunpack.c.l.b16 %v287
    %v1016 = vunpack.c.h.b16 %v287
    %v1017 = vunpack.c.l.b16 %v288
    %v1018 = vunpack.c.h.b16 %v288
    %v1019 = vunpack.c.l.b16 %v289
    %v1020 = vunpack.c.h.b16 %v289
    %v1021 = vunpack.c.l.b16 %v290
    %v1022 = vunpack.c.h.b16 %v290
    %v1023 = vunpack.c.l.b16 %v291
    %v1024 = vunpack.c.h.b16 %v291
    %v1025 = vunpack.c.l.b16 %v292
    %v1026 = vunpack.c.h.b16 %v292
    %v1027 = vunpack.c.l.b16 %v293
    %v1028 = vunpack.c.h.b16 %v293
    %v1029 = vunpack.c.l.b16 %v294
    %v1030 = vunpack.c.h.b16 %v294
    %v1031 = vunpack.c.l.b16 %v295
    %v1032 = vunpack.c.h.b16 %v295
    %v1033 = vunpack.c.l.b16 %v296
    %v1034 = vunpack.c.h.b16 %v296
    %v1035 = vunpack.c.l.b16 %v297
    %v1036 = vunpack.c.h.b16 %v297
    %v1037 = vunpack.c.l.b16 %v298
    %v1038 = vunpack.c.h.b16 %v298
    %v1039 = vunpack.c.l.b16 %v299
    %v1040 = vunpack.c.h.b16 %v299
    %v1041 = vunpack.c.l.b16 %v300
    %v1042 = vunpack.c.h.b16 %v300
    %v1043 = vunpack.c.l.b16 %v301
    %v1044 = vunpack.c.h.b16 %v301
    %v1045 = vunpack.c.l.b16 %v302
    %v1046 = vunpack.c.h.b16 %v302
    %v1047 = vunpack.c.l.b16 %v303
    %v1048 = vunpack.c.h.b16 %v303
    %v1049 = vunpack.c.l.b16 %v304
    %v1050 = vunpack.c.h.b16 %v304
    %v1051 = vunpack.c.l.b16 %v305
    %v1052 = vunpack.c.h.b16 %v305
    %v1053 = vunpack.c.l.b16 %v306
    %v1054 = vunpack.c.h.b16 %v306
    %v1055 = vpack.c.b16 %v617, %v615
    %v1056 = vpack.c.b16 %v618, %v616
    %v1057 = vpack.c.b16 %v621, %v619
    %v1058 = vpack.c.b16 %v622, %v620
    %v1059 = vpack.c.b16 %v625, %v623
    %v1060 = vpack.c.b16 %v626, %v624
    %v1061 = vpack.c.b16 %v629, %v627
    %v1062 = vpack.c.b16 %v630, %v628
    %v1063 = vpack.c.b16 %v633, %v631
    %v1064 = vpack.c.b16 %v634, %v632
    %v1065 = vpack.c.b16 %v637, %v635
    %v1066 = vpack.c.b16 %v638, %v636
    %v1067 = vpack.c.b16 %v641, %v639
    %v1068 = vpack.c.b16 %v642, %v640
    %v1069 = vpack.c.b16 %v645, %v643
    %v1070 = vpack.c.b16 %v646, %v644
    %v1071 = vpack.c.b16 %v649, %v647
    %v1072 = vpack.c.b16 %v650, %v648
    %v1073 = vpack.c.b16 %v653, %v651
    %v1074 = vpack.c.b16 %v654, %v652
    %v1075 = vpack.c.b16 %v657, %v655
    %v1076 = vpack.c.b16 %v658, %v656
    %v1077 = vpack.c.b16 %v661, %v659
    %v1078 = vpack.c.b16 %v662, %v660
    %v1079 = vpack.c.b16 %v665, %v663
    %v1080 = vpack.c.b16 %v666, %v664
    %v1081 = vpack.c.b16 %v669, %v667
    %v1082 = vpack.c.b16 %v670, %v668
    %v1083 = vpack.c.b16 %v673, %v671
    %v1084 = vpack.c.b16 %v674, %v672
    %v1085 = vpack.c.b16 %v677, %v675
    %v1086 = vpack.c.b16 %v678, %v676
    %v1087 = vpack.c.b16 %v681, %v679
    %v1088 = vpack.c.b16 %v682, %v680
    %v1089 = vpack.c.b16 %v685, %v683
    %v1090 = vpack.c.b16 %v686, %v684
    %v1091 = vpack.c.b16 %v689, %v687
    %v1092 = vpack.c.b16 %v690, %v688
    %v1093 = vpack.c.b16 %v693, %v691
    %v1094 = vpack.c.b16 %v694, %v692
    %v1095 = vpack.c.b16 %v697, %v695
    %v1096 = vpack.c.b16 %v698, %v696
    %v1097 = vpack.c.b16 %v701, %v699
    %v1098 = vpack.c.b16 %v702, %v700
    %v1099 = vpack.c.b16 %v705, %v703
    %v1100 = vpack.c.b16 %v706, %v704
    %v1101 = vpack.c.b16 %v709, %v707
    %v1102 = vpack.c.b16 %v710, %v708
    %v1103 = vpack.c.b16 %v713, %v711
    %v1104 = vpack.c.b16 %v714, %v712
    %v1105 = vpack.c.b16 %v717, %v715
    %v1106 = vpack.c.b16 %v718, %v716
    %v1107 = vpack.c.b16 %v721, %v719
    %v1108 = vpack.c.b16 %v722, %v720
    %v1109 = vpack.c.b16 %v725, %v723
    %v1110 = vpack.c.b16 %v726, %v724
    %v1111 = vpack.c.b16 %v729, %v727
    %v1112 = vpack.c.b16 %v730, %v728
    %v1113 = vpack.c.b16 %v733, %v731
    %v1114 = vpack.c.b16 %v734, %v732
    %v1115 = vpack.c.b16 %v737, %v735
    %v1116 = vpack.c.b16 %v738, %v736
    %v1117 = vpack.c.b16 %v741, %v739
    %v1118 = vpack.c.b16 %v742, %v740
    %v1119 = vpack.c.b16 %v745, %v743
    %v1120 = vpack.c.b16 %v746, %v744
    %v1121 = vpack.c.b16 %v749, %v747
    %v1122 = vpack.c.b16 %v750, %v748
    %v1123 = vpack.c.b16 %v753, %v751
    %v1124 = vpack.c.b16 %v754, %v752
    %v1125 = vpack.c.b16 %v757, %v755
    %v1126 = vpack.c.b16 %v758, %v756
    %v1127 = vpack.c.b16 %v761, %v759
    %v1128 = vpack.c.b16 %v762, %v760
    %v1129 = vpack.c.b16 %v765, %v763
    %v1130 = vpack.c.b16 %v766, %v764
    %v1131 = vpack.c.b16 %v769, %v767
    %v1132 = vpack.c.b16 %v770, %v768
    %v1133 = vpack.c.b16 %v773, %v771
    %v1134 = vpack.c.b16 %v774, %v772
    %v1135 = vpack.c.b16 %v777, %v775
    %v1136 = vpack.c.b16 %v778, %v776
    %v1137 = vpack.c.b16 %v781, %v779
    %v1138 = vpack.c.b16 %v782, %v780
    %v1139 = vpack.c.b16 %v785, %v783
    %v1140 = vpack.c.b16 %v786, %v784
    %v1141 = vpack.c.b16 %v789, %v787
    %v1142 = vpack.c.b16 %v790, %v788
    %v1143 = vpack.c.b16 %v793, %v791
    %v1144 = vpack.c.b16 %v794, %v792
    %v1145 = vpack.c.b16 %v797, %v795
    %v1146 = vpack.c.b16 %v798, %v796
    %v1147 = vpack.c.b16 %v801, %v799
    %v1148 = vpack.c.b16 %v802, %v800
    %v1149 = vpack.c.b16 %v805, %v803
    %v1150 = vpack.c.b16 %v806, %v804
    %v1151 = vpack.c.b16 %v809, %v807
    %v1152 = vpack.c.b16 %v810, %v808
    %v1153 = vpack.c.b16 %v813, %v811
    %v1154 = vpack.c.b16 %v814, %v812
    %v1155 = vpack.c.b16 %v817, %v815
    %v1156 = vpack.c.b16 %v818, %v816
    %v1157 = vpack.c.b16 %v821, %v819
    %v1158 = vpack.c.b16 %v822, %v820
    %v1159 = vpack.c.b16 %v825, %v823
    %v1160 = vpack.c.b16 %v826, %v824
    %v1161 = vpack.c.b16 %v829, %v827
    %v1162 = vpack.c.b16 %v830, %v828
    %v1163 = vpack.c.b16 %v833, %v831
    %v1164 = vpack.c.b16 %v834, %v832
    %v1165 = vpack.c.b16 %v837, %v835
    %v1166 = vpack.c.b16 %v838, %v836
    %v1167 = vpack.c.b16 %v841, %v839
    %v1168 = vpack.c.b16 %v842, %v840
    %v1169 = vpack.c.b16 %v845, %v843
    %v1170 = vpack.c.b16 %v846, %v844
    %v1171 = vpack.c.b16 %v849, %v847
    %v1172 = vpack.c.b16 %v850, %v848
    %v1173 = vpack.c.b16 %v853, %v851
    %v1174 = vpack.c.b16 %v854, %v852
    %v1175 = vpack.c.b16 %v857, %v855
    %v1176 = vpack.c.b16 %v858, %v856
    %v1177 = vpack.c.b16 %v861, %v859
    %v1178 = vpack.c.b16 %v862, %v860
    %v1179 = vpack.c.b16 %v865, %v863
    %v1180 = vpack.c.b16 %v866, %v864
    %v1181 = vpack.c.b16 %v869, %v867
    %v1182 = vpack.c.b16 %v870, %v868
    %v1183 = vpack.c.b16 %v873, %v871
    %v1184 = vpack.c.b16 %v874, %v872
    %v1185 = vpack.c.b16 %v877, %v875
    %v1186 = vpack.c.b16 %v878, %v876
    %v1187 = vpack.c.b16 %v881, %v879
    %v1188 = vpack.c.b16 %v882, %v880
    %v1189 = vpack.c.b16 %v885, %v883
    %v1190 = vpack.c.b16 %v886, %v884
    %v1191 = vpack.c.b16 %v889, %v887
    %v1192 = vpack.c.b16 %v890, %v888
    %v1193 = vpack.c.b16 %v893, %v891
    %v1194 = vpack.c.b16 %v894, %v892
    %v1195 = vpack.c.b16 %v897, %v895
    %v1196 = vpack.c.b16 %v898, %v896
    %v1197 = vpack.c.b16 %v901, %v899
    %v1198 = vpack.c.b16 %v902, %v900
    %v1199 = vpack.c.b16 %v905, %v903
    %v1200 = vpack.c.b16 %v906, %v904
    %v1201 = vpack.c.b16 %v909, %v907
    %v1202 = vpack.c.b16 %v910, %v908
    %v1203 = vpack.c.b16 %v913, %v911
    %v1204 = vpack.c.b16 %v914, %v912
    %v1205 = vpack.c.b16 %v917, %v915
    %v1206 = vpack.c.b16 %v918, %v916
    %v1207 = vpack.c.b16 %v921, %v919
    %v1208 = vpack.c.b16 %v922, %v920
    %v1209 = vpack.c.b16 %v925, %v923
    %v1210 = vpack.c.b16 %v926, %v924
    %v1211 = vpack.c.b16 %v929, %v927
    %v1212 = vpack.c.b16 %v930, %v928
    %v1213 = vpack.c.b16 %v933, %v931
    %v1214 = vpack.c.b16 %v934, %v932
    %v1215 = vpack.c.b16 %v937, %v935
    %v1216 = vpack.c.b16 %v938, %v936
    %v1217 = vpack.c.b16 %v941, %v939
    %v1218 = vpack.c.b16 %v942, %v940
    %v1219 = vpack.c.b16 %v945, %v943
    %v1220 = vpack.c.b16 %v946, %v944
    %v1221 = vpack.c.b16 %v949, %v947
    %v1222 = vpack.c.b16 %v950, %v948
    %v1223 = vpack.c.b16 %v953, %v951
    %v1224 = vpack.c.b16 %v954, %v952
    %v1225 = vpack.c.b16 %v957, %v955
    %v1226 = vpack.c.b16 %v958, %v956
    %v1227 = vpack.c.b16 %v961, %v959
    %v1228 = vpack.c.b16 %v962, %v960
    %v1229 = vpack.c.b16 %v965, %v963
    %v1230 = vpack.c.b16 %v966, %v964
    %v1231 = vpack.c.b16 %v969, %v967
    %v1232 = vpack.c.b16 %v970, %v968
    %v1233 = vpack.c.b16 %v973, %v971
    %v1234 = vpack.c.b16 %v974, %v972
    %v1235 = vpack.c.b16 %v977, %v975
    %v1236 = vpack.c.b16 %v978, %v976
    %v1237 = vpack.c.b16 %v981, %v979
    %v1238 = vpack.c.b16 %v982, %v980
    %v1239 = vpack.c.b16 %v985, %v983
    %v1240 = vpack.c.b16 %v986, %v984
    %v1241 = vpack.c.b16 %v989, %v987
    %v1242 = vpack.c.b16 %v990, %v988
    %v1243 = vpack.c.b16 %v993, %v991
    %v1244 = vpack.c.b16 %v994, %v992
    %v1245 = vpack.c.b16 %v997, %v995
    %v1246 = vpack.c.b16 %v998, %v996
    %v1247 = vpack.c.b16 %v1001, %v999
    %v1248 = vpack.c.b16 %v1002, %v1000
    %v1249 = vpack.c.b16 %v1005, %v1003
    %v1250 = vpack.c.b16 %v1006, %v1004
    %v1251 = vpack.c.b16 %v1009, %v1007
    %v1252 = vpack.c.b16 %v1010, %v1008
    %v1253 = vpack.c.b16 %v1013, %v1011
    %v1254 = vpack.c.b16 %v1014, %v1012
    %v1255 = vpack.c.b16 %v1017, %v1015
    %v1256 = vpack.c.b16 %v1018, %v1016
    %v1257 = vpack.c.b16 %v1021, %v1019
    %v1258 = vpack.c.b16 %v1022, %v1020
    %v1259 = vpack.c.b16 %v1025, %v1023
    %v1260 = vpack.c.b16 %v1026, %v1024
    %v1261 = vpack.c.b16 %v1029, %v1027
    %v1262 = vpack.c.b16 %v1030, %v1028
    %v1263 = vpack.c.b16 %v1033, %v1031
    %v1264 = vpack.c.b16 %v1034, %v1032
    %v1265 = vpack.c.b16 %v1037, %v1035
    %v1266 = vpack.c.b16 %v1038, %v1036
    %v1267 = vpack.c.b16 %v1041, %v1039
    %v1268 = vpack.c.b16 %v1042, %v1040
    %v1269 = vpack.c.b16 %v1045, %v1043
    %v1270 = vpack.c.b16 %v1046, %v1044
    %v1271 = vpack.c.b16 %v1049, %v1047
    %v1272 = vpack.c.b16 %v1050, %v1048
    %v1273 = vpack.c.b16 %v1053, %v1051
    %v1274 = vpack.c.b16 %v1054, %v1052
    %vm1495 = vcmask 785408
    %v1497 = vsel %vm1495, %v381, 0
    %1499 = vmatprep.subr.bf16.mxu0 %v1070
    %1500 = vmatpush1.bf16.msra.mxu0 %v1069
    %1501 = vmatprep.subr.bf16.mxu0 %v1068
    %1502 = vmatpush1.bf16.msra.mxu0 %v1067
    %1503 = vmatprep.subr.bf16.mxu0 %v1066
    %1504 = vmatpush1.bf16.msra.mxu0 %v1065
    %1505 = vmatprep.subr.bf16.mxu0 %v1064
    %1506 = vmatpush1.bf16.msra.mxu0 %v1063
    %1507 = vmatprep.subr.bf16.mxu0 %v1062
    %1508 = vmatpush1.bf16.msra.mxu0 %v1061
    %1509 = vmatprep.subr.bf16.mxu0 %v1060
    %1510 = vmatpush1.bf16.msra.mxu0 %v1059
    %1511 = vmatprep.subr.bf16.mxu0 %v1058
    %1512 = vmatpush1.bf16.msra.mxu0 %v1057
    %1513 = vmatprep.subr.bf16.mxu0 %v1056
    %1514 = vmatpush1.bf16.msra.mxu0 %v1055
    %1515 = vmatprep.subr.bf16.mxu0 %v1086
    %1516 = vmatpush2.bf16.msra.mxu0 %v1085
    %1517 = vmatprep.subr.bf16.mxu0 %v1084
    %1518 = vmatpush2.bf16.msra.mxu0 %v1083
    %1519 = vmatprep.subr.bf16.mxu0 %v1082
    %1520 = vmatpush2.bf16.msra.mxu0 %v1081
    %1521 = vmatprep.subr.bf16.mxu0 %v1080
    %1522 = vmatpush2.bf16.msra.mxu0 %v1079
    %1523 = vmatprep.subr.bf16.mxu0 %v1078
    %1524 = vmatpush2.bf16.msra.mxu0 %v1077
    %1525 = vmatprep.subr.bf16.mxu0 %v1076
    %1526 = vmatpush2.bf16.msra.mxu0 %v1075
    %1527 = vmatprep.subr.bf16.mxu0 %v1074
    %1528 = vmatpush2.bf16.msra.mxu0 %v1073
    %1529 = vmatprep.subr.bf16.mxu0 %v1072
    %1530 = vmatpush2.bf16.msra.mxu0 %v1071
    %1531 = vmatprep.mubr.bf16.mxu0 %v338
    %1532 = vmatmul.mubr.bf16.gmra.mxu0 %v330
    %v1533 = vpop.f32.mrf.mxu0
    %v1534 = vadd.f32 %v312, %v1533
    %v1535 = vpop.f32.mrf.mxu0
    %v1536 = vadd.f32 %v316, %v1535
    %v1537 = vpop.f32.mrf.mxu0
    %v1538 = vpop.f32.mrf.mxu0
    %1539 = vdwg.mxu0
    %1540 = vmatprep.subr.bf16.mxu0 %v1102
    %1541 = vmatpush1.bf16.msra.mxu0 %v1101
    %1542 = vmatprep.subr.bf16.mxu0 %v1100
    %1543 = vmatpush1.bf16.msra.mxu0 %v1099
    %1544 = vmatprep.subr.bf16.mxu0 %v1098
    %1545 = vmatpush1.bf16.msra.mxu0 %v1097
    %1546 = vmatprep.subr.bf16.mxu0 %v1096
    %1547 = vmatpush1.bf16.msra.mxu0 %v1095
    %1548 = vmatprep.subr.bf16.mxu0 %v1094
    %1549 = vmatpush1.bf16.msra.mxu0 %v1093
    %1550 = vmatprep.subr.bf16.mxu0 %v1092
    %1551 = vmatpush1.bf16.msra.mxu0 %v1091
    %1552 = vmatprep.subr.bf16.mxu0 %v1090
    %1553 = vmatpush1.bf16.msra.mxu0 %v1089
    %1554 = vmatprep.subr.bf16.mxu0 %v1088
    %1555 = vmatpush1.bf16.msra.mxu0 %v1087
    %1556 = vmatprep.subr.bf16.mxu0 %v1118
    %1557 = vmatpush2.bf16.msra.mxu0 %v1117
    %1558 = vmatprep.subr.bf16.mxu0 %v1116
    %1559 = vmatpush2.bf16.msra.mxu0 %v1115
    %1560 = vmatprep.subr.bf16.mxu0 %v1114
    %1561 = vmatpush2.bf16.msra.mxu0 %v1113
    %1562 = vmatprep.subr.bf16.mxu0 %v1112
    %1563 = vmatpush2.bf16.msra.mxu0 %v1111
    %1564 = vmatprep.subr.bf16.mxu0 %v1110
    %1565 = vmatpush2.bf16.msra.mxu0 %v1109
    %1566 = vmatprep.subr.bf16.mxu0 %v1108
    %1567 = vmatpush2.bf16.msra.mxu0 %v1107
    %1568 = vmatprep.subr.bf16.mxu0 %v1106
    %1569 = vmatpush2.bf16.msra.mxu0 %v1105
    %1570 = vmatprep.subr.bf16.mxu0 %v1104
    %1571 = vmatpush2.bf16.msra.mxu0 %v1103
    %1572 = vmatprep.mubr.bf16.mxu0 %v339
    %1573 = vmatmul.mubr.bf16.gmra.mxu0 %v337
    %v1574 = vpop.f32.mrf.mxu0
    %v1575 = vadd.f32 %v1534, %v1574
    %v1576 = vpop.f32.mrf.mxu0
    %v1577 = vadd.f32 %v1536, %v1576
    %v1578 = vpop.f32.mrf.mxu0
    %v1579 = vpop.f32.mrf.mxu0
    %1580 = vdwg.mxu0
    %1581 = vmatprep.subr.bf16.mxu0 %v1134
    %1582 = vmatpush1.bf16.msra.mxu0 %v1133
    %1583 = vmatprep.subr.bf16.mxu0 %v1132
    %1584 = vmatpush1.bf16.msra.mxu0 %v1131
    %1585 = vmatprep.subr.bf16.mxu0 %v1130
    %1586 = vmatpush1.bf16.msra.mxu0 %v1129
    %1587 = vmatprep.subr.bf16.mxu0 %v1128
    %1588 = vmatpush1.bf16.msra.mxu0 %v1127
    %1589 = vmatprep.subr.bf16.mxu0 %v1126
    %1590 = vmatpush1.bf16.msra.mxu0 %v1125
    %1591 = vmatprep.subr.bf16.mxu0 %v1124
    %1592 = vmatpush1.bf16.msra.mxu0 %v1123
    %1593 = vmatprep.subr.bf16.mxu0 %v1122
    %1594 = vmatpush1.bf16.msra.mxu0 %v1121
    %1595 = vmatprep.subr.bf16.mxu0 %v1120
    %1596 = vmatpush1.bf16.msra.mxu0 %v1119
    %1597 = vmatprep.subr.bf16.mxu0 %v1150
    %1598 = vmatpush2.bf16.msra.mxu0 %v1149
    %1599 = vmatprep.subr.bf16.mxu0 %v1148
    %1600 = vmatpush2.bf16.msra.mxu0 %v1147
    %1601 = vmatprep.subr.bf16.mxu0 %v1146
    %1602 = vmatpush2.bf16.msra.mxu0 %v1145
    %1603 = vmatprep.subr.bf16.mxu0 %v1144
    %1604 = vmatpush2.bf16.msra.mxu0 %v1143
    %1605 = vmatprep.subr.bf16.mxu0 %v1142
    %1606 = vmatpush2.bf16.msra.mxu0 %v1141
    %1607 = vmatprep.subr.bf16.mxu0 %v1140
    %1608 = vmatpush2.bf16.msra.mxu0 %v1139
    %1609 = vmatprep.subr.bf16.mxu0 %v1138
    %1610 = vmatpush2.bf16.msra.mxu0 %v1137
    %1611 = vmatprep.subr.bf16.mxu0 %v1136
    %1612 = vmatpush2.bf16.msra.mxu0 %v1135
    %1613 = vmatprep.mubr.bf16.mxu0 %v355
    %1614 = vmatmul.mubr.bf16.gmra.mxu0 %v347
    %v1615 = vpop.f32.mrf.mxu0
    %v1616 = vadd.f32 %v1575, %v1615
    %v1617 = vpop.f32.mrf.mxu0
    %v1618 = vadd.f32 %v1577, %v1617
    %v1619 = vpop.f32.mrf.mxu0
    %v1620 = vpop.f32.mrf.mxu0
    %1621 = vdwg.mxu0
    %1622 = vmatprep.subr.bf16.mxu0 %v1166
    %1623 = vmatpush1.bf16.msra.mxu0 %v1165
    %1624 = vmatprep.subr.bf16.mxu0 %v1164
    %1625 = vmatpush1.bf16.msra.mxu0 %v1163
    %1626 = vmatprep.subr.bf16.mxu0 %v1162
    %1627 = vmatpush1.bf16.msra.mxu0 %v1161
    %1628 = vmatprep.subr.bf16.mxu0 %v1160
    %1629 = vmatpush1.bf16.msra.mxu0 %v1159
    %1630 = vmatprep.subr.bf16.mxu0 %v1158
    %1631 = vmatpush1.bf16.msra.mxu0 %v1157
    %1632 = vmatprep.subr.bf16.mxu0 %v1156
    %1633 = vmatpush1.bf16.msra.mxu0 %v1155
    %1634 = vmatprep.subr.bf16.mxu0 %v1154
    %1635 = vmatpush1.bf16.msra.mxu0 %v1153
    %1636 = vmatprep.subr.bf16.mxu0 %v1152
    %1637 = vmatpush1.bf16.msra.mxu0 %v1151
    %1638 = vmatprep.subr.bf16.mxu0 %v1182
    %1639 = vmatpush2.bf16.msra.mxu0 %v1181
    %1640 = vmatprep.subr.bf16.mxu0 %v1180
    %1641 = vmatpush2.bf16.msra.mxu0 %v1179
    %1642 = vmatprep.subr.bf16.mxu0 %v1178
    %1643 = vmatpush2.bf16.msra.mxu0 %v1177
    %1644 = vmatprep.subr.bf16.mxu0 %v1176
    %1645 = vmatpush2.bf16.msra.mxu0 %v1175
    %1646 = vmatprep.subr.bf16.mxu0 %v1174
    %1647 = vmatpush2.bf16.msra.mxu0 %v1173
    %1648 = vmatprep.subr.bf16.mxu0 %v1172
    %1649 = vmatpush2.bf16.msra.mxu0 %v1171
    %1650 = vmatprep.subr.bf16.mxu0 %v1170
    %1651 = vmatpush2.bf16.msra.mxu0 %v1169
    %1652 = vmatprep.subr.bf16.mxu0 %v1168
    %1653 = vmatpush2.bf16.msra.mxu0 %v1167
    %1654 = vmatprep.mubr.bf16.mxu0 %v356
    %1655 = vmatmul.mubr.bf16.gmra.mxu0 %v354
    %v1656 = vpop.f32.mrf.mxu0
    %v1657 = vadd.f32 %v1616, %v1656
    %v1658 = vpop.f32.mrf.mxu0
    %v1659 = vadd.f32 %v1618, %v1658
    %v1660 = vpop.f32.mrf.mxu0
    %v1661 = vpop.f32.mrf.mxu0
    %1662 = vdwg.mxu0
    %1663 = vmatprep.subr.bf16.mxu0 %v1198
    %1664 = vmatpush1.bf16.msra.mxu0 %v1197
    %1665 = vmatprep.subr.bf16.mxu0 %v1196
    %1666 = vmatpush1.bf16.msra.mxu0 %v1195
    %1667 = vmatprep.subr.bf16.mxu0 %v1194
    %1668 = vmatpush1.bf16.msra.mxu0 %v1193
    %1669 = vmatprep.subr.bf16.mxu0 %v1192
    %1670 = vmatpush1.bf16.msra.mxu0 %v1191
    %1671 = vmatprep.subr.bf16.mxu0 %v1190
    %1672 = vmatpush1.bf16.msra.mxu0 %v1189
    %1673 = vmatprep.subr.bf16.mxu0 %v1188
    %1674 = vmatpush1.bf16.msra.mxu0 %v1187
    %1675 = vmatprep.subr.bf16.mxu0 %v1186
    %1676 = vmatpush1.bf16.msra.mxu0 %v1185
    %1677 = vmatprep.subr.bf16.mxu0 %v1184
    %1678 = vmatpush1.bf16.msra.mxu0 %v1183
    %1679 = vmatprep.subr.bf16.mxu0 %v1214
    %1680 = vmatpush2.bf16.msra.mxu0 %v1213
    %1681 = vmatprep.subr.bf16.mxu0 %v1212
    %1682 = vmatpush2.bf16.msra.mxu0 %v1211
    %1683 = vmatprep.subr.bf16.mxu0 %v1210
    %1684 = vmatpush2.bf16.msra.mxu0 %v1209
    %1685 = vmatprep.subr.bf16.mxu0 %v1208
    %1686 = vmatpush2.bf16.msra.mxu0 %v1207
    %1687 = vmatprep.subr.bf16.mxu0 %v1206
    %1688 = vmatpush2.bf16.msra.mxu0 %v1205
    %1689 = vmatprep.subr.bf16.mxu0 %v1204
    %1690 = vmatpush2.bf16.msra.mxu0 %v1203
    %1691 = vmatprep.subr.bf16.mxu0 %v1202
    %1692 = vmatpush2.bf16.msra.mxu0 %v1201
    %1693 = vmatprep.subr.bf16.mxu0 %v1200
    %1694 = vmatpush2.bf16.msra.mxu0 %v1199
    %1695 = vmatprep.mubr.bf16.mxu0 %v372
    %1696 = vmatmul.mubr.bf16.gmra.mxu0 %v364
    %v1697 = vpop.f32.mrf.mxu0
    %v1698 = vadd.f32 %v1657, %v1697
    %v1699 = vpop.f32.mrf.mxu0
    %v1700 = vadd.f32 %v1659, %v1699
    %v1701 = vpop.f32.mrf.mxu0
    %v1702 = vpop.f32.mrf.mxu0
    %1703 = vdwg.mxu0
    %1704 = vmatprep.subr.bf16.mxu0 %v1230
    %1705 = vmatpush1.bf16.msra.mxu0 %v1229
    %1706 = vmatprep.subr.bf16.mxu0 %v1228
    %1707 = vmatpush1.bf16.msra.mxu0 %v1227
    %1708 = vmatprep.subr.bf16.mxu0 %v1226
    %1709 = vmatpush1.bf16.msra.mxu0 %v1225
    %1710 = vmatprep.subr.bf16.mxu0 %v1224
    %1711 = vmatpush1.bf16.msra.mxu0 %v1223
    %1712 = vmatprep.subr.bf16.mxu0 %v1222
    %1713 = vmatpush1.bf16.msra.mxu0 %v1221
    %1714 = vmatprep.subr.bf16.mxu0 %v1220
    %1715 = vmatpush1.bf16.msra.mxu0 %v1219
    %1716 = vmatprep.subr.bf16.mxu0 %v1218
    %1717 = vmatpush1.bf16.msra.mxu0 %v1217
    %1718 = vmatprep.subr.bf16.mxu0 %v1216
    %1719 = vmatpush1.bf16.msra.mxu0 %v1215
    %1720 = vmatprep.subr.bf16.mxu0 %v1246
    %1721 = vmatpush2.bf16.msra.mxu0 %v1245
    %1722 = vmatprep.subr.bf16.mxu0 %v1244
    %1723 = vmatpush2.bf16.msra.mxu0 %v1243
    %1724 = vmatprep.subr.bf16.mxu0 %v1242
    %1725 = vmatpush2.bf16.msra.mxu0 %v1241
    %1726 = vmatprep.subr.bf16.mxu0 %v1240
    %1727 = vmatpush2.bf16.msra.mxu0 %v1239
    %1728 = vmatprep.subr.bf16.mxu0 %v1238
    %1729 = vmatpush2.bf16.msra.mxu0 %v1237
    %1730 = vmatprep.subr.bf16.mxu0 %v1236
    %1731 = vmatpush2.bf16.msra.mxu0 %v1235
    %1732 = vmatprep.subr.bf16.mxu0 %v1234
    %1733 = vmatpush2.bf16.msra.mxu0 %v1233
    %1734 = vmatprep.subr.bf16.mxu0 %v1232
    %1735 = vmatpush2.bf16.msra.mxu0 %v1231
    %1736 = vmatprep.mubr.bf16.mxu0 %v373
    %1737 = vmatmul.mubr.bf16.gmra.mxu0 %v371
    %v1738 = vpop.f32.mrf.mxu0
    %v1739 = vadd.f32 %v1698, %v1738
    %v1740 = vpop.f32.mrf.mxu0
    %v1741 = vadd.f32 %v1700, %v1740
    %v1742 = vpop.f32.mrf.mxu0
    %v1743 = vpop.f32.mrf.mxu0
    %1744 = vdwg.mxu0
    %1745 = vmatprep.subr.bf16.mxu0 %v1262
    %1746 = vmatpush1.bf16.msra.mxu0 %v1261
    %1747 = vmatprep.subr.bf16.mxu0 %v1260
    %1748 = vmatpush1.bf16.msra.mxu0 %v1259
    %1749 = vmatprep.subr.bf16.mxu0 %v1258
    %1750 = vmatpush1.bf16.msra.mxu0 %v1257
    %1751 = vmatprep.subr.bf16.mxu0 %v1256
    %1752 = vmatpush1.bf16.msra.mxu0 %v1255
    %1753 = vmatprep.subr.bf16.mxu0 %v1254
    %1754 = vmatpush1.bf16.msra.mxu0 %v1253
    %1755 = vmatprep.subr.bf16.mxu0 %v1252
    %1756 = vmatpush1.bf16.msra.mxu0 %v1251
    %1757 = vmatprep.subr.bf16.mxu0 %v1250
    %1758 = vmatpush1.bf16.msra.mxu0 %v1249
    %1759 = vmatprep.subr.bf16.mxu0 %v1248
    %1760 = vmatpush1.bf16.msra.mxu0 %v1247
    %1761 = vmatprep.subr.bf16.mxu0 0
    %1762 = vmatpush2.bf16.msra.mxu0 0
    %1763 = vmatprep.subr.bf16.mxu0 0
    %1764 = vmatpush2.bf16.msra.mxu0 0
    %1765 = vmatprep.subr.bf16.mxu0 %v1274
    %1766 = vmatpush2.bf16.msra.mxu0 %v1273
    %1767 = vmatprep.subr.bf16.mxu0 %v1272
    %1768 = vmatpush2.bf16.msra.mxu0 %v1271
    %1769 = vmatprep.subr.bf16.mxu0 %v1270
    %1770 = vmatpush2.bf16.msra.mxu0 %v1269
    %1771 = vmatprep.subr.bf16.mxu0 %v1268
    %1772 = vmatpush2.bf16.msra.mxu0 %v1267
    %1773 = vmatprep.subr.bf16.mxu0 %v1266
    %1774 = vmatpush2.bf16.msra.mxu0 %v1265
    %1775 = vmatprep.subr.bf16.mxu0 %v1264
    %1776 = vmatpush2.bf16.msra.mxu0 %v1263
    %1777 = vmatprep.mubr.bf16.mxu0 %v1497
    %1778 = vmatmul.mubr.bf16.gmra.mxu0 %v380
    %v1779 = vpop.f32.mrf.mxu0
    %v1780 = vadd.f32 %v1739, %v1779
    %v1781 = vpop.f32.mrf.mxu0
    %v1782 = vadd.f32 %v1741, %v1781
    %v1783 = vpop.f32.mrf.mxu0
    %v1784 = vpop.f32.mrf.mxu0
    %1785 = vdwg.mxu0
    %v1786 = vmax.f32 %v1780, 0.0
    %v1787 = vmax.f32 %v1782, 0.0
    %v1788 = vld [vmem:[%s9] sm:$0x3]
    %v1789 = vunpack.c.0.s8 %v1788
    %v1790 = vcvt.s32.f32 %v1789
    %v1791 = vmul.f32 %v1790, 1.4285715
    %v1793 = vcombine.high %v1791, %v1791
    %v1795 = vmul.f32 %v1786, %v1791
    %v1796 = vmul.f32 %v1787, %v1793
    %v1797 = vld [vmem:[#allocation5] sm:$0xff]
    %v1798 = vld [vmem:[#allocation5 + $0x8] sm:$0xff]
    %v1799 = vld [vmem:[#allocation5 + $0x10] sm:$0xff]
    %v1800 = vld [vmem:[#allocation5 + $0x18] sm:$0xff]
    %v1801 = vld [vmem:[#allocation5 + $0x20] sm:$0xff]
    %v1802 = vld [vmem:[#allocation5 + $0x28] sm:$0xff]
    %v1803 = vld [vmem:[#allocation5 + $0x30] sm:$0xff]
    %v1804 = vld [vmem:[#allocation5 + $0x38] sm:$0xff]
    %v1805 = vld [vmem:[#allocation5 + $0x40] sm:$0xff]
    %v1806 = vld [vmem:[#allocation5 + $0x48] sm:$0xff]
    %v1807 = vld [vmem:[#allocation5 + $0x50] sm:$0xff]
    %v1808 = vld [vmem:[#allocation5 + $0x58] sm:$0xff]
    %v1809 = vld [vmem:[#allocation5 + $0x60] sm:$0xff]
    %v1810 = vld [vmem:[#allocation5 + $0x68] sm:$0xff]
    %v1811 = vld [vmem:[#allocation5 + $0x70] sm:$0xff]
    %v1812 = vld [vmem:[#allocation5 + $0x78] sm:$0xff]
    %v1813 = vld [vmem:[#allocation5 + $0x80] sm:$0xff]
    %v1814 = vld [vmem:[#allocation5 + $0x88] sm:$0xff]
    %v1815 = vld [vmem:[#allocation5 + $0x90] sm:$0xff]
    %v1816 = vld [vmem:[#allocation5 + $0x98] sm:$0xff]
    %v1817 = vld [vmem:[#allocation5 + $0xa0] sm:$0xff]
    %v1818 = vld [vmem:[#allocation5 + $0xa8] sm:$0xff]
    %v1819 = vld [vmem:[#allocation5 + $0xb0] sm:$0xff]
    %v1820 = vld [vmem:[#allocation5 + $0xb8] sm:$0xff]
    %v1821 = vld [vmem:[#allocation5 + $0xc0] sm:$0xff]
    %v1822 = vld [vmem:[#allocation5 + $0xc8] sm:$0xff]
    %v1823 = vld [vmem:[#allocation5 + $0xd0] sm:$0xff]
    %v1824 = vld [vmem:[#allocation5 + $0xd8] sm:$0xff]
    %v1825 = vld [vmem:[#allocation5 + $0xe0] sm:$0xff]
    %v1826 = vld [vmem:[#allocation5 + $0xe8] sm:$0xff]
    %v1827 = vld [vmem:[#allocation5 + $0xf0] sm:$0xff]
    %v1828 = vld [vmem:[#allocation5 + $0xf8] sm:$0xff]
    %v1829 = vld [vmem:[%s4] sm:$0x1]
    %v1831 = vlaneseq
    %v1832 = vshrl.u32 %v1831, 7
    %v1833 = vsub.s32 0, %v1832
    %v1834 = vrot.slane %v1829, %v1833
    %1836 = vmatprep.subr.mxu0 0.0
    %1837 = vmatpush1.msra.mxu0 %v1812
    %1838 = vmatprep.subr.mxu0 0.0
    %1839 = vmatpush1.msra.mxu0 %v1811
    %1840 = vmatprep.subr.mxu0 0.0
    %1841 = vmatpush1.msra.mxu0 %v1810
    %1842 = vmatprep.subr.mxu0 0.0
    %1843 = vmatpush1.msra.mxu0 %v1809
    %1844 = vmatprep.subr.mxu0 0.0
    %1845 = vmatpush1.msra.mxu0 %v1808
    %1846 = vmatprep.subr.mxu0 0.0
    %1847 = vmatpush1.msra.mxu0 %v1807
    %1848 = vmatprep.subr.mxu0 0.0
    %1849 = vmatpush1.msra.mxu0 %v1806
    %1850 = vmatprep.subr.mxu0 0.0
    %1851 = vmatpush1.msra.mxu0 %v1805
    %1852 = vmatprep.subr.mxu0 0.0
    %1853 = vmatpush1.msra.mxu0 %v1804
    %1854 = vmatprep.subr.mxu0 0.0
    %1855 = vmatpush1.msra.mxu0 %v1803
    %1856 = vmatprep.subr.mxu0 0.0
    %1857 = vmatpush1.msra.mxu0 %v1802
    %1858 = vmatprep.subr.mxu0 0.0
    %1859 = vmatpush1.msra.mxu0 %v1801
    %1860 = vmatprep.subr.mxu0 0.0
    %1861 = vmatpush1.msra.mxu0 %v1800
    %1862 = vmatprep.subr.mxu0 0.0
    %1863 = vmatpush1.msra.mxu0 %v1799
    %1864 = vmatprep.subr.mxu0 0.0
    %1865 = vmatpush1.msra.mxu0 %v1798
    %1866 = vmatprep.subr.mxu0 0.0
    %1867 = vmatpush1.msra.mxu0 %v1797
    %1868 = vmatprep.subr.mxu0 0.0
    %1869 = vmatpush2.msra.mxu0 %v1828
    %1870 = vmatprep.subr.mxu0 0.0
    %1871 = vmatpush2.msra.mxu0 %v1827
    %1872 = vmatprep.subr.mxu0 0.0
    %1873 = vmatpush2.msra.mxu0 %v1826
    %1874 = vmatprep.subr.mxu0 0.0
    %1875 = vmatpush2.msra.mxu0 %v1825
    %1876 = vmatprep.subr.mxu0 0.0
    %1877 = vmatpush2.msra.mxu0 %v1824
    %1878 = vmatprep.subr.mxu0 0.0
    %1879 = vmatpush2.msra.mxu0 %v1823
    %1880 = vmatprep.subr.mxu0 0.0
    %1881 = vmatpush2.msra.mxu0 %v1822
    %1882 = vmatprep.subr.mxu0 0.0
    %1883 = vmatpush2.msra.mxu0 %v1821
    %1884 = vmatprep.subr.mxu0 0.0
    %1885 = vmatpush2.msra.mxu0 %v1820
    %1886 = vmatprep.subr.mxu0 0.0
    %1887 = vmatpush2.msra.mxu0 %v1819
    %1888 = vmatprep.subr.mxu0 0.0
    %1889 = vmatpush2.msra.mxu0 %v1818
    %1890 = vmatprep.subr.mxu0 0.0
    %1891 = vmatpush2.msra.mxu0 %v1817
    %1892 = vmatprep.subr.mxu0 0.0
    %1893 = vmatpush2.msra.mxu0 %v1816
    %1894 = vmatprep.subr.mxu0 0.0
    %1895 = vmatpush2.msra.mxu0 %v1815
    %1896 = vmatprep.subr.mxu0 0.0
    %1897 = vmatpush2.msra.mxu0 %v1814
    %1898 = vmatprep.subr.mxu0 0.0
    %1899 = vmatpush2.msra.mxu0 %v1813
    %1900 = vmatprep.mubr.f32.mxu0 %v1796
    %1901 = vmatmul.mubr.f32.gmra.mxu0 %v1795
    %v1902 = vpop.f32.mrf.mxu0
    %v1903 = vadd.f32 %v1834, %v1902
    %v1904 = vpop.f32.mrf.mxu0
    %1905 = vdwg.mxu0
    %v1906 = vld [vmem:[%s10] sm:$0xf]
    %v1907 = vmul.f32 %v1903, 0.5
    %v1908 = vmul.f32 %v1907, 1.442695
    %v1909 = vpow.pop %v1908
    %1911 = vrot.lane.b32.xlu0 %v1909, 96
    %v1912 = vpop.permute.xlu0 %1911
    %v1914 = vmul.f32 %v1906, %v1912
    %v1915 = vadd.f32 %v1903, %v1914
    %v1916 = vld [vmem:[%s5] sm:$0xff]
    %v1917 = vld [vmem:[%s5 + $0x8] sm:$0xff]
    %v1918 = vld [vmem:[%s5 + $0x10] sm:$0xff]
    %v1919 = vld [vmem:[%s5 + $0x18] sm:$0xff]
    %v1920 = vld [vmem:[%s5 + $0x20] sm:$0xff]
    %v1921 = vld [vmem:[%s5 + $0x28] sm:$0xff]
    %v1922 = vld [vmem:[%s5 + $0x30] sm:$0xff]
    %v1923 = vld [vmem:[%s5 + $0x38] sm:$0xff]
    %v1924 = vld [vmem:[%s6] sm:$0x3]
    %v1926 = vlaneseq
    %v1927 = vshrl.u32 %v1926, 7
    %v1928 = vsub.s32 0, %v1927
    %v1929 = vrot.slane %v1924, %v1928
    %v1930 = vlaneseq
    %v1931 = vshrl.u32 %v1930, 7
    %v1932 = vsub.s32 1, %v1931
    %v1933 = vrot.slane %v1924, %v1932
    %vm1936 = vcmask 261120
    %v1938 = vsel %vm1936, %v1915, 0
    %1940 = vmatprep.subr.mxu0 0.0
    %1941 = vmatpush1.msra.mxu0 0.0
    %1942 = vmatprep.subr.mxu0 0.0
    %1943 = vmatpush1.msra.mxu0 0.0
    %1944 = vmatprep.subr.mxu0 0.0
    %1945 = vmatpush1.msra.mxu0 0.0
    %1946 = vmatprep.subr.mxu0 0.0
    %1947 = vmatpush1.msra.mxu0 0.0
    %1948 = vmatprep.subr.mxu0 0.0
    %1949 = vmatpush1.msra.mxu0 0.0
    %1950 = vmatprep.subr.mxu0 0.0
    %1951 = vmatpush1.msra.mxu0 0.0
    %1952 = vmatprep.subr.mxu0 0.0
    %1953 = vmatpush1.msra.mxu0 0.0
    %1954 = vmatprep.subr.mxu0 0.0
    %1955 = vmatpush1.msra.mxu0 0.0
    %1956 = vmatprep.subr.mxu0 0.0
    %1957 = vmatpush1.msra.mxu0 0.0
    %1958 = vmatprep.subr.mxu0 0.0
    %1959 = vmatpush1.msra.mxu0 0.0
    %1960 = vmatprep.subr.mxu0 0.0
    %1961 = vmatpush1.msra.mxu0 0.0
    %1962 = vmatprep.subr.mxu0 0.0
    %1963 = vmatpush1.msra.mxu0 0.0
    %1964 = vmatprep.subr.mxu0 %v1923
    %1965 = vmatpush1.msra.mxu0 %v1922
    %1966 = vmatprep.subr.mxu0 %v1921
    %1967 = vmatpush1.msra.mxu0 %v1920
    %1968 = vmatprep.subr.mxu0 %v1919
    %1969 = vmatpush1.msra.mxu0 %v1918
    %1970 = vmatprep.subr.mxu0 %v1917
    %1971 = vmatpush1.msra.mxu0 %v1916
    %1972 = vmatprep.subr.mxu0 0.0
    %1973 = vmatpush2.msra.mxu0 0.0
    %1974 = vmatprep.subr.mxu0 0.0
    %1975 = vmatpush2.msra.mxu0 0.0
    %1976 = vmatprep.subr.mxu0 0.0
    %1977 = vmatpush2.msra.mxu0 0.0
    %1978 = vmatprep.subr.mxu0 0.0
    %1979 = vmatpush2.msra.mxu0 0.0
    %1980 = vmatprep.subr.mxu0 0.0
    %1981 = vmatpush2.msra.mxu0 0.0
    %1982 = vmatprep.subr.mxu0 0.0
    %1983 = vmatpush2.msra.mxu0 0.0
    %1984 = vmatprep.subr.mxu0 0.0
    %1985 = vmatpush2.msra.mxu0 0.0
    %1986 = vmatprep.subr.mxu0 0.0
    %1987 = vmatpush2.msra.mxu0 0.0
    %1988 = vmatprep.subr.mxu0 0.0
    %1989 = vmatpush2.msra.mxu0 0.0
    %1990 = vmatprep.subr.mxu0 0.0
    %1991 = vmatpush2.msra.mxu0 0.0
    %1992 = vmatprep.subr.mxu0 0.0
    %1993 = vmatpush2.msra.mxu0 0.0
    %1994 = vmatprep.subr.mxu0 0.0
    %1995 = vmatpush2.msra.mxu0 0.0
    %1996 = vmatprep.subr.mxu0 0.0
    %1997 = vmatpush2.msra.mxu0 0.0
    %1998 = vmatprep.subr.mxu0 0.0
    %1999 = vmatpush2.msra.mxu0 0.0
    %2000 = vmatprep.subr.mxu0 0.0
    %2001 = vmatpush2.msra.mxu0 0.0
    %2002 = vmatprep.subr.mxu0 0.0
    %2003 = vmatpush2.msra.mxu0 0.0
    %2004 = vmatprep.mubr.f32.mxu0 0.0
    %2005 = vmatmul.mubr.f32.gmra.mxu0 %v1938
    %v2006 = vpop.f32.mrf.mxu0
    %v2007 = vadd.f32 %v1929, %v2006
    %v2008 = vpop.f32.mrf.mxu0
    %v2009 = vadd.f32 %v1933, %v2008
    %2010 = vdwg.mxu0
    %v2011 = vmax.f32 %v2007, 0.0
    %v2012 = vmax.f32 %v2009, 0.0
    %v2013 = vpack.c.bf16 %v2011, %v2011
    %v2014 = vpack.c.bf16 %v2012, %v2012
    %v2015 = vld [vmem:[#allocation7] sm:$0xff]
    %v2016 = vld [vmem:[#allocation7 + $0x8] sm:$0xff]
    %v2017 = vld [vmem:[#allocation7 + $0x10] sm:$0xff]
    %v2018 = vld [vmem:[#allocation7 + $0x18] sm:$0xff]
    %v2019 = vld [vmem:[#allocation7 + $0x20] sm:$0xff]
    %v2020 = vld [vmem:[#allocation7 + $0x28] sm:$0xff]
    %v2021 = vld [vmem:[#allocation7 + $0x30] sm:$0xff]
    %v2022 = vld [vmem:[#allocation7 + $0x38] sm:$0xff]
    %v2023 = vld [vmem:[#allocation7 + $0x40] sm:$0xff]
    %v2024 = vld [vmem:[#allocation7 + $0x48] sm:$0xff]
    %v2025 = vld [vmem:[#allocation7 + $0x50] sm:$0xff]
    %v2026 = vld [vmem:[#allocation7 + $0x58] sm:$0xff]
    %v2027 = vld [vmem:[#allocation7 + $0x60] sm:$0xff]
    %v2028 = vld [vmem:[#allocation7 + $0x68] sm:$0xff]
    %v2029 = vld [vmem:[#allocation7 + $0x70] sm:$0xff]
    %v2030 = vld [vmem:[#allocation7 + $0x78] sm:$0xff]
    %v2031 = vld [vmem:[#allocation7 + $0x80] sm:$0xff]
    %v2032 = vld [vmem:[#allocation7 + $0x88] sm:$0xff]
    %v2033 = vld [vmem:[#allocation7 + $0x90] sm:$0xff]
    %v2034 = vld [vmem:[#allocation7 + $0x98] sm:$0xff]
    %v2035 = vld [vmem:[#allocation7 + $0xa0] sm:$0xff]
    %v2036 = vld [vmem:[#allocation7 + $0xa8] sm:$0xff]
    %v2037 = vld [vmem:[#allocation7 + $0xb0] sm:$0xff]
    %v2038 = vld [vmem:[#allocation7 + $0xb8] sm:$0xff]
    %v2039 = vld [vmem:[#allocation7 + $0xc0] sm:$0xff]
    %v2040 = vld [vmem:[#allocation7 + $0xc8] sm:$0xff]
    %v2041 = vld [vmem:[#allocation7 + $0xd0] sm:$0xff]
    %v2042 = vld [vmem:[#allocation7 + $0xd8] sm:$0xff]
    %v2043 = vld [vmem:[#allocation7 + $0xe0] sm:$0xff]
    %v2044 = vld [vmem:[#allocation7 + $0xe8] sm:$0xff]
    %v2045 = vld [vmem:[#allocation7 + $0xf0] sm:$0xff]
    %v2046 = vld [vmem:[#allocation7 + $0xf8] sm:$0xff]
    %v2047 = vld [vmem:[#allocation7 + $0x100] sm:$0xff]
    %v2048 = vld [vmem:[#allocation7 + $0x108] sm:$0xff]
    %v2049 = vld [vmem:[#allocation7 + $0x110] sm:$0xff]
    %v2050 = vld [vmem:[#allocation7 + $0x118] sm:$0xff]
    %v2051 = vld [vmem:[#allocation7 + $0x120] sm:$0xff]
    %v2052 = vld [vmem:[#allocation7 + $0x128] sm:$0xff]
    %v2053 = vld [vmem:[#allocation7 + $0x130] sm:$0xff]
    %v2054 = vld [vmem:[#allocation7 + $0x138] sm:$0xff]
    %v2055 = vld [vmem:[#allocation7 + $0x140] sm:$0xff]
    %v2056 = vld [vmem:[#allocation7 + $0x148] sm:$0xff]
    %v2057 = vld [vmem:[#allocation7 + $0x150] sm:$0xff]
    %v2058 = vld [vmem:[#allocation7 + $0x158] sm:$0xff]
    %v2059 = vld [vmem:[#allocation7 + $0x160] sm:$0xff]
    %v2060 = vld [vmem:[#allocation7 + $0x168] sm:$0xff]
    %v2061 = vld [vmem:[#allocation7 + $0x170] sm:$0xff]
    %v2062 = vld [vmem:[#allocation7 + $0x178] sm:$0xff]
    %v2063 = vld [vmem:[#allocation7 + $0x180] sm:$0xff]
    %v2064 = vld [vmem:[#allocation7 + $0x188] sm:$0xff]
    %v2065 = vld [vmem:[#allocation7 + $0x190] sm:$0xff]
    %v2066 = vld [vmem:[#allocation7 + $0x198] sm:$0xff]
    %v2067 = vld [vmem:[#allocation7 + $0x1a0] sm:$0xff]
    %v2068 = vld [vmem:[#allocation7 + $0x1a8] sm:$0xff]
    %v2069 = vld [vmem:[#allocation7 + $0x1b0] sm:$0xff]
    %v2070 = vld [vmem:[#allocation7 + $0x1b8] sm:$0xff]
    %v2071 = vld [vmem:[#allocation7 + $0x1c0] sm:$0xff]
    %v2072 = vld [vmem:[#allocation7 + $0x1c8] sm:$0xff]
    %v2073 = vld [vmem:[#allocation7 + $0x1d0] sm:$0xff]
    %v2074 = vld [vmem:[#allocation7 + $0x1d8] sm:$0xff]
    %v2075 = vld [vmem:[#allocation7 + $0x1e0] sm:$0xff]
    %v2076 = vld [vmem:[#allocation7 + $0x1e8] sm:$0xff]
    %v2077 = vld [vmem:[#allocation7 + $0x1f0] sm:$0xff]
    %v2078 = vld [vmem:[#allocation7 + $0x1f8] sm:$0xff]
    %v2079 = vld [vmem:[#allocation7 + $0x200] sm:$0xff]
    %v2080 = vld [vmem:[#allocation7 + $0x208] sm:$0xff]
    %v2081 = vld [vmem:[#allocation7 + $0x210] sm:$0xff]
    %v2082 = vld [vmem:[#allocation7 + $0x218] sm:$0xff]
    %v2083 = vld [vmem:[#allocation7 + $0x220] sm:$0xff]
    %v2084 = vld [vmem:[#allocation7 + $0x228] sm:$0xff]
    %v2085 = vld [vmem:[#allocation7 + $0x230] sm:$0xff]
    %v2086 = vld [vmem:[#allocation7 + $0x238] sm:$0xff]
    %v2087 = vld [vmem:[#allocation7 + $0x240] sm:$0xff]
    %v2088 = vld [vmem:[#allocation7 + $0x248] sm:$0xff]
    %v2089 = vld [vmem:[#allocation7 + $0x250] sm:$0xff]
    %v2090 = vld [vmem:[#allocation7 + $0x258] sm:$0xff]
    %v2091 = vld [vmem:[#allocation7 + $0x260] sm:$0xff]
    %v2092 = vld [vmem:[#allocation7 + $0x268] sm:$0xff]
    %v2093 = vld [vmem:[#allocation7 + $0x270] sm:$0xff]
    %v2094 = vld [vmem:[#allocation7 + $0x278] sm:$0xff]
    %v2095 = vld [vmem:[#allocation7 + $0x280] sm:$0xff]
    %v2096 = vld [vmem:[#allocation7 + $0x288] sm:$0xff]
    %v2097 = vld [vmem:[#allocation7 + $0x290] sm:$0xff]
    %v2098 = vld [vmem:[#allocation7 + $0x298] sm:$0xff]
    %v2099 = vld [vmem:[#allocation7 + $0x2a0] sm:$0xff]
    %v2100 = vld [vmem:[#allocation7 + $0x2a8] sm:$0xff]
    %v2101 = vld [vmem:[#allocation7 + $0x2b0] sm:$0xff]
    %v2102 = vld [vmem:[#allocation7 + $0x2b8] sm:$0xff]
    %v2103 = vld [vmem:[#allocation7 + $0x2c0] sm:$0xff]
    %v2104 = vld [vmem:[#allocation7 + $0x2c8] sm:$0xff]
    %v2105 = vld [vmem:[#allocation7 + $0x2d0] sm:$0xff]
    %v2106 = vld [vmem:[#allocation7 + $0x2d8] sm:$0xff]
    %v2107 = vld [vmem:[#allocation7 + $0x2e0] sm:$0xff]
    %v2108 = vld [vmem:[#allocation7 + $0x2e8] sm:$0xff]
    %v2109 = vld [vmem:[#allocation7 + $0x2f0] sm:$0xff]
    %v2110 = vld [vmem:[#allocation7 + $0x2f8] sm:$0xff]
    %v2111 = vld [vmem:[#allocation7 + $0x300] sm:$0xff]
    %v2112 = vld [vmem:[#allocation7 + $0x308] sm:$0xff]
    %v2113 = vld [vmem:[#allocation7 + $0x310] sm:$0xff]
    %v2114 = vld [vmem:[#allocation7 + $0x318] sm:$0xff]
    %v2115 = vld [vmem:[#allocation7 + $0x320] sm:$0xff]
    %v2116 = vld [vmem:[#allocation7 + $0x328] sm:$0xff]
    %v2117 = vld [vmem:[#allocation7 + $0x330] sm:$0xff]
    %v2118 = vld [vmem:[#allocation7 + $0x338] sm:$0xff]
    %v2119 = vld [vmem:[#allocation7 + $0x340] sm:$0xff]
    %v2120 = vld [vmem:[#allocation7 + $0x348] sm:$0xff]
    %v2121 = vld [vmem:[#allocation7 + $0x350] sm:$0xff]
    %v2122 = vld [vmem:[#allocation7 + $0x358] sm:$0xff]
    %v2123 = vld [vmem:[#allocation7 + $0x360] sm:$0xff]
    %v2124 = vld [vmem:[#allocation7 + $0x368] sm:$0xff]
    %v2125 = vld [vmem:[#allocation7 + $0x370] sm:$0xff]
    %v2126 = vld [vmem:[#allocation7 + $0x378] sm:$0xff]
    %v2127 = vld [vmem:[#allocation7 + $0x380] sm:$0xff]
    %v2128 = vld [vmem:[#allocation7 + $0x388] sm:$0xff]
    %v2129 = vld [vmem:[#allocation7 + $0x390] sm:$0xff]
    %v2130 = vld [vmem:[#allocation7 + $0x398] sm:$0xff]
    %v2131 = vld [vmem:[#allocation7 + $0x3a0] sm:$0xff]
    %v2132 = vld [vmem:[#allocation7 + $0x3a8] sm:$0xff]
    %v2133 = vld [vmem:[#allocation7 + $0x3b0] sm:$0xff]
    %v2134 = vld [vmem:[#allocation7 + $0x3b8] sm:$0xff]
    %v2135 = vld [vmem:[#allocation7 + $0x3c0] sm:$0xff]
    %v2136 = vld [vmem:[#allocation7 + $0x3c8] sm:$0xff]
    %v2137 = vld [vmem:[#allocation7 + $0x3d0] sm:$0xff]
    %v2138 = vld [vmem:[#allocation7 + $0x3d8] sm:$0xff]
    %v2139 = vld [vmem:[#allocation7 + $0x3e0] sm:$0xff]
    %v2140 = vld [vmem:[#allocation7 + $0x3e8] sm:$0xff]
    %v2141 = vld [vmem:[#allocation7 + $0x3f0] sm:$0xff]
    %v2142 = vld [vmem:[#allocation7 + $0x3f8] sm:$0xff]
    %v2143 = vld [vmem:[#allocation7 + $0x400] sm:$0xff]
    %v2144 = vld [vmem:[#allocation7 + $0x408] sm:$0xff]
    %v2145 = vld [vmem:[#allocation7 + $0x410] sm:$0xff]
    %v2146 = vld [vmem:[#allocation7 + $0x418] sm:$0xff]
    %v2147 = vld [vmem:[#allocation7 + $0x420] sm:$0xff]
    %v2148 = vld [vmem:[#allocation7 + $0x428] sm:$0xff]
    %v2149 = vld [vmem:[#allocation7 + $0x430] sm:$0xff]
    %v2150 = vld [vmem:[#allocation7 + $0x438] sm:$0xff]
    %v2151 = vld [vmem:[#allocation7 + $0x440] sm:$0xff]
    %v2152 = vld [vmem:[#allocation7 + $0x448] sm:$0xff]
    %v2153 = vld [vmem:[#allocation7 + $0x450] sm:$0xff]
    %v2154 = vld [vmem:[#allocation7 + $0x458] sm:$0xff]
    %v2155 = vld [vmem:[#allocation7 + $0x460] sm:$0xff]
    %v2156 = vld [vmem:[#allocation7 + $0x468] sm:$0xff]
    %v2157 = vld [vmem:[#allocation7 + $0x470] sm:$0xff]
    %v2158 = vld [vmem:[#allocation7 + $0x478] sm:$0xff]
    %v2159 = vld [vmem:[#allocation7 + $0x480] sm:$0xff]
    %v2160 = vld [vmem:[#allocation7 + $0x488] sm:$0xff]
    %v2161 = vld [vmem:[#allocation7 + $0x490] sm:$0xff]
    %v2162 = vld [vmem:[#allocation7 + $0x498] sm:$0xff]
    %v2163 = vld [vmem:[#allocation7 + $0x4a0] sm:$0xff]
    %v2164 = vld [vmem:[#allocation7 + $0x4a8] sm:$0xff]
    %v2165 = vld [vmem:[#allocation7 + $0x4b0] sm:$0xff]
    %v2166 = vld [vmem:[#allocation7 + $0x4b8] sm:$0xff]
    %v2167 = vld [vmem:[#allocation7 + $0x4c0] sm:$0xff]
    %v2168 = vld [vmem:[#allocation7 + $0x4c8] sm:$0xff]
    %v2169 = vld [vmem:[#allocation7 + $0x4d0] sm:$0xff]
    %v2170 = vld [vmem:[#allocation7 + $0x4d8] sm:$0xff]
    %v2171 = vld [vmem:[#allocation7 + $0x4e0] sm:$0xff]
    %v2172 = vld [vmem:[#allocation7 + $0x4e8] sm:$0xff]
    %v2173 = vld [vmem:[#allocation7 + $0x4f0] sm:$0xff]
    %v2174 = vld [vmem:[#allocation7 + $0x4f8] sm:$0xff]
    %v2175 = vld [vmem:[#allocation7 + $0x500] sm:$0xff]
    %v2176 = vld [vmem:[#allocation7 + $0x508] sm:$0xff]
    %v2177 = vld [vmem:[#allocation7 + $0x510] sm:$0xff]
    %v2178 = vld [vmem:[#allocation7 + $0x518] sm:$0xff]
    %v2179 = vld [vmem:[#allocation7 + $0x520] sm:$0xff]
    %v2180 = vld [vmem:[#allocation7 + $0x528] sm:$0xff]
    %v2181 = vld [vmem:[#allocation7 + $0x530] sm:$0xff]
    %v2182 = vld [vmem:[#allocation7 + $0x538] sm:$0xff]
    %v2183 = vld [vmem:[#allocation7 + $0x540] sm:$0xff]
    %v2184 = vld [vmem:[#allocation7 + $0x548] sm:$0xff]
    %v2185 = vld [vmem:[#allocation7 + $0x550] sm:$0xff]
    %v2186 = vld [vmem:[#allocation7 + $0x558] sm:$0xff]
    %v2187 = vld [vmem:[#allocation7 + $0x560] sm:$0xff]
    %v2188 = vld [vmem:[#allocation7 + $0x568] sm:$0xff]
    %v2189 = vld [vmem:[#allocation7 + $0x570] sm:$0xff]
    %v2190 = vld [vmem:[#allocation7 + $0x578] sm:$0xff]
    %v2191 = vld [vmem:[#allocation7 + $0x580] sm:$0xff]
    %v2192 = vld [vmem:[#allocation7 + $0x588] sm:$0xff]
    %v2193 = vld [vmem:[#allocation7 + $0x590] sm:$0xff]
    %v2194 = vld [vmem:[#allocation7 + $0x598] sm:$0xff]
    %v2195 = vld [vmem:[#allocation7 + $0x5a0] sm:$0xff]
    %v2196 = vld [vmem:[#allocation7 + $0x5a8] sm:$0xff]
    %v2197 = vld [vmem:[#allocation7 + $0x5b0] sm:$0xff]
    %v2198 = vld [vmem:[#allocation7 + $0x5b8] sm:$0xff]
    %v2199 = vld [vmem:[#allocation7 + $0x5c0] sm:$0xff]
    %v2200 = vld [vmem:[#allocation7 + $0x5c8] sm:$0xff]
    %v2201 = vld [vmem:[#allocation7 + $0x5d0] sm:$0xff]
    %v2202 = vld [vmem:[#allocation7 + $0x5d8] sm:$0xff]
    %v2203 = vld [vmem:[#allocation7 + $0x5e0] sm:$0xff]
    %v2204 = vld [vmem:[#allocation7 + $0x5e8] sm:$0xff]
    %v2205 = vld [vmem:[#allocation7 + $0x5f0] sm:$0xff]
    %v2206 = vld [vmem:[#allocation7 + $0x5f8] sm:$0xff]
    %v2207 = vld [vmem:[#allocation7 + $0x600] sm:$0xff]
    %v2208 = vld [vmem:[#allocation7 + $0x608] sm:$0xff]
    %v2209 = vld [vmem:[#allocation7 + $0x610] sm:$0xff]
    %v2210 = vld [vmem:[#allocation7 + $0x618] sm:$0xff]
    %v2211 = vld [vmem:[#allocation7 + $0x620] sm:$0xff]
    %v2212 = vld [vmem:[#allocation7 + $0x628] sm:$0xff]
    %v2213 = vld [vmem:[#allocation7 + $0x630] sm:$0xff]
    %v2214 = vld [vmem:[#allocation7 + $0x638] sm:$0xff]
    %v2215 = vld [vmem:[#allocation7 + $0x640] sm:$0xff]
    %v2216 = vld [vmem:[#allocation7 + $0x648] sm:$0xff]
    %v2217 = vld [vmem:[#allocation7 + $0x650] sm:$0xff]
    %v2218 = vld [vmem:[#allocation7 + $0x658] sm:$0xff]
    %v2219 = vld [vmem:[#allocation7 + $0x660] sm:$0xff]
    %v2220 = vld [vmem:[#allocation7 + $0x668] sm:$0xff]
    %v2221 = vld [vmem:[#allocation7 + $0x670] sm:$0xff]
    %v2222 = vld [vmem:[#allocation7 + $0x678] sm:$0xff]
    %v2223 = vld [vmem:[#allocation7 + $0x680] sm:$0xff]
    %v2224 = vld [vmem:[#allocation7 + $0x688] sm:$0xff]
    %v2225 = vld [vmem:[#allocation7 + $0x690] sm:$0xff]
    %v2226 = vld [vmem:[#allocation7 + $0x698] sm:$0xff]
    %v2227 = vld [vmem:[#allocation7 + $0x6a0] sm:$0xff]
    %v2228 = vld [vmem:[#allocation7 + $0x6a8] sm:$0xff]
    %v2229 = vld [vmem:[#allocation7 + $0x6b0] sm:$0xff]
    %v2230 = vld [vmem:[#allocation7 + $0x6b8] sm:$0xff]
    %v2231 = vld [vmem:[#allocation7 + $0x6c0] sm:$0xff]
    %v2232 = vld [vmem:[#allocation7 + $0x6c8] sm:$0xff]
    %v2233 = vld [vmem:[#allocation7 + $0x6d0] sm:$0xff]
    %v2234 = vld [vmem:[#allocation7 + $0x6d8] sm:$0xff]
    %v2235 = vld [vmem:[#allocation7 + $0x6e0] sm:$0xff]
    %v2236 = vld [vmem:[#allocation7 + $0x6e8] sm:$0xff]
    %v2237 = vld [vmem:[#allocation7 + $0x6f0] sm:$0xff]
    %v2238 = vld [vmem:[#allocation7 + $0x6f8] sm:$0xff]
    %v2239 = vld [vmem:[%s8] sm:$0xff]
    %v2240 = vld [vmem:[%s8 + $0x8] sm:$0x3f]
    %v2243 = vlaneseq
    %v2244 = vshrl.u32 %v2243, 7
    %v2245 = vsub.s32 0, %v2244
    %v2246 = vrot.slane %v2239, %v2245
    %v2247 = vlaneseq
    %v2248 = vshrl.u32 %v2247, 7
    %v2249 = vsub.s32 1, %v2248
    %v2250 = vrot.slane %v2239, %v2249
    %v2251 = vlaneseq
    %v2252 = vshrl.u32 %v2251, 7
    %v2253 = vsub.s32 2, %v2252
    %v2254 = vrot.slane %v2239, %v2253
    %v2255 = vlaneseq
    %v2256 = vshrl.u32 %v2255, 7
    %v2257 = vsub.s32 3, %v2256
    %v2258 = vrot.slane %v2239, %v2257
    %v2259 = vlaneseq
    %v2260 = vshrl.u32 %v2259, 7
    %v2261 = vsub.s32 4, %v2260
    %v2262 = vrot.slane %v2239, %v2261
    %v2263 = vlaneseq
    %v2264 = vshrl.u32 %v2263, 7
    %v2265 = vsub.s32 5, %v2264
    %v2266 = vrot.slane %v2239, %v2265
    %v2267 = vlaneseq
    %v2268 = vshrl.u32 %v2267, 7
    %v2269 = vsub.s32 6, %v2268
    %v2270 = vrot.slane %v2239, %v2269
    %v2271 = vlaneseq
    %v2272 = vshrl.u32 %v2271, 7
    %v2273 = vsub.s32 7, %v2272
    %v2274 = vrot.slane %v2239, %v2273
    %v2275 = vlaneseq
    %v2276 = vshrl.u32 %v2275, 7
    %v2277 = vsub.s32 0, %v2276
    %v2278 = vrot.slane %v2240, %v2277
    %v2279 = vlaneseq
    %v2280 = vshrl.u32 %v2279, 7
    %v2281 = vsub.s32 1, %v2280
    %v2282 = vrot.slane %v2240, %v2281
    %v2283 = vlaneseq
    %v2284 = vshrl.u32 %v2283, 7
    %v2285 = vsub.s32 2, %v2284
    %v2286 = vrot.slane %v2240, %v2285
    %v2287 = vlaneseq
    %v2288 = vshrl.u32 %v2287, 7
    %v2289 = vsub.s32 3, %v2288
    %v2290 = vrot.slane %v2240, %v2289
    %v2291 = vlaneseq
    %v2292 = vshrl.u32 %v2291, 7
    %v2293 = vsub.s32 4, %v2292
    %v2294 = vrot.slane %v2240, %v2293
    %v2295 = vlaneseq
    %v2296 = vshrl.u32 %v2295, 7
    %v2297 = vsub.s32 5, %v2296
    %v2298 = vrot.slane %v2240, %v2297
    %v2537 = vunpack.c.l.b16 %v2015
    %v2538 = vunpack.c.h.b16 %v2015
    %v2539 = vunpack.c.l.b16 %v2016
    %v2540 = vunpack.c.h.b16 %v2016
    %v2541 = vunpack.c.l.b16 %v2017
    %v2542 = vunpack.c.h.b16 %v2017
    %v2543 = vunpack.c.l.b16 %v2018
    %v2544 = vunpack.c.h.b16 %v2018
    %v2545 = vunpack.c.l.b16 %v2019
    %v2546 = vunpack.c.h.b16 %v2019
    %v2547 = vunpack.c.l.b16 %v2020
    %v2548 = vunpack.c.h.b16 %v2020
    %v2549 = vunpack.c.l.b16 %v2021
    %v2550 = vunpack.c.h.b16 %v2021
    %v2551 = vunpack.c.l.b16 %v2022
    %v2552 = vunpack.c.h.b16 %v2022
    %v2553 = vunpack.c.l.b16 %v2023
    %v2554 = vunpack.c.h.b16 %v2023
    %v2555 = vunpack.c.l.b16 %v2024
    %v2556 = vunpack.c.h.b16 %v2024
    %v2557 = vunpack.c.l.b16 %v2025
    %v2558 = vunpack.c.h.b16 %v2025
    %v2559 = vunpack.c.l.b16 %v2026
    %v2560 = vunpack.c.h.b16 %v2026
    %v2561 = vunpack.c.l.b16 %v2027
    %v2562 = vunpack.c.h.b16 %v2027
    %v2563 = vunpack.c.l.b16 %v2028
    %v2564 = vunpack.c.h.b16 %v2028
    %v2565 = vunpack.c.l.b16 %v2029
    %v2566 = vunpack.c.h.b16 %v2029
    %v2567 = vunpack.c.l.b16 %v2030
    %v2568 = vunpack.c.h.b16 %v2030
    %v2569 = vunpack.c.l.b16 %v2031
    %v2570 = vunpack.c.h.b16 %v2031
    %v2571 = vunpack.c.l.b16 %v2032
    %v2572 = vunpack.c.h.b16 %v2032
    %v2573 = vunpack.c.l.b16 %v2033
    %v2574 = vunpack.c.h.b16 %v2033
    %v2575 = vunpack.c.l.b16 %v2034
    %v2576 = vunpack.c.h.b16 %v2034
    %v2577 = vunpack.c.l.b16 %v2035
    %v2578 = vunpack.c.h.b16 %v2035
    %v2579 = vunpack.c.l.b16 %v2036
    %v2580 = vunpack.c.h.b16 %v2036
    %v2581 = vunpack.c.l.b16 %v2037
    %v2582 = vunpack.c.h.b16 %v2037
    %v2583 = vunpack.c.l.b16 %v2038
    %v2584 = vunpack.c.h.b16 %v2038
    %v2585 = vunpack.c.l.b16 %v2039
    %v2586 = vunpack.c.h.b16 %v2039
    %v2587 = vunpack.c.l.b16 %v2040
    %v2588 = vunpack.c.h.b16 %v2040
    %v2589 = vunpack.c.l.b16 %v2041
    %v2590 = vunpack.c.h.b16 %v2041
    %v2591 = vunpack.c.l.b16 %v2042
    %v2592 = vunpack.c.h.b16 %v2042
    %v2593 = vunpack.c.l.b16 %v2043
    %v2594 = vunpack.c.h.b16 %v2043
    %v2595 = vunpack.c.l.b16 %v2044
    %v2596 = vunpack.c.h.b16 %v2044
    %v2597 = vunpack.c.l.b16 %v2045
    %v2598 = vunpack.c.h.b16 %v2045
    %v2599 = vunpack.c.l.b16 %v2046
    %v2600 = vunpack.c.h.b16 %v2046
    %v2601 = vunpack.c.l.b16 %v2047
    %v2602 = vunpack.c.h.b16 %v2047
    %v2603 = vunpack.c.l.b16 %v2048
    %v2604 = vunpack.c.h.b16 %v2048
    %v2605 = vunpack.c.l.b16 %v2049
    %v2606 = vunpack.c.h.b16 %v2049
    %v2607 = vunpack.c.l.b16 %v2050
    %v2608 = vunpack.c.h.b16 %v2050
    %v2609 = vunpack.c.l.b16 %v2051
    %v2610 = vunpack.c.h.b16 %v2051
    %v2611 = vunpack.c.l.b16 %v2052
    %v2612 = vunpack.c.h.b16 %v2052
    %v2613 = vunpack.c.l.b16 %v2053
    %v2614 = vunpack.c.h.b16 %v2053
    %v2615 = vunpack.c.l.b16 %v2054
    %v2616 = vunpack.c.h.b16 %v2054
    %v2617 = vunpack.c.l.b16 %v2055
    %v2618 = vunpack.c.h.b16 %v2055
    %v2619 = vunpack.c.l.b16 %v2056
    %v2620 = vunpack.c.h.b16 %v2056
    %v2621 = vunpack.c.l.b16 %v2057
    %v2622 = vunpack.c.h.b16 %v2057
    %v2623 = vunpack.c.l.b16 %v2058
    %v2624 = vunpack.c.h.b16 %v2058
    %v2625 = vunpack.c.l.b16 %v2059
    %v2626 = vunpack.c.h.b16 %v2059
    %v2627 = vunpack.c.l.b16 %v2060
    %v2628 = vunpack.c.h.b16 %v2060
    %v2629 = vunpack.c.l.b16 %v2061
    %v2630 = vunpack.c.h.b16 %v2061
    %v2631 = vunpack.c.l.b16 %v2062
    %v2632 = vunpack.c.h.b16 %v2062
    %v2633 = vunpack.c.l.b16 %v2063
    %v2634 = vunpack.c.h.b16 %v2063
    %v2635 = vunpack.c.l.b16 %v2064
    %v2636 = vunpack.c.h.b16 %v2064
    %v2637 = vunpack.c.l.b16 %v2065
    %v2638 = vunpack.c.h.b16 %v2065
    %v2639 = vunpack.c.l.b16 %v2066
    %v2640 = vunpack.c.h.b16 %v2066
    %v2641 = vunpack.c.l.b16 %v2067
    %v2642 = vunpack.c.h.b16 %v2067
    %v2643 = vunpack.c.l.b16 %v2068
    %v2644 = vunpack.c.h.b16 %v2068
    %v2645 = vunpack.c.l.b16 %v2069
    %v2646 = vunpack.c.h.b16 %v2069
    %v2647 = vunpack.c.l.b16 %v2070
    %v2648 = vunpack.c.h.b16 %v2070
    %v2649 = vunpack.c.l.b16 %v2071
    %v2650 = vunpack.c.h.b16 %v2071
    %v2651 = vunpack.c.l.b16 %v2072
    %v2652 = vunpack.c.h.b16 %v2072
    %v2653 = vunpack.c.l.b16 %v2073
    %v2654 = vunpack.c.h.b16 %v2073
    %v2655 = vunpack.c.l.b16 %v2074
    %v2656 = vunpack.c.h.b16 %v2074
    %v2657 = vunpack.c.l.b16 %v2075
    %v2658 = vunpack.c.h.b16 %v2075
    %v2659 = vunpack.c.l.b16 %v2076
    %v2660 = vunpack.c.h.b16 %v2076
    %v2661 = vunpack.c.l.b16 %v2077
    %v2662 = vunpack.c.h.b16 %v2077
    %v2663 = vunpack.c.l.b16 %v2078
    %v2664 = vunpack.c.h.b16 %v2078
    %v2665 = vunpack.c.l.b16 %v2079
    %v2666 = vunpack.c.h.b16 %v2079
    %v2667 = vunpack.c.l.b16 %v2080
    %v2668 = vunpack.c.h.b16 %v2080
    %v2669 = vunpack.c.l.b16 %v2081
    %v2670 = vunpack.c.h.b16 %v2081
    %v2671 = vunpack.c.l.b16 %v2082
    %v2672 = vunpack.c.h.b16 %v2082
    %v2673 = vunpack.c.l.b16 %v2083
    %v2674 = vunpack.c.h.b16 %v2083
    %v2675 = vunpack.c.l.b16 %v2084
    %v2676 = vunpack.c.h.b16 %v2084
    %v2677 = vunpack.c.l.b16 %v2085
    %v2678 = vunpack.c.h.b16 %v2085
    %v2679 = vunpack.c.l.b16 %v2086
    %v2680 = vunpack.c.h.b16 %v2086
    %v2681 = vunpack.c.l.b16 %v2087
    %v2682 = vunpack.c.h.b16 %v2087
    %v2683 = vunpack.c.l.b16 %v2088
    %v2684 = vunpack.c.h.b16 %v2088
    %v2685 = vunpack.c.l.b16 %v2089
    %v2686 = vunpack.c.h.b16 %v2089
    %v2687 = vunpack.c.l.b16 %v2090
    %v2688 = vunpack.c.h.b16 %v2090
    %v2689 = vunpack.c.l.b16 %v2091
    %v2690 = vunpack.c.h.b16 %v2091
    %v2691 = vunpack.c.l.b16 %v2092
    %v2692 = vunpack.c.h.b16 %v2092
    %v2693 = vunpack.c.l.b16 %v2093
    %v2694 = vunpack.c.h.b16 %v2093
    %v2695 = vunpack.c.l.b16 %v2094
    %v2696 = vunpack.c.h.b16 %v2094
    %v2697 = vunpack.c.l.b16 %v2095
    %v2698 = vunpack.c.h.b16 %v2095
    %v2699 = vunpack.c.l.b16 %v2096
    %v2700 = vunpack.c.h.b16 %v2096
    %v2701 = vunpack.c.l.b16 %v2097
    %v2702 = vunpack.c.h.b16 %v2097
    %v2703 = vunpack.c.l.b16 %v2098
    %v2704 = vunpack.c.h.b16 %v2098
    %v2705 = vunpack.c.l.b16 %v2099
    %v2706 = vunpack.c.h.b16 %v2099
    %v2707 = vunpack.c.l.b16 %v2100
    %v2708 = vunpack.c.h.b16 %v2100
    %v2709 = vunpack.c.l.b16 %v2101
    %v2710 = vunpack.c.h.b16 %v2101
    %v2711 = vunpack.c.l.b16 %v2102
    %v2712 = vunpack.c.h.b16 %v2102
    %v2713 = vunpack.c.l.b16 %v2103
    %v2714 = vunpack.c.h.b16 %v2103
    %v2715 = vunpack.c.l.b16 %v2104
    %v2716 = vunpack.c.h.b16 %v2104
    %v2717 = vunpack.c.l.b16 %v2105
    %v2718 = vunpack.c.h.b16 %v2105
    %v2719 = vunpack.c.l.b16 %v2106
    %v2720 = vunpack.c.h.b16 %v2106
    %v2721 = vunpack.c.l.b16 %v2107
    %v2722 = vunpack.c.h.b16 %v2107
    %v2723 = vunpack.c.l.b16 %v2108
    %v2724 = vunpack.c.h.b16 %v2108
    %v2725 = vunpack.c.l.b16 %v2109
    %v2726 = vunpack.c.h.b16 %v2109
    %v2727 = vunpack.c.l.b16 %v2110
    %v2728 = vunpack.c.h.b16 %v2110
    %v2729 = vunpack.c.l.b16 %v2111
    %v2730 = vunpack.c.h.b16 %v2111
    %v2731 = vunpack.c.l.b16 %v2112
    %v2732 = vunpack.c.h.b16 %v2112
    %v2733 = vunpack.c.l.b16 %v2113
    %v2734 = vunpack.c.h.b16 %v2113
    %v2735 = vunpack.c.l.b16 %v2114
    %v2736 = vunpack.c.h.b16 %v2114
    %v2737 = vunpack.c.l.b16 %v2115
    %v2738 = vunpack.c.h.b16 %v2115
    %v2739 = vunpack.c.l.b16 %v2116
    %v2740 = vunpack.c.h.b16 %v2116
    %v2741 = vunpack.c.l.b16 %v2117
    %v2742 = vunpack.c.h.b16 %v2117
    %v2743 = vunpack.c.l.b16 %v2118
    %v2744 = vunpack.c.h.b16 %v2118
    %v2745 = vunpack.c.l.b16 %v2119
    %v2746 = vunpack.c.h.b16 %v2119
    %v2747 = vunpack.c.l.b16 %v2120
    %v2748 = vunpack.c.h.b16 %v2120
    %v2749 = vunpack.c.l.b16 %v2121
    %v2750 = vunpack.c.h.b16 %v2121
    %v2751 = vunpack.c.l.b16 %v2122
    %v2752 = vunpack.c.h.b16 %v2122
    %v2753 = vunpack.c.l.b16 %v2123
    %v2754 = vunpack.c.h.b16 %v2123
    %v2755 = vunpack.c.l.b16 %v2124
    %v2756 = vunpack.c.h.b16 %v2124
    %v2757 = vunpack.c.l.b16 %v2125
    %v2758 = vunpack.c.h.b16 %v2125
    %v2759 = vunpack.c.l.b16 %v2126
    %v2760 = vunpack.c.h.b16 %v2126
    %v2761 = vunpack.c.l.b16 %v2127
    %v2762 = vunpack.c.h.b16 %v2127
    %v2763 = vunpack.c.l.b16 %v2128
    %v2764 = vunpack.c.h.b16 %v2128
    %v2765 = vunpack.c.l.b16 %v2129
    %v2766 = vunpack.c.h.b16 %v2129
    %v2767 = vunpack.c.l.b16 %v2130
    %v2768 = vunpack.c.h.b16 %v2130
    %v2769 = vunpack.c.l.b16 %v2131
    %v2770 = vunpack.c.h.b16 %v2131
    %v2771 = vunpack.c.l.b16 %v2132
    %v2772 = vunpack.c.h.b16 %v2132
    %v2773 = vunpack.c.l.b16 %v2133
    %v2774 = vunpack.c.h.b16 %v2133
    %v2775 = vunpack.c.l.b16 %v2134
    %v2776 = vunpack.c.h.b16 %v2134
    %v2777 = vunpack.c.l.b16 %v2135
    %v2778 = vunpack.c.h.b16 %v2135
    %v2779 = vunpack.c.l.b16 %v2136
    %v2780 = vunpack.c.h.b16 %v2136
    %v2781 = vunpack.c.l.b16 %v2137
    %v2782 = vunpack.c.h.b16 %v2137
    %v2783 = vunpack.c.l.b16 %v2138
    %v2784 = vunpack.c.h.b16 %v2138
    %v2785 = vunpack.c.l.b16 %v2139
    %v2786 = vunpack.c.h.b16 %v2139
    %v2787 = vunpack.c.l.b16 %v2140
    %v2788 = vunpack.c.h.b16 %v2140
    %v2789 = vunpack.c.l.b16 %v2141
    %v2790 = vunpack.c.h.b16 %v2141
    %v2791 = vunpack.c.l.b16 %v2142
    %v2792 = vunpack.c.h.b16 %v2142
    %v2793 = vunpack.c.l.b16 %v2143
    %v2794 = vunpack.c.h.b16 %v2143
    %v2795 = vunpack.c.l.b16 %v2144
    %v2796 = vunpack.c.h.b16 %v2144
    %v2797 = vunpack.c.l.b16 %v2145
    %v2798 = vunpack.c.h.b16 %v2145
    %v2799 = vunpack.c.l.b16 %v2146
    %v2800 = vunpack.c.h.b16 %v2146
    %v2801 = vunpack.c.l.b16 %v2147
    %v2802 = vunpack.c.h.b16 %v2147
    %v2803 = vunpack.c.l.b16 %v2148
    %v2804 = vunpack.c.h.b16 %v2148
    %v2805 = vunpack.c.l.b16 %v2149
    %v2806 = vunpack.c.h.b16 %v2149
    %v2807 = vunpack.c.l.b16 %v2150
    %v2808 = vunpack.c.h.b16 %v2150
    %v2809 = vunpack.c.l.b16 %v2151
    %v2810 = vunpack.c.h.b16 %v2151
    %v2811 = vunpack.c.l.b16 %v2152
    %v2812 = vunpack.c.h.b16 %v2152
    %v2813 = vunpack.c.l.b16 %v2153
    %v2814 = vunpack.c.h.b16 %v2153
    %v2815 = vunpack.c.l.b16 %v2154
    %v2816 = vunpack.c.h.b16 %v2154
    %v2817 = vunpack.c.l.b16 %v2155
    %v2818 = vunpack.c.h.b16 %v2155
    %v2819 = vunpack.c.l.b16 %v2156
    %v2820 = vunpack.c.h.b16 %v2156
    %v2821 = vunpack.c.l.b16 %v2157
    %v2822 = vunpack.c.h.b16 %v2157
    %v2823 = vunpack.c.l.b16 %v2158
    %v2824 = vunpack.c.h.b16 %v2158
    %v2825 = vunpack.c.l.b16 %v2159
    %v2826 = vunpack.c.h.b16 %v2159
    %v2827 = vunpack.c.l.b16 %v2160
    %v2828 = vunpack.c.h.b16 %v2160
    %v2829 = vunpack.c.l.b16 %v2161
    %v2830 = vunpack.c.h.b16 %v2161
    %v2831 = vunpack.c.l.b16 %v2162
    %v2832 = vunpack.c.h.b16 %v2162
    %v2833 = vunpack.c.l.b16 %v2163
    %v2834 = vunpack.c.h.b16 %v2163
    %v2835 = vunpack.c.l.b16 %v2164
    %v2836 = vunpack.c.h.b16 %v2164
    %v2837 = vunpack.c.l.b16 %v2165
    %v2838 = vunpack.c.h.b16 %v2165
    %v2839 = vunpack.c.l.b16 %v2166
    %v2840 = vunpack.c.h.b16 %v2166
    %v2841 = vunpack.c.l.b16 %v2167
    %v2842 = vunpack.c.h.b16 %v2167
    %v2843 = vunpack.c.l.b16 %v2168
    %v2844 = vunpack.c.h.b16 %v2168
    %v2845 = vunpack.c.l.b16 %v2169
    %v2846 = vunpack.c.h.b16 %v2169
    %v2847 = vunpack.c.l.b16 %v2170
    %v2848 = vunpack.c.h.b16 %v2170
    %v2849 = vunpack.c.l.b16 %v2171
    %v2850 = vunpack.c.h.b16 %v2171
    %v2851 = vunpack.c.l.b16 %v2172
    %v2852 = vunpack.c.h.b16 %v2172
    %v2853 = vunpack.c.l.b16 %v2173
    %v2854 = vunpack.c.h.b16 %v2173
    %v2855 = vunpack.c.l.b16 %v2174
    %v2856 = vunpack.c.h.b16 %v2174
    %v2857 = vunpack.c.l.b16 %v2175
    %v2858 = vunpack.c.h.b16 %v2175
    %v2859 = vunpack.c.l.b16 %v2176
    %v2860 = vunpack.c.h.b16 %v2176
    %v2861 = vunpack.c.l.b16 %v2177
    %v2862 = vunpack.c.h.b16 %v2177
    %v2863 = vunpack.c.l.b16 %v2178
    %v2864 = vunpack.c.h.b16 %v2178
    %v2865 = vunpack.c.l.b16 %v2179
    %v2866 = vunpack.c.h.b16 %v2179
    %v2867 = vunpack.c.l.b16 %v2180
    %v2868 = vunpack.c.h.b16 %v2180
    %v2869 = vunpack.c.l.b16 %v2181
    %v2870 = vunpack.c.h.b16 %v2181
    %v2871 = vunpack.c.l.b16 %v2182
    %v2872 = vunpack.c.h.b16 %v2182
    %v2873 = vunpack.c.l.b16 %v2183
    %v2874 = vunpack.c.h.b16 %v2183
    %v2875 = vunpack.c.l.b16 %v2184
    %v2876 = vunpack.c.h.b16 %v2184
    %v2877 = vunpack.c.l.b16 %v2185
    %v2878 = vunpack.c.h.b16 %v2185
    %v2879 = vunpack.c.l.b16 %v2186
    %v2880 = vunpack.c.h.b16 %v2186
    %v2881 = vunpack.c.l.b16 %v2187
    %v2882 = vunpack.c.h.b16 %v2187
    %v2883 = vunpack.c.l.b16 %v2188
    %v2884 = vunpack.c.h.b16 %v2188
    %v2885 = vunpack.c.l.b16 %v2189
    %v2886 = vunpack.c.h.b16 %v2189
    %v2887 = vunpack.c.l.b16 %v2190
    %v2888 = vunpack.c.h.b16 %v2190
    %v2889 = vunpack.c.l.b16 %v2191
    %v2890 = vunpack.c.h.b16 %v2191
    %v2891 = vunpack.c.l.b16 %v2192
    %v2892 = vunpack.c.h.b16 %v2192
    %v2893 = vunpack.c.l.b16 %v2193
    %v2894 = vunpack.c.h.b16 %v2193
    %v2895 = vunpack.c.l.b16 %v2194
    %v2896 = vunpack.c.h.b16 %v2194
    %v2897 = vunpack.c.l.b16 %v2195
    %v2898 = vunpack.c.h.b16 %v2195
    %v2899 = vunpack.c.l.b16 %v2196
    %v2900 = vunpack.c.h.b16 %v2196
    %v2901 = vunpack.c.l.b16 %v2197
    %v2902 = vunpack.c.h.b16 %v2197
    %v2903 = vunpack.c.l.b16 %v2198
    %v2904 = vunpack.c.h.b16 %v2198
    %v2905 = vunpack.c.l.b16 %v2199
    %v2906 = vunpack.c.h.b16 %v2199
    %v2907 = vunpack.c.l.b16 %v2200
    %v2908 = vunpack.c.h.b16 %v2200
    %v2909 = vunpack.c.l.b16 %v2201
    %v2910 = vunpack.c.h.b16 %v2201
    %v2911 = vunpack.c.l.b16 %v2202
    %v2912 = vunpack.c.h.b16 %v2202
    %v2913 = vunpack.c.l.b16 %v2203
    %v2914 = vunpack.c.h.b16 %v2203
    %v2915 = vunpack.c.l.b16 %v2204
    %v2916 = vunpack.c.h.b16 %v2204
    %v2917 = vunpack.c.l.b16 %v2205
    %v2918 = vunpack.c.h.b16 %v2205
    %v2919 = vunpack.c.l.b16 %v2206
    %v2920 = vunpack.c.h.b16 %v2206
    %v2921 = vunpack.c.l.b16 %v2207
    %v2922 = vunpack.c.h.b16 %v2207
    %v2923 = vunpack.c.l.b16 %v2208
    %v2924 = vunpack.c.h.b16 %v2208
    %v2925 = vunpack.c.l.b16 %v2209
    %v2926 = vunpack.c.h.b16 %v2209
    %v2927 = vunpack.c.l.b16 %v2210
    %v2928 = vunpack.c.h.b16 %v2210
    %v2929 = vunpack.c.l.b16 %v2211
    %v2930 = vunpack.c.h.b16 %v2211
    %v2931 = vunpack.c.l.b16 %v2212
    %v2932 = vunpack.c.h.b16 %v2212
    %v2933 = vunpack.c.l.b16 %v2213
    %v2934 = vunpack.c.h.b16 %v2213
    %v2935 = vunpack.c.l.b16 %v2214
    %v2936 = vunpack.c.h.b16 %v2214
    %v2937 = vunpack.c.l.b16 %v2215
    %v2938 = vunpack.c.h.b16 %v2215
    %v2939 = vunpack.c.l.b16 %v2216
    %v2940 = vunpack.c.h.b16 %v2216
    %v2941 = vunpack.c.l.b16 %v2217
    %v2942 = vunpack.c.h.b16 %v2217
    %v2943 = vunpack.c.l.b16 %v2218
    %v2944 = vunpack.c.h.b16 %v2218
    %v2945 = vunpack.c.l.b16 %v2219
    %v2946 = vunpack.c.h.b16 %v2219
    %v2947 = vunpack.c.l.b16 %v2220
    %v2948 = vunpack.c.h.b16 %v2220
    %v2949 = vunpack.c.l.b16 %v2221
    %v2950 = vunpack.c.h.b16 %v2221
    %v2951 = vunpack.c.l.b16 %v2222
    %v2952 = vunpack.c.h.b16 %v2222
    %v2953 = vunpack.c.l.b16 %v2223
    %v2954 = vunpack.c.h.b16 %v2223
    %v2955 = vunpack.c.l.b16 %v2224
    %v2956 = vunpack.c.h.b16 %v2224
    %v2957 = vunpack.c.l.b16 %v2225
    %v2958 = vunpack.c.h.b16 %v2225
    %v2959 = vunpack.c.l.b16 %v2226
    %v2960 = vunpack.c.h.b16 %v2226
    %v2961 = vunpack.c.l.b16 %v2227
    %v2962 = vunpack.c.h.b16 %v2227
    %v2963 = vunpack.c.l.b16 %v2228
    %v2964 = vunpack.c.h.b16 %v2228
    %v2965 = vunpack.c.l.b16 %v2229
    %v2966 = vunpack.c.h.b16 %v2229
    %v2967 = vunpack.c.l.b16 %v2230
    %v2968 = vunpack.c.h.b16 %v2230
    %v2969 = vunpack.c.l.b16 %v2231
    %v2970 = vunpack.c.h.b16 %v2231
    %v2971 = vunpack.c.l.b16 %v2232
    %v2972 = vunpack.c.h.b16 %v2232
    %v2973 = vunpack.c.l.b16 %v2233
    %v2974 = vunpack.c.h.b16 %v2233
    %v2975 = vunpack.c.l.b16 %v2234
    %v2976 = vunpack.c.h.b16 %v2234
    %v2977 = vunpack.c.l.b16 %v2235
    %v2978 = vunpack.c.h.b16 %v2235
    %v2979 = vunpack.c.l.b16 %v2236
    %v2980 = vunpack.c.h.b16 %v2236
    %v2981 = vunpack.c.l.b16 %v2237
    %v2982 = vunpack.c.h.b16 %v2237
    %v2983 = vunpack.c.l.b16 %v2238
    %v2984 = vunpack.c.h.b16 %v2238
    %v2985 = vpack.c.b16 %v2551, %v2537
    %v2986 = vpack.c.b16 %v2552, %v2538
    %v2987 = vpack.c.b16 %v2553, %v2539
    %v2988 = vpack.c.b16 %v2554, %v2540
    %v2989 = vpack.c.b16 %v2555, %v2541
    %v2990 = vpack.c.b16 %v2556, %v2542
    %v2991 = vpack.c.b16 %v2557, %v2543
    %v2992 = vpack.c.b16 %v2558, %v2544
    %v2993 = vpack.c.b16 %v2559, %v2545
    %v2994 = vpack.c.b16 %v2560, %v2546
    %v2995 = vpack.c.b16 %v2561, %v2547
    %v2996 = vpack.c.b16 %v2562, %v2548
    %v2997 = vpack.c.b16 %v2563, %v2549
    %v2998 = vpack.c.b16 %v2564, %v2550
    %v2999 = vpack.c.b16 %v2579, %v2565
    %v3000 = vpack.c.b16 %v2580, %v2566
    %v3001 = vpack.c.b16 %v2581, %v2567
    %v3002 = vpack.c.b16 %v2582, %v2568
    %v3003 = vpack.c.b16 %v2583, %v2569
    %v3004 = vpack.c.b16 %v2584, %v2570
    %v3005 = vpack.c.b16 %v2585, %v2571
    %v3006 = vpack.c.b16 %v2586, %v2572
    %v3007 = vpack.c.b16 %v2587, %v2573
    %v3008 = vpack.c.b16 %v2588, %v2574
    %v3009 = vpack.c.b16 %v2589, %v2575
    %v3010 = vpack.c.b16 %v2590, %v2576
    %v3011 = vpack.c.b16 %v2591, %v2577
    %v3012 = vpack.c.b16 %v2592, %v2578
    %v3013 = vpack.c.b16 %v2607, %v2593
    %v3014 = vpack.c.b16 %v2608, %v2594
    %v3015 = vpack.c.b16 %v2609, %v2595
    %v3016 = vpack.c.b16 %v2610, %v2596
    %v3017 = vpack.c.b16 %v2611, %v2597
    %v3018 = vpack.c.b16 %v2612, %v2598
    %v3019 = vpack.c.b16 %v2613, %v2599
    %v3020 = vpack.c.b16 %v2614, %v2600
    %v3021 = vpack.c.b16 %v2615, %v2601
    %v3022 = vpack.c.b16 %v2616, %v2602
    %v3023 = vpack.c.b16 %v2617, %v2603
    %v3024 = vpack.c.b16 %v2618, %v2604
    %v3025 = vpack.c.b16 %v2619, %v2605
    %v3026 = vpack.c.b16 %v2620, %v2606
    %v3027 = vpack.c.b16 %v2635, %v2621
    %v3028 = vpack.c.b16 %v2636, %v2622
    %v3029 = vpack.c.b16 %v2637, %v2623
    %v3030 = vpack.c.b16 %v2638, %v2624
    %v3031 = vpack.c.b16 %v2639, %v2625
    %v3032 = vpack.c.b16 %v2640, %v2626
    %v3033 = vpack.c.b16 %v2641, %v2627
    %v3034 = vpack.c.b16 %v2642, %v2628
    %v3035 = vpack.c.b16 %v2643, %v2629
    %v3036 = vpack.c.b16 %v2644, %v2630
    %v3037 = vpack.c.b16 %v2645, %v2631
    %v3038 = vpack.c.b16 %v2646, %v2632
    %v3039 = vpack.c.b16 %v2647, %v2633
    %v3040 = vpack.c.b16 %v2648, %v2634
    %v3041 = vpack.c.b16 %v2663, %v2649
    %v3042 = vpack.c.b16 %v2664, %v2650
    %v3043 = vpack.c.b16 %v2665, %v2651
    %v3044 = vpack.c.b16 %v2666, %v2652
    %v3045 = vpack.c.b16 %v2667, %v2653
    %v3046 = vpack.c.b16 %v2668, %v2654
    %v3047 = vpack.c.b16 %v2669, %v2655
    %v3048 = vpack.c.b16 %v2670, %v2656
    %v3049 = vpack.c.b16 %v2671, %v2657
    %v3050 = vpack.c.b16 %v2672, %v2658
    %v3051 = vpack.c.b16 %v2673, %v2659
    %v3052 = vpack.c.b16 %v2674, %v2660
    %v3053 = vpack.c.b16 %v2675, %v2661
    %v3054 = vpack.c.b16 %v2676, %v2662
    %v3055 = vpack.c.b16 %v2691, %v2677
    %v3056 = vpack.c.b16 %v2692, %v2678
    %v3057 = vpack.c.b16 %v2693, %v2679
    %v3058 = vpack.c.b16 %v2694, %v2680
    %v3059 = vpack.c.b16 %v2695, %v2681
    %v3060 = vpack.c.b16 %v2696, %v2682
    %v3061 = vpack.c.b16 %v2697, %v2683
    %v3062 = vpack.c.b16 %v2698, %v2684
    %v3063 = vpack.c.b16 %v2699, %v2685
    %v3064 = vpack.c.b16 %v2700, %v2686
    %v3065 = vpack.c.b16 %v2701, %v2687
    %v3066 = vpack.c.b16 %v2702, %v2688
    %v3067 = vpack.c.b16 %v2703, %v2689
    %v3068 = vpack.c.b16 %v2704, %v2690
    %v3069 = vpack.c.b16 %v2719, %v2705
    %v3070 = vpack.c.b16 %v2720, %v2706
    %v3071 = vpack.c.b16 %v2721, %v2707
    %v3072 = vpack.c.b16 %v2722, %v2708
    %v3073 = vpack.c.b16 %v2723, %v2709
    %v3074 = vpack.c.b16 %v2724, %v2710
    %v3075 = vpack.c.b16 %v2725, %v2711
    %v3076 = vpack.c.b16 %v2726, %v2712
    %v3077 = vpack.c.b16 %v2727, %v2713
    %v3078 = vpack.c.b16 %v2728, %v2714
    %v3079 = vpack.c.b16 %v2729, %v2715
    %v3080 = vpack.c.b16 %v2730, %v2716
    %v3081 = vpack.c.b16 %v2731, %v2717
    %v3082 = vpack.c.b16 %v2732, %v2718
    %v3083 = vpack.c.b16 %v2747, %v2733
    %v3084 = vpack.c.b16 %v2748, %v2734
    %v3085 = vpack.c.b16 %v2749, %v2735
    %v3086 = vpack.c.b16 %v2750, %v2736
    %v3087 = vpack.c.b16 %v2751, %v2737
    %v3088 = vpack.c.b16 %v2752, %v2738
    %v3089 = vpack.c.b16 %v2753, %v2739
    %v3090 = vpack.c.b16 %v2754, %v2740
    %v3091 = vpack.c.b16 %v2755, %v2741
    %v3092 = vpack.c.b16 %v2756, %v2742
    %v3093 = vpack.c.b16 %v2757, %v2743
    %v3094 = vpack.c.b16 %v2758, %v2744
    %v3095 = vpack.c.b16 %v2759, %v2745
    %v3096 = vpack.c.b16 %v2760, %v2746
    %v3097 = vpack.c.b16 %v2775, %v2761
    %v3098 = vpack.c.b16 %v2776, %v2762
    %v3099 = vpack.c.b16 %v2777, %v2763
    %v3100 = vpack.c.b16 %v2778, %v2764
    %v3101 = vpack.c.b16 %v2779, %v2765
    %v3102 = vpack.c.b16 %v2780, %v2766
    %v3103 = vpack.c.b16 %v2781, %v2767
    %v3104 = vpack.c.b16 %v2782, %v2768
    %v3105 = vpack.c.b16 %v2783, %v2769
    %v3106 = vpack.c.b16 %v2784, %v2770
    %v3107 = vpack.c.b16 %v2785, %v2771
    %v3108 = vpack.c.b16 %v2786, %v2772
    %v3109 = vpack.c.b16 %v2787, %v2773
    %v3110 = vpack.c.b16 %v2788, %v2774
    %v3111 = vpack.c.b16 %v2803, %v2789
    %v3112 = vpack.c.b16 %v2804, %v2790
    %v3113 = vpack.c.b16 %v2805, %v2791
    %v3114 = vpack.c.b16 %v2806, %v2792
    %v3115 = vpack.c.b16 %v2807, %v2793
    %v3116 = vpack.c.b16 %v2808, %v2794
    %v3117 = vpack.c.b16 %v2809, %v2795
    %v3118 = vpack.c.b16 %v2810, %v2796
    %v3119 = vpack.c.b16 %v2811, %v2797
    %v3120 = vpack.c.b16 %v2812, %v2798
    %v3121 = vpack.c.b16 %v2813, %v2799
    %v3122 = vpack.c.b16 %v2814, %v2800
    %v3123 = vpack.c.b16 %v2815, %v2801
    %v3124 = vpack.c.b16 %v2816, %v2802
    %v3125 = vpack.c.b16 %v2831, %v2817
    %v3126 = vpack.c.b16 %v2832, %v2818
    %v3127 = vpack.c.b16 %v2833, %v2819
    %v3128 = vpack.c.b16 %v2834, %v2820
    %v3129 = vpack.c.b16 %v2835, %v2821
    %v3130 = vpack.c.b16 %v2836, %v2822
    %v3131 = vpack.c.b16 %v2837, %v2823
    %v3132 = vpack.c.b16 %v2838, %v2824
    %v3133 = vpack.c.b16 %v2839, %v2825
    %v3134 = vpack.c.b16 %v2840, %v2826
    %v3135 = vpack.c.b16 %v2841, %v2827
    %v3136 = vpack.c.b16 %v2842, %v2828
    %v3137 = vpack.c.b16 %v2843, %v2829
    %v3138 = vpack.c.b16 %v2844, %v2830
    %v3139 = vpack.c.b16 %v2859, %v2845
    %v3140 = vpack.c.b16 %v2860, %v2846
    %v3141 = vpack.c.b16 %v2861, %v2847
    %v3142 = vpack.c.b16 %v2862, %v2848
    %v3143 = vpack.c.b16 %v2863, %v2849
    %v3144 = vpack.c.b16 %v2864, %v2850
    %v3145 = vpack.c.b16 %v2865, %v2851
    %v3146 = vpack.c.b16 %v2866, %v2852
    %v3147 = vpack.c.b16 %v2867, %v2853
    %v3148 = vpack.c.b16 %v2868, %v2854
    %v3149 = vpack.c.b16 %v2869, %v2855
    %v3150 = vpack.c.b16 %v2870, %v2856
    %v3151 = vpack.c.b16 %v2871, %v2857
    %v3152 = vpack.c.b16 %v2872, %v2858
    %v3153 = vpack.c.b16 %v2887, %v2873
    %v3154 = vpack.c.b16 %v2888, %v2874
    %v3155 = vpack.c.b16 %v2889, %v2875
    %v3156 = vpack.c.b16 %v2890, %v2876
    %v3157 = vpack.c.b16 %v2891, %v2877
    %v3158 = vpack.c.b16 %v2892, %v2878
    %v3159 = vpack.c.b16 %v2893, %v2879
    %v3160 = vpack.c.b16 %v2894, %v2880
    %v3161 = vpack.c.b16 %v2895, %v2881
    %v3162 = vpack.c.b16 %v2896, %v2882
    %v3163 = vpack.c.b16 %v2897, %v2883
    %v3164 = vpack.c.b16 %v2898, %v2884
    %v3165 = vpack.c.b16 %v2899, %v2885
    %v3166 = vpack.c.b16 %v2900, %v2886
    %v3167 = vpack.c.b16 %v2915, %v2901
    %v3168 = vpack.c.b16 %v2916, %v2902
    %v3169 = vpack.c.b16 %v2917, %v2903
    %v3170 = vpack.c.b16 %v2918, %v2904
    %v3171 = vpack.c.b16 %v2919, %v2905
    %v3172 = vpack.c.b16 %v2920, %v2906
    %v3173 = vpack.c.b16 %v2921, %v2907
    %v3174 = vpack.c.b16 %v2922, %v2908
    %v3175 = vpack.c.b16 %v2923, %v2909
    %v3176 = vpack.c.b16 %v2924, %v2910
    %v3177 = vpack.c.b16 %v2925, %v2911
    %v3178 = vpack.c.b16 %v2926, %v2912
    %v3179 = vpack.c.b16 %v2927, %v2913
    %v3180 = vpack.c.b16 %v2928, %v2914
    %v3181 = vpack.c.b16 %v2943, %v2929
    %v3182 = vpack.c.b16 %v2944, %v2930
    %v3183 = vpack.c.b16 %v2945, %v2931
    %v3184 = vpack.c.b16 %v2946, %v2932
    %v3185 = vpack.c.b16 %v2947, %v2933
    %v3186 = vpack.c.b16 %v2948, %v2934
    %v3187 = vpack.c.b16 %v2949, %v2935
    %v3188 = vpack.c.b16 %v2950, %v2936
    %v3189 = vpack.c.b16 %v2951, %v2937
    %v3190 = vpack.c.b16 %v2952, %v2938
    %v3191 = vpack.c.b16 %v2953, %v2939
    %v3192 = vpack.c.b16 %v2954, %v2940
    %v3193 = vpack.c.b16 %v2955, %v2941
    %v3194 = vpack.c.b16 %v2956, %v2942
    %v3195 = vpack.c.b16 %v2971, %v2957
    %v3196 = vpack.c.b16 %v2972, %v2958
    %v3197 = vpack.c.b16 %v2973, %v2959
    %v3198 = vpack.c.b16 %v2974, %v2960
    %v3199 = vpack.c.b16 %v2975, %v2961
    %v3200 = vpack.c.b16 %v2976, %v2962
    %v3201 = vpack.c.b16 %v2977, %v2963
    %v3202 = vpack.c.b16 %v2978, %v2964
    %v3203 = vpack.c.b16 %v2979, %v2965
    %v3204 = vpack.c.b16 %v2980, %v2966
    %v3205 = vpack.c.b16 %v2981, %v2967
    %v3206 = vpack.c.b16 %v2982, %v2968
    %v3207 = vpack.c.b16 %v2983, %v2969
    %v3208 = vpack.c.b16 %v2984, %v2970
    %3433 = vmatprep.subr.bf16.mxu0 %v3084
    %3434 = vmatpush1.bf16.msra.mxu0 %v3083
    %3435 = vmatprep.subr.bf16.mxu0 %v3070
    %3436 = vmatpush1.bf16.msra.mxu0 %v3069
    %3437 = vmatprep.subr.bf16.mxu0 %v3056
    %3438 = vmatpush1.bf16.msra.mxu0 %v3055
    %3439 = vmatprep.subr.bf16.mxu0 %v3042
    %3440 = vmatpush1.bf16.msra.mxu0 %v3041
    %3441 = vmatprep.subr.bf16.mxu0 %v3028
    %3442 = vmatpush1.bf16.msra.mxu0 %v3027
    %3443 = vmatprep.subr.bf16.mxu0 %v3014
    %3444 = vmatpush1.bf16.msra.mxu0 %v3013
    %3445 = vmatprep.subr.bf16.mxu0 %v3000
    %3446 = vmatpush1.bf16.msra.mxu0 %v2999
    %3447 = vmatprep.subr.bf16.mxu0 %v2986
    %3448 = vmatpush1.bf16.msra.mxu0 %v2985
    %3449 = vmatprep.subr.bf16.mxu0 %v3196
    %3450 = vmatpush2.bf16.msra.mxu0 %v3195
    %3451 = vmatprep.subr.bf16.mxu0 %v3182
    %3452 = vmatpush2.bf16.msra.mxu0 %v3181
    %3453 = vmatprep.subr.bf16.mxu0 %v3168
    %3454 = vmatpush2.bf16.msra.mxu0 %v3167
    %3455 = vmatprep.subr.bf16.mxu0 %v3154
    %3456 = vmatpush2.bf16.msra.mxu0 %v3153
    %3457 = vmatprep.subr.bf16.mxu0 %v3140
    %3458 = vmatpush2.bf16.msra.mxu0 %v3139
    %3459 = vmatprep.subr.bf16.mxu0 %v3126
    %3460 = vmatpush2.bf16.msra.mxu0 %v3125
    %3461 = vmatprep.subr.bf16.mxu0 %v3112
    %3462 = vmatpush2.bf16.msra.mxu0 %v3111
    %3463 = vmatprep.subr.bf16.mxu0 %v3098
    %3464 = vmatpush2.bf16.msra.mxu0 %v3097
    %3465 = vmatprep.mubr.bf16.mxu0 %v2014
    %3466 = vmatmul.mubr.bf16.gmra.mxu0 %v2013
    %v3467 = vpop.f32.mrf.mxu0
    %v3468 = vadd.f32 %v2246, %v3467
    %v3469 = vpop.f32.mrf.mxu0
    %v3470 = vadd.f32 %v2250, %v3469
    %v3471 = vpop.f32.mrf.mxu0
    %v3472 = vpop.f32.mrf.mxu0
    %3473 = vdwg.mxu0
    %3474 = vmatprep.subr.bf16.mxu0 %v3086
    %3475 = vmatpush1.bf16.msra.mxu0 %v3085
    %3476 = vmatprep.subr.bf16.mxu0 %v3072
    %3477 = vmatpush1.bf16.msra.mxu0 %v3071
    %3478 = vmatprep.subr.bf16.mxu0 %v3058
    %3479 = vmatpush1.bf16.msra.mxu0 %v3057
    %3480 = vmatprep.subr.bf16.mxu0 %v3044
    %3481 = vmatpush1.bf16.msra.mxu0 %v3043
    %3482 = vmatprep.subr.bf16.mxu0 %v3030
    %3483 = vmatpush1.bf16.msra.mxu0 %v3029
    %3484 = vmatprep.subr.bf16.mxu0 %v3016
    %3485 = vmatpush1.bf16.msra.mxu0 %v3015
    %3486 = vmatprep.subr.bf16.mxu0 %v3002
    %3487 = vmatpush1.bf16.msra.mxu0 %v3001
    %3488 = vmatprep.subr.bf16.mxu0 %v2988
    %3489 = vmatpush1.bf16.msra.mxu0 %v2987
    %3490 = vmatprep.subr.bf16.mxu0 %v3198
    %3491 = vmatpush2.bf16.msra.mxu0 %v3197
    %3492 = vmatprep.subr.bf16.mxu0 %v3184
    %3493 = vmatpush2.bf16.msra.mxu0 %v3183
    %3494 = vmatprep.subr.bf16.mxu0 %v3170
    %3495 = vmatpush2.bf16.msra.mxu0 %v3169
    %3496 = vmatprep.subr.bf16.mxu0 %v3156
    %3497 = vmatpush2.bf16.msra.mxu0 %v3155
    %3498 = vmatprep.subr.bf16.mxu0 %v3142
    %3499 = vmatpush2.bf16.msra.mxu0 %v3141
    %3500 = vmatprep.subr.bf16.mxu0 %v3128
    %3501 = vmatpush2.bf16.msra.mxu0 %v3127
    %3502 = vmatprep.subr.bf16.mxu0 %v3114
    %3503 = vmatpush2.bf16.msra.mxu0 %v3113
    %3504 = vmatprep.subr.bf16.mxu0 %v3100
    %3505 = vmatpush2.bf16.msra.mxu0 %v3099
    %3506 = vmatprep.mubr.bf16.mxu0 %v2014
    %3507 = vmatmul.mubr.bf16.gmra.mxu0 %v2013
    %v3508 = vpop.f32.mrf.mxu0
    %v3509 = vadd.f32 %v2254, %v3508
    %v3510 = vpop.f32.mrf.mxu0
    %v3511 = vadd.f32 %v2258, %v3510
    %v3512 = vpop.f32.mrf.mxu0
    %v3513 = vpop.f32.mrf.mxu0
    %3514 = vdwg.mxu0
    %3515 = vmatprep.subr.bf16.mxu0 %v3088
    %3516 = vmatpush1.bf16.msra.mxu0 %v3087
    %3517 = vmatprep.subr.bf16.mxu0 %v3074
    %3518 = vmatpush1.bf16.msra.mxu0 %v3073
    %3519 = vmatprep.subr.bf16.mxu0 %v3060
    %3520 = vmatpush1.bf16.msra.mxu0 %v3059
    %3521 = vmatprep.subr.bf16.mxu0 %v3046
    %3522 = vmatpush1.bf16.msra.mxu0 %v3045
    %3523 = vmatprep.subr.bf16.mxu0 %v3032
    %3524 = vmatpush1.bf16.msra.mxu0 %v3031
    %3525 = vmatprep.subr.bf16.mxu0 %v3018
    %3526 = vmatpush1.bf16.msra.mxu0 %v3017
    %3527 = vmatprep.subr.bf16.mxu0 %v3004
    %3528 = vmatpush1.bf16.msra.mxu0 %v3003
    %3529 = vmatprep.subr.bf16.mxu0 %v2990
    %3530 = vmatpush1.bf16.msra.mxu0 %v2989
    %3531 = vmatprep.subr.bf16.mxu0 %v3200
    %3532 = vmatpush2.bf16.msra.mxu0 %v3199
    %3533 = vmatprep.subr.bf16.mxu0 %v3186
    %3534 = vmatpush2.bf16.msra.mxu0 %v3185
    %3535 = vmatprep.subr.bf16.mxu0 %v3172
    %3536 = vmatpush2.bf16.msra.mxu0 %v3171
    %3537 = vmatprep.subr.bf16.mxu0 %v3158
    %3538 = vmatpush2.bf16.msra.mxu0 %v3157
    %3539 = vmatprep.subr.bf16.mxu0 %v3144
    %3540 = vmatpush2.bf16.msra.mxu0 %v3143
    %3541 = vmatprep.subr.bf16.mxu0 %v3130
    %3542 = vmatpush2.bf16.msra.mxu0 %v3129
    %3543 = vmatprep.subr.bf16.mxu0 %v3116
    %3544 = vmatpush2.bf16.msra.mxu0 %v3115
    %3545 = vmatprep.subr.bf16.mxu0 %v3102
    %3546 = vmatpush2.bf16.msra.mxu0 %v3101
    %3547 = vmatprep.mubr.bf16.mxu0 %v2014
    %3548 = vmatmul.mubr.bf16.gmra.mxu0 %v2013
    %v3549 = vpop.f32.mrf.mxu0
    %v3550 = vadd.f32 %v2262, %v3549
    %v3551 = vpop.f32.mrf.mxu0
    %v3552 = vadd.f32 %v2266, %v3551
    %v3553 = vpop.f32.mrf.mxu0
    %v3554 = vpop.f32.mrf.mxu0
    %3555 = vdwg.mxu0
    %3556 = vmatprep.subr.bf16.mxu0 %v3090
    %3557 = vmatpush1.bf16.msra.mxu0 %v3089
    %3558 = vmatprep.subr.bf16.mxu0 %v3076
    %3559 = vmatpush1.bf16.msra.mxu0 %v3075
    %3560 = vmatprep.subr.bf16.mxu0 %v3062
    %3561 = vmatpush1.bf16.msra.mxu0 %v3061
    %3562 = vmatprep.subr.bf16.mxu0 %v3048
    %3563 = vmatpush1.bf16.msra.mxu0 %v3047
    %3564 = vmatprep.subr.bf16.mxu0 %v3034
    %3565 = vmatpush1.bf16.msra.mxu0 %v3033
    %3566 = vmatprep.subr.bf16.mxu0 %v3020
    %3567 = vmatpush1.bf16.msra.mxu0 %v3019
    %3568 = vmatprep.subr.bf16.mxu0 %v3006
    %3569 = vmatpush1.bf16.msra.mxu0 %v3005
    %3570 = vmatprep.subr.bf16.mxu0 %v2992
    %3571 = vmatpush1.bf16.msra.mxu0 %v2991
    %3572 = vmatprep.subr.bf16.mxu0 %v3202
    %3573 = vmatpush2.bf16.msra.mxu0 %v3201
    %3574 = vmatprep.subr.bf16.mxu0 %v3188
    %3575 = vmatpush2.bf16.msra.mxu0 %v3187
    %3576 = vmatprep.subr.bf16.mxu0 %v3174
    %3577 = vmatpush2.bf16.msra.mxu0 %v3173
    %3578 = vmatprep.subr.bf16.mxu0 %v3160
    %3579 = vmatpush2.bf16.msra.mxu0 %v3159
    %3580 = vmatprep.subr.bf16.mxu0 %v3146
    %3581 = vmatpush2.bf16.msra.mxu0 %v3145
    %3582 = vmatprep.subr.bf16.mxu0 %v3132
    %3583 = vmatpush2.bf16.msra.mxu0 %v3131
    %3584 = vmatprep.subr.bf16.mxu0 %v3118
    %3585 = vmatpush2.bf16.msra.mxu0 %v3117
    %3586 = vmatprep.subr.bf16.mxu0 %v3104
    %3587 = vmatpush2.bf16.msra.mxu0 %v3103
    %3588 = vmatprep.mubr.bf16.mxu0 %v2014
    %3589 = vmatmul.mubr.bf16.gmra.mxu0 %v2013
    %v3590 = vpop.f32.mrf.mxu0
    %v3591 = vadd.f32 %v2270, %v3590
    %v3592 = vpop.f32.mrf.mxu0
    %v3593 = vadd.f32 %v2274, %v3592
    %v3594 = vpop.f32.mrf.mxu0
    %v3595 = vpop.f32.mrf.mxu0
    %3596 = vdwg.mxu0
    %3597 = vmatprep.subr.bf16.mxu0 %v3092
    %3598 = vmatpush1.bf16.msra.mxu0 %v3091
    %3599 = vmatprep.subr.bf16.mxu0 %v3078
    %3600 = vmatpush1.bf16.msra.mxu0 %v3077
    %3601 = vmatprep.subr.bf16.mxu0 %v3064
    %3602 = vmatpush1.bf16.msra.mxu0 %v3063
    %3603 = vmatprep.subr.bf16.mxu0 %v3050
    %3604 = vmatpush1.bf16.msra.mxu0 %v3049
    %3605 = vmatprep.subr.bf16.mxu0 %v3036
    %3606 = vmatpush1.bf16.msra.mxu0 %v3035
    %3607 = vmatprep.subr.bf16.mxu0 %v3022
    %3608 = vmatpush1.bf16.msra.mxu0 %v3021
    %3609 = vmatprep.subr.bf16.mxu0 %v3008
    %3610 = vmatpush1.bf16.msra.mxu0 %v3007
    %3611 = vmatprep.subr.bf16.mxu0 %v2994
    %3612 = vmatpush1.bf16.msra.mxu0 %v2993
    %3613 = vmatprep.subr.bf16.mxu0 %v3204
    %3614 = vmatpush2.bf16.msra.mxu0 %v3203
    %3615 = vmatprep.subr.bf16.mxu0 %v3190
    %3616 = vmatpush2.bf16.msra.mxu0 %v3189
    %3617 = vmatprep.subr.bf16.mxu0 %v3176
    %3618 = vmatpush2.bf16.msra.mxu0 %v3175
    %3619 = vmatprep.subr.bf16.mxu0 %v3162
    %3620 = vmatpush2.bf16.msra.mxu0 %v3161
    %3621 = vmatprep.subr.bf16.mxu0 %v3148
    %3622 = vmatpush2.bf16.msra.mxu0 %v3147
    %3623 = vmatprep.subr.bf16.mxu0 %v3134
    %3624 = vmatpush2.bf16.msra.mxu0 %v3133
    %3625 = vmatprep.subr.bf16.mxu0 %v3120
    %3626 = vmatpush2.bf16.msra.mxu0 %v3119
    %3627 = vmatprep.subr.bf16.mxu0 %v3106
    %3628 = vmatpush2.bf16.msra.mxu0 %v3105
    %3629 = vmatprep.mubr.bf16.mxu0 %v2014
    %3630 = vmatmul.mubr.bf16.gmra.mxu0 %v2013
    %v3631 = vpop.f32.mrf.mxu0
    %v3632 = vadd.f32 %v2278, %v3631
    %v3633 = vpop.f32.mrf.mxu0
    %v3634 = vadd.f32 %v2282, %v3633
    %v3635 = vpop.f32.mrf.mxu0
    %v3636 = vpop.f32.mrf.mxu0
    %3637 = vdwg.mxu0
    %3638 = vmatprep.subr.bf16.mxu0 %v3094
    %3639 = vmatpush1.bf16.msra.mxu0 %v3093
    %3640 = vmatprep.subr.bf16.mxu0 %v3080
    %3641 = vmatpush1.bf16.msra.mxu0 %v3079
    %3642 = vmatprep.subr.bf16.mxu0 %v3066
    %3643 = vmatpush1.bf16.msra.mxu0 %v3065
    %3644 = vmatprep.subr.bf16.mxu0 %v3052
    %3645 = vmatpush1.bf16.msra.mxu0 %v3051
    %3646 = vmatprep.subr.bf16.mxu0 %v3038
    %3647 = vmatpush1.bf16.msra.mxu0 %v3037
    %3648 = vmatprep.subr.bf16.mxu0 %v3024
    %3649 = vmatpush1.bf16.msra.mxu0 %v3023
    %3650 = vmatprep.subr.bf16.mxu0 %v3010
    %3651 = vmatpush1.bf16.msra.mxu0 %v3009
    %3652 = vmatprep.subr.bf16.mxu0 %v2996
    %3653 = vmatpush1.bf16.msra.mxu0 %v2995
    %3654 = vmatprep.subr.bf16.mxu0 %v3206
    %3655 = vmatpush2.bf16.msra.mxu0 %v3205
    %3656 = vmatprep.subr.bf16.mxu0 %v3192
    %3657 = vmatpush2.bf16.msra.mxu0 %v3191
    %3658 = vmatprep.subr.bf16.mxu0 %v3178
    %3659 = vmatpush2.bf16.msra.mxu0 %v3177
    %3660 = vmatprep.subr.bf16.mxu0 %v3164
    %3661 = vmatpush2.bf16.msra.mxu0 %v3163
    %3662 = vmatprep.subr.bf16.mxu0 %v3150
    %3663 = vmatpush2.bf16.msra.mxu0 %v3149
    %3664 = vmatprep.subr.bf16.mxu0 %v3136
    %3665 = vmatpush2.bf16.msra.mxu0 %v3135
    %3666 = vmatprep.subr.bf16.mxu0 %v3122
    %3667 = vmatpush2.bf16.msra.mxu0 %v3121
    %3668 = vmatprep.subr.bf16.mxu0 %v3108
    %3669 = vmatpush2.bf16.msra.mxu0 %v3107
    %3670 = vmatprep.mubr.bf16.mxu0 %v2014
    %3671 = vmatmul.mubr.bf16.gmra.mxu0 %v2013
    %v3672 = vpop.f32.mrf.mxu0
    %v3673 = vadd.f32 %v2286, %v3672
    %v3674 = vpop.f32.mrf.mxu0
    %v3675 = vadd.f32 %v2290, %v3674
    %v3676 = vpop.f32.mrf.mxu0
    %v3677 = vpop.f32.mrf.mxu0
    %3678 = vdwg.mxu0
    %3679 = vmatprep.subr.bf16.mxu0 %v3096
    %3680 = vmatpush1.bf16.msra.mxu0 %v3095
    %3681 = vmatprep.subr.bf16.mxu0 %v3082
    %3682 = vmatpush1.bf16.msra.mxu0 %v3081
    %3683 = vmatprep.subr.bf16.mxu0 %v3068
    %3684 = vmatpush1.bf16.msra.mxu0 %v3067
    %3685 = vmatprep.subr.bf16.mxu0 %v3054
    %3686 = vmatpush1.bf16.msra.mxu0 %v3053
    %3687 = vmatprep.subr.bf16.mxu0 %v3040
    %3688 = vmatpush1.bf16.msra.mxu0 %v3039
    %3689 = vmatprep.subr.bf16.mxu0 %v3026
    %3690 = vmatpush1.bf16.msra.mxu0 %v3025
    %3691 = vmatprep.subr.bf16.mxu0 %v3012
    %3692 = vmatpush1.bf16.msra.mxu0 %v3011
    %3693 = vmatprep.subr.bf16.mxu0 %v2998
    %3694 = vmatpush1.bf16.msra.mxu0 %v2997
    %3695 = vmatprep.subr.bf16.mxu0 %v3208
    %3696 = vmatpush2.bf16.msra.mxu0 %v3207
    %3697 = vmatprep.subr.bf16.mxu0 %v3194
    %3698 = vmatpush2.bf16.msra.mxu0 %v3193
    %3699 = vmatprep.subr.bf16.mxu0 %v3180
    %3700 = vmatpush2.bf16.msra.mxu0 %v3179
    %3701 = vmatprep.subr.bf16.mxu0 %v3166
    %3702 = vmatpush2.bf16.msra.mxu0 %v3165
    %3703 = vmatprep.subr.bf16.mxu0 %v3152
    %3704 = vmatpush2.bf16.msra.mxu0 %v3151
    %3705 = vmatprep.subr.bf16.mxu0 %v3138
    %3706 = vmatpush2.bf16.msra.mxu0 %v3137
    %3707 = vmatprep.subr.bf16.mxu0 %v3124
    %3708 = vmatpush2.bf16.msra.mxu0 %v3123
    %3709 = vmatprep.subr.bf16.mxu0 %v3110
    %3710 = vmatpush2.bf16.msra.mxu0 %v3109
    %3711 = vmatprep.mubr.bf16.mxu0 %v2014
    %3712 = vmatmul.mubr.bf16.gmra.mxu0 %v2013
    %v3713 = vpop.f32.mrf.mxu0
    %v3714 = vadd.f32 %v2294, %v3713
    %v3715 = vpop.f32.mrf.mxu0
    %v3716 = vadd.f32 %v2298, %v3715
    %v3717 = vpop.f32.mrf.mxu0
    %v3718 = vpop.f32.mrf.mxu0
    %3719 = vdwg.mxu0
    %v3720 = vxor.u32 %v3468, 2147483648
    %v3721 = vxor.u32 %v3470, 2147483648
    %v3722 = vxor.u32 %v3509, 2147483648
    %v3723 = vxor.u32 %v3511, 2147483648
    %v3724 = vxor.u32 %v3550, 2147483648
    %v3725 = vxor.u32 %v3552, 2147483648
    %v3726 = vxor.u32 %v3591, 2147483648
    %v3727 = vxor.u32 %v3593, 2147483648
    %v3728 = vxor.u32 %v3632, 2147483648
    %v3729 = vxor.u32 %v3634, 2147483648
    %v3730 = vxor.u32 %v3673, 2147483648
    %v3731 = vxor.u32 %v3675, 2147483648
    %v3732 = vxor.u32 %v3714, 2147483648
    %v3733 = vxor.u32 %v3716, 2147483648
    %v3734 = vmul.f32 %v3720, 1.442695
    %v3735 = vpow.pop %v3734
    %v3736 = vmul.f32 %v3721, 1.442695
    %v3737 = vpow.pop %v3736
    %v3738 = vmul.f32 %v3722, 1.442695
    %v3739 = vpow.pop %v3738
    %v3740 = vmul.f32 %v3723, 1.442695
    %v3741 = vpow.pop %v3740
    %v3742 = vmul.f32 %v3724, 1.442695
    %v3743 = vpow.pop %v3742
    %v3744 = vmul.f32 %v3725, 1.442695
    %v3745 = vpow.pop %v3744
    %v3746 = vmul.f32 %v3726, 1.442695
    %v3747 = vpow.pop %v3746
    %v3748 = vmul.f32 %v3727, 1.442695
    %v3749 = vpow.pop %v3748
    %v3750 = vmul.f32 %v3728, 1.442695
    %v3751 = vpow.pop %v3750
    %v3752 = vmul.f32 %v3729, 1.442695
    %v3753 = vpow.pop %v3752
    %v3754 = vmul.f32 %v3730, 1.442695
    %v3755 = vpow.pop %v3754
    %v3756 = vmul.f32 %v3731, 1.442695
    %v3757 = vpow.pop %v3756
    %v3758 = vmul.f32 %v3732, 1.442695
    %v3759 = vpow.pop %v3758
    %v3760 = vmul.f32 %v3733, 1.442695
    %v3761 = vpow.pop %v3760
    %v3762 = vadd.f32 %v3735, 1.0
    %v3763 = vadd.f32 %v3737, 1.0
    %v3764 = vadd.f32 %v3739, 1.0
    %v3765 = vadd.f32 %v3741, 1.0
    %v3766 = vadd.f32 %v3743, 1.0
    %v3767 = vadd.f32 %v3745, 1.0
    %v3768 = vadd.f32 %v3747, 1.0
    %v3769 = vadd.f32 %v3749, 1.0
    %v3770 = vadd.f32 %v3751, 1.0
    %v3771 = vadd.f32 %v3753, 1.0
    %v3772 = vadd.f32 %v3755, 1.0
    %v3773 = vadd.f32 %v3757, 1.0
    %v3774 = vadd.f32 %v3759, 1.0
    %v3775 = vadd.f32 %v3761, 1.0
    %v3776 = vrcp.pop %v3762
    %v3777 = vmul.f32 1.0, %v3776
    %v3778 = vrcp.pop %v3763
    %v3779 = vmul.f32 1.0, %v3778
    %v3780 = vrcp.pop %v3764
    %v3781 = vmul.f32 1.0, %v3780
    %v3782 = vrcp.pop %v3765
    %v3783 = vmul.f32 1.0, %v3782
    %v3784 = vrcp.pop %v3766
    %v3785 = vmul.f32 1.0, %v3784
    %v3786 = vrcp.pop %v3767
    %v3787 = vmul.f32 1.0, %v3786
    %v3788 = vrcp.pop %v3768
    %v3789 = vmul.f32 1.0, %v3788
    %v3790 = vrcp.pop %v3769
    %v3791 = vmul.f32 1.0, %v3790
    %v3792 = vrcp.pop %v3770
    %v3793 = vmul.f32 1.0, %v3792
    %v3794 = vrcp.pop %v3771
    %v3795 = vmul.f32 1.0, %v3794
    %v3796 = vrcp.pop %v3772
    %v3797 = vmul.f32 1.0, %v3796
    %v3798 = vrcp.pop %v3773
    %v3799 = vmul.f32 1.0, %v3798
    %v3800 = vrcp.pop %v3774
    %v3801 = vmul.f32 1.0, %v3800
    %v3802 = vrcp.pop %v3775
    %v3803 = vmul.f32 1.0, %v3802
    %v3804 = vpack.c.bf16 %v3777, %v3777
    %v3805 = vpack.c.bf16 %v3779, %v3779
    %v3806 = vpack.c.bf16 %v3781, %v3781
    %v3807 = vpack.c.bf16 %v3783, %v3783
    %v3808 = vpack.c.bf16 %v3785, %v3785
    %v3809 = vpack.c.bf16 %v3787, %v3787
    %v3810 = vpack.c.bf16 %v3789, %v3789
    %v3811 = vpack.c.bf16 %v3791, %v3791
    %v3812 = vpack.c.bf16 %v3793, %v3793
    %v3813 = vpack.c.bf16 %v3795, %v3795
    %v3814 = vpack.c.bf16 %v3797, %v3797
    %v3815 = vpack.c.bf16 %v3799, %v3799
    %v3816 = vpack.c.bf16 %v3801, %v3801
    %v3817 = vpack.c.bf16 %v3803, %v3803
    %v3832 = vcombine.low %v3804, %v3805
    %v3833 = vcombine.low %v3806, %v3807
    %v3835 = vunpack.c.l.s4 1983009808
    %v3836 = vunpack.c.0.s8 %v3835
    %v3837 = vlaneseq
    %v3838 = vshrl.u32 %v3837, 7
    %v3839 = vsub.s32 %v3836, %v3838
    %v3840 = vrot.slane %v3832, %v3839
    %v3842 = vunpack.c.l.s4 1983009808
    %v3843 = vunpack.c.0.s8 %v3842
    %v3844 = vlaneseq
    %v3845 = vshrl.u32 %v3844, 7
    %v3846 = vsub.s32 %v3843, %v3845
    %v3847 = vrot.slane %v3833, %v3846
    %v3848 = vcombine.low %v3840, %v3847
    %v3849 = vcombine.low %v3808, %v3809
    %v3850 = vcombine.low %v3810, %v3811
    %v3852 = vunpack.c.l.s4 1983009808
    %v3853 = vunpack.c.0.s8 %v3852
    %v3854 = vlaneseq
    %v3855 = vshrl.u32 %v3854, 7
    %v3856 = vsub.s32 %v3853, %v3855
    %v3857 = vrot.slane %v3849, %v3856
    %v3859 = vunpack.c.l.s4 1983009808
    %v3860 = vunpack.c.0.s8 %v3859
    %v3861 = vlaneseq
    %v3862 = vshrl.u32 %v3861, 7
    %v3863 = vsub.s32 %v3860, %v3862
    %v3864 = vrot.slane %v3850, %v3863
    %v3865 = vcombine.low %v3857, %v3864
    %v3866 = vcombine.low %v3812, %v3813
    %v3867 = vcombine.low %v3814, %v3815
    %v3869 = vunpack.c.l.s4 1983009808
    %v3870 = vunpack.c.0.s8 %v3869
    %v3871 = vlaneseq
    %v3872 = vshrl.u32 %v3871, 7
    %v3873 = vsub.s32 %v3870, %v3872
    %v3874 = vrot.slane %v3866, %v3873
    %v3876 = vunpack.c.l.s4 1983009808
    %v3877 = vunpack.c.0.s8 %v3876
    %v3878 = vlaneseq
    %v3879 = vshrl.u32 %v3878, 7
    %v3880 = vsub.s32 %v3877, %v3879
    %v3881 = vrot.slane %v3867, %v3880
    %v3882 = vcombine.low %v3874, %v3881
    %v3883 = vcombine.low %v3816, %v3817
    %v3885 = vunpack.c.l.s4 1983009808
    %v3886 = vunpack.c.0.s8 %v3885
    %v3887 = vlaneseq
    %v3888 = vshrl.u32 %v3887, 7
    %v3889 = vsub.s32 %v3886, %v3888
    %v3890 = vrot.slane %v3883, %v3889
    %3895 = vst [vmem:[#allocation8] sm:$0xff] %v3848
    %3896 = vst [vmem:[#allocation8 + $0x8] sm:$0xff] %v3865
    %3897 = vst [vmem:[#allocation8 + $0x10] sm:$0xff] %v3882
    %vm3898 = vcmask 1041408
    %vm3899 = vcmask 781314
    %vm3900 = vmor %vm3899, %vm3898
    %3901 = vst.msk [vmem:[#allocation8 + $0x18] sm:$0xf] %vm3900, %v3890
    %3902 = vst [vmem:[%s12] sm:$0xf] %v1903
    // Predicated region
    $region58: #{_lambda_.1} parent=1 // pred_check
      _
    $region59: #{_lambda_.1} parent=1 // pred_check_branch
      %3904 = sbr.rel (0) target = $region61
    $region60: #{_lambda_.1} parent=1 // pred_region
      %s3906 = ssub.s32 448, 448
      %3907 = vsyncadd [#allocation4], %s3906
      %s3909 = sshll.u32 [#allocation8], 4
      %s3910 = int_to_ptr.vmem [resolvable:$true] %s3909
      %3912 = dma.vmem_to_hbm [thread:$0]  %s3910, 448, %s11, [#allocation4]
    $region61: #{_lambda_.1} parent=1 // pred_fallthru
      _
    // Predicated region
    $region62: #{_lambda_.1} parent=1 // pred_check
      _
    $region63: #{_lambda_.1} parent=1 // pred_check_branch
      %3914 = sbr.rel (0) target = $region65
    $region64: #{_lambda_.1} parent=1 // pred_region
      _
    $region65: #{_lambda_.1} parent=1 // pred_fallthru
      _
    // Predicated region
    $region66: #{_lambda_.1} parent=1 // pred_check
      _
    $region67: #{_lambda_.1} parent=1 // pred_check_branch
      %3916 = sbr.rel (0) target = $region69
    $region68: #{_lambda_.1} parent=1 // pred_region
      %3917 = dma.done [#allocation4], 448
    $region69: #{_lambda_.1} parent=1 // pred_fallthru
      _
    // Predicated region
    $region70: #{_lambda_.1} parent=1 // pred_check
      _
    $region71: #{_lambda_.1} parent=1 // pred_check_branch
      %3919 = sbr.rel (0) target = $region73
    $region72: #{_lambda_.1} parent=1 // pred_region
      _
    $region73: #{_lambda_.1} parent=1 // pred_fallthru
      _
    %3920 = vsyncpa [#allocation3], 1
    %3921 = vsyncpa [#allocation6], 1
    %3922 = vsyncpa [#allocation4], 1

</llo_original>
